<compile_context>
chip_gen: v7x
topology: tpu7x:2x2x1
jax: 0.10.0
libtpu: 0.0.40
codegen_flags: <defaults>
</compile_context>

<pallas_src>
import numpy as np
import jax
import jax.numpy as jnp
from jax import lax
from jax.experimental import pallas as pl
from jax.experimental.pallas import tpu as pltpu

LEAK = 0.3      # nn.LeakyReLU(0.3)
EPS = 1e-5      # GroupNorm eps (PyTorch default)


# ------------------------------------------------------------------ kernel --

def _make_network_kernel(H, W, blocks):
    """Fused forward kernel for the whole ResNet.

    blocks: tuple of static per-block descriptors (cin_pad, cout, has_proj, cpg).
    Per-block refs (in order): w1 (Cout, 9*Cin), w2 (Cout, 9*Cout),
    packed (Cout, 8) = [b1,g1,be1,b2,g2,be2,bs,0], then ws (Cout, Cin) if the
    block has a 1x1 projection shortcut, then A (Cout, Cout) if cpg > 1.
    """
    HW = H * W
    OFF = W                      # lane offset of the padded window in scratch
    PADN = (H + 2) * W           # reflect-H padded window length
    pow2_w = (W & (W - 1)) == 0

    def kernel(*refs):
        x_ref = refs[0]
        out_ref = refs[-3]
        pad_s = refs[-2]         # (Cmax, LPAD)  f32 reflect-H padded activations
        stk_s = refs[-1]         # (9*Cmax, HW)  f32 stacked-tap conv operand
        prefs = refs[1:-3]

        # The only scratch lanes a tap load can touch without being written
        # first are [0, OFF) and [OFF+PADN, LPAD); they are always deselected
        # by the wrap fixups, but keep them finite.  These two stores are tiny
        # (done every step so they are also correct under megacore splitting).
        cmax, lpad = pad_s.shape
        pad_s[:, 0:OFF] = jnp.zeros((cmax, OFF), jnp.float32)
        if lpad > OFF + PADN:
            pad_s[:, OFF + PADN:] = jnp.zeros((cmax, lpad - OFF - PADN),
                                              jnp.float32)

        # Circular-W wrap masks built in-kernel (no HBM operand).
        lane = lax.broadcasted_iota(jnp.int32, (1, HW), 1)
        col = (lane & (W - 1)) if pow2_w else (lane % W)
        mask_cache = {}

        def wrap_masks(c):
            if c not in mask_cache:
                cb = jnp.broadcast_to(col, (c, HW))
                mask_cache[c] = (cb == 0, cb == W - 1)
            return mask_cache[c]

        def leaky(v):
            return jnp.where(v >= 0, v, LEAK * v)

        def conv3x3(a, w_ref, cin):
            # a: (cin, HW) f32.  Reflect-H pad: [row 1 | rows 0..H-1 | row H-2].
            pad_s[0:cin, OFF:OFF + W] = a[:, W:2 * W]
            pad_s[0:cin, OFF + W:OFF + W + HW] = a
            pad_s[0:cin, OFF + W + HW:OFF + 2 * W + HW] = \
                a[:, (H - 2) * W:(H - 1) * W]
            m_first, m_last = wrap_masks(cin)
            # Build the (9*cin, HW) stacked-tap operand once (pay the
            # lane-shift cost on the store path), then ONE matmul per conv.
            for kh in range(3):
                base = OFF + kh * W
                center = pad_s[0:cin, base:base + HW]
                left = jnp.where(
                    m_first,
                    pad_s[0:cin, base + W - 1:base + W - 1 + HW],   # wrap w==0
                    pad_s[0:cin, base - 1:base - 1 + HW])
                right = jnp.where(
                    m_last,
                    pad_s[0:cin, base + 1 - W:base + 1 - W + HW],   # wrap w==W-1
                    pad_s[0:cin, base + 1:base + 1 + HW])
                stk_s[(kh * 3 + 0) * cin:(kh * 3 + 1) * cin, :] = left
                stk_s[(kh * 3 + 1) * cin:(kh * 3 + 2) * cin, :] = center
                stk_s[(kh * 3 + 2) * cin:(kh * 3 + 3) * cin, :] = right
            return jnp.dot(w_ref[...], stk_s[0:9 * cin, :],
                           preferred_element_type=jnp.float32)

        def gnorm(z, gamma, beta, cpg, a_ref):
            # Two-pass mean/var (no cancellation risk).  With
            # num_groups = min(32, C) and C <= 32 here, cpg == 1 and this is a
            # per-channel (instance) norm; the generic path uses the
            # host-precomputed averaging matrix A (already includes 1/(n*cpg)).
            s1 = jnp.sum(z, axis=1, keepdims=True)                  # (C, 1)
            if cpg == 1:
                mean = s1 * (1.0 / HW)
            else:
                mean = jnp.dot(a_ref[...], s1,
                               preferred_element_type=jnp.float32)
            cen = z - mean
            s2 = jnp.sum(cen * cen, axis=1, keepdims=True)
            if cpg == 1:
                var = s2 * (1.0 / HW)
            else:
                var = jnp.dot(a_ref[...], s2,
                              preferred_element_type=jnp.float32)
            return cen * lax.rsqrt(var + EPS) * gamma + beta

        cur = x_ref[0]                                              # (C0, HW)
        pi = 0
        for cin, cout, has_proj, cpg in blocks:                     # unrolled
            w1_ref, w2_ref, pk_ref = prefs[pi], prefs[pi + 1], prefs[pi + 2]
            pi += 3
            ws_ref = a_ref = None
            if has_proj:
                ws_ref = prefs[pi]
                pi += 1
            if cpg > 1:
                a_ref = prefs[pi]
                pi += 1
            pk = pk_ref[...]                                        # (cout, 8)
            b1, g1, be1 = pk[:, 0:1], pk[:, 1:2], pk[:, 2:3]
            b2, g2, be2 = pk[:, 3:4], pk[:, 4:5], pk[:, 5:6]

            # pre-activation residual block
            y1 = gnorm(conv3x3(leaky(cur), w1_ref, cin) + b1, g1, be1, cpg, a_ref)
            y2 = gnorm(conv3x3(leaky(y1), w2_ref, cout) + b2, g2, be2, cpg, a_ref)
            if has_proj:
                sc = jnp.dot(ws_ref[...], cur,
                             preferred_element_type=jnp.float32) + pk[:, 6:7]
            else:
                sc = cur
            cur = y2 + sc
        out_ref[0] = cur

    return kernel


# ---------------------------------------------------------- pallas wrapper --

def _round_up(a, m):
    return (a + m - 1) // m * m


def _pack_conv_w(w, cin_pad):
    """(3,3,cin,cout) -> (cout, 9*cin_pad) f32, tap-major (t = kh*3 + kw)."""
    _, _, cin, cout = w.shape
    w = jnp.pad(w.astype(jnp.float32), ((0, 0), (0, 0), (0, cin_pad - cin), (0, 0)))
    w = w.reshape(9, cin_pad, cout)
    return jnp.transpose(w, (2, 0, 1)).reshape(cout, 9 * cin_pad)


@jax.jit
def climate_resnet2d_pallas(x_nchw, params):
    """x: (N, C, H, W) NCHW float.  One fused pallas_call for the whole net."""
    N, C0, H, W = x_nchw.shape
    assert H >= 2 and W >= 2
    HW = H * W
    x = x_nchw.astype(jnp.float32).reshape(N, C0, HW)

    # Pad the network-input channel count to a multiple of 8 (zero channels x
    # zero weight columns == exact no-op) so every stacked-tap band is
    # sublane-tile aligned.
    C0p = _round_up(C0, 8)
    if C0p != C0:
        x = jnp.pad(x, ((0, 0), (0, C0p - C0), (0, 0)))

    LPAD = _round_up(W * (H + 4), 128)          # pad-scratch lane length

    def const_spec(shape):
        return pl.BlockSpec(shape, lambda n, _z=(0,) * len(shape): _z)

    args = [x]
    in_specs = [pl.BlockSpec((1, C0p, HW), lambda n: (n, 0, 0))]
    blocks = []
    cin_raw, cin_pad, cmax = C0, C0p, C0p

    for p in params:
        cin_p, cout = p['w1'].shape[2], p['w1'].shape[3]
        assert cin_p == cin_raw
        # TODO(synk): pad hidden sizes that are not multiples of 8.
        assert cout % 8 == 0, "hidden sizes must be multiples of 8"
        G = min(32, cout)
        cpg = cout // G
        has_proj = (cin_raw != cout)

        w1 = _pack_conv_w(p['w1'], cin_pad)
        w2 = _pack_conv_w(p['w2'], cout)
        flat = lambda v: v.reshape(-1).astype(jnp.float32)
        cols = [flat(p['b1']), flat(p['g1']), flat(p['be1']),
                flat(p['b2']), flat(p['g2']), flat(p['be2'])]
        cols.append(flat(p['bs']) if has_proj else jnp.zeros((cout,), jnp.float32))
        cols.append(jnp.zeros((cout,), jnp.float32))
        pk = jnp.stack(cols, axis=1)                               # (cout, 8)

        args += [w1, w2, pk]
        in_specs += [const_spec((cout, 9 * cin_pad)),
                     const_spec((cout, 9 * cout)),
                     const_spec((cout, 8))]
        if has_proj:
            ws = jnp.pad(p['ws'].astype(jnp.float32),
                         ((0, cin_pad - cin_raw), (0, 0)))         # (cin_pad, cout)
            args.append(jnp.transpose(ws))                          # (cout, cin_pad)
            in_specs.append(const_spec((cout, cin_pad)))
        if cpg > 1:
            gids = jnp.arange(cout) // cpg
            a_mat = (gids[:, None] == gids[None, :]).astype(jnp.float32) / (cpg * HW)
            args.append(a_mat)                                      # (cout, cout)
            in_specs.append(const_spec((cout, cout)))

        blocks.append((cin_pad, cout, has_proj, cpg))
        cmax = max(cmax, cout)
        cin_raw, cin_pad = cout, cout

    kernel = _make_network_kernel(H, W, tuple(blocks))
    out = pl.pallas_call(
        kernel,
        out_shape=jax.ShapeDtypeStruct((N, cin_raw, HW), jnp.float32),
        grid=(N,),
        in_specs=in_specs,
        out_specs=pl.BlockSpec((1, cin_raw, HW), lambda n: (n, 0, 0)),
        scratch_shapes=[pltpu.VMEM((cmax, LPAD), jnp.float32),
                        pltpu.VMEM((9 * cmax, HW), jnp.float32)],
        compiler_params=pltpu.CompilerParams(
            dimension_semantics=("parallel",)),
    )(*args)
    return out.reshape(N, cin_raw, H, W)


# ------------------------------------------------------------- params / ref --

def make_block_params(key, cin, cout):
    ks = jax.random.split(key, 10)
    p = {
        'w1': 0.1 * jax.random.normal(ks[0], (3, 3, cin, cout), jnp.float32),
        'b1': 0.05 * jax.random.normal(ks[1], (1, cout), jnp.float32),
        'w2': 0.1 * jax.random.normal(ks[2], (3, 3, cout, cout), jnp.float32),
        'b2': 0.05 * jax.random.normal(ks[3], (1, cout), jnp.float32),
        'g1': 1.0 + 0.1 * jax.random.normal(ks[4], (1, cout), jnp.float32),
        'be1': 0.05 * jax.random.normal(ks[5], (1, cout), jnp.float32),
        'g2': 1.0 + 0.1 * jax.random.normal(ks[6], (1, cout), jnp.float32),
        'be2': 0.05 * jax.random.normal(ks[7], (1, cout), jnp.float32),
    }
    if cin != cout:     # nn.Conv2d(cin, cout, 1) shortcut; identity needs none
        p['ws'] = 0.1 * jax.random.normal(ks[8], (cin, cout), jnp.float32)
        p['bs'] = 0.05 * jax.random.normal(ks[9], (1, cout), jnp.float32)
    return p


def make_params(key, in_channels, layers_length, layers_hidden_size):
    params = []
    cin = in_channels
    for length, hid in zip(layers_length, layers_hidden_size):
        for r in range(length):
            key, sub = jax.random.split(key)
            params.append(make_block_params(sub, cin if r == 0 else hid, hid))
        cin = hid
    return params


def climate_resnet2d_ref(x, params):
    """Pure NumPy float64 reference mirroring the PyTorch module (NCHW)."""
    act = lambda v: np.where(v >= 0, v, LEAK * v)

    def pad(z):  # reflect-H by 1 (excl. edge), circular-W by 1
        z = np.concatenate([z[:, :, 1:2, :], z, z[:, :, -2:-1, :]], axis=2)
        z = np.concatenate([z[:, :, :, -1:], z, z[:, :, :, :1]], axis=3)
        return z

    def conv3(z, w, b):  # z already padded; w: (3,3,cin,cout)
        n, c, hp, wp = z.shape
        ho, wo = hp - 2, wp - 2
        out = np.zeros((n, w.shape[3], ho, wo))
        for kh in range(3):
            for kw in range(3):
                out += np.einsum('nchw,co->nohw',
                                 z[:, :, kh:kh + ho, kw:kw + wo], w[kh, kw])
        return out + b.reshape(1, -1, 1, 1)

    def gnorm(z, gamma, beta):
        n, c, h, w = z.shape
        g = min(32, c)
        zr = z.reshape(n, g, c // g, h, w)
        m = zr.mean(axis=(2, 3, 4), keepdims=True)
        v = ((zr - m) ** 2).mean(axis=(2, 3, 4), keepdims=True)
        zr = (zr - m) / np.sqrt(v + EPS)
        return zr.reshape(n, c, h, w) * gamma.reshape(1, -1, 1, 1) \
            + beta.reshape(1, -1, 1, 1)

    x = np.asarray(x, np.float64)
    for p in params:
        cin, cout = p['w1'].shape[2], p['w1'].shape[3]
        out = gnorm(conv3(pad(act(x)), p['w1'], p['b1']), p['g1'], p['be1'])
        out = gnorm(conv3(pad(act(out)), p['w2'], p['b2']), p['g2'], p['be2'])
        if cin == cout:
            sc = x
        else:
            sc = np.einsum('nchw,co->nohw', x, p['ws']) + p['bs'].reshape(1, -1, 1, 1)
        x = out + sc
    return x


# ----------------------------------------------------------------------- main --

if __name__ == "__main__":
    key = jax.random.PRNGKey(0)

    in_channels = 4
    layers_length = [2, 1]
    layers_hidden_size = [8, 16]
    N, H, W = 2, 16, 16

    key, xk, pk = jax.random.split(key, 3)
    x = jax.random.normal(xk, (N, in_channels, H, W), jnp.float32)   # NCHW
    params = make_params(pk, in_channels, layers_length, layers_hidden_size)

    out = jax.block_until_ready(climate_resnet2d_pallas(x, params))

    params_np = [{k: np.asarray(v, np.float64) for k, v in p.items()}
                 for p in params]
    ref = climate_resnet2d_ref(np.asarray(x, np.float64), params_np)

    assert out.shape == (N, layers_hidden_size[-1], H, W), out.shape
    out64 = np.asarray(out, np.float64)
    max_abs = float(np.max(np.abs(out64 - ref)))
    rel_l2 = float(np.linalg.norm(out64 - ref) / np.linalg.norm(ref))
    # Compiled Mosaic f32 matmuls track the float64 reference to ~1e-5; the
    # looser bounds below also cover interpret-mode execution, where in-kernel
    # jnp.dot falls back to the TPU backend's default (bf16-pass) matmul
    # precision across 6 chained conv stages (previously measured ~4e-2 max).
    assert max_abs < 1e-1 and rel_l2 < 3e-2, (max_abs, rel_l2)

    print("KERNEL_OK")
</pallas_src>

<mosaic_0001>
module attributes {stable_mosaic.version = 11 : i64} {
  func.func @kernel(%arg0: i32, %arg1: memref<1x8x256xf32, #tpu.memory_space<vmem>>, %arg2: memref<8x72xf32, #tpu.memory_space<vmem>>, %arg3: memref<8x72xf32, #tpu.memory_space<vmem>>, %arg4: memref<8x8xf32, #tpu.memory_space<vmem>>, %arg5: memref<8x8xf32, #tpu.memory_space<vmem>>, %arg6: memref<8x72xf32, #tpu.memory_space<vmem>>, %arg7: memref<8x72xf32, #tpu.memory_space<vmem>>, %arg8: memref<8x8xf32, #tpu.memory_space<vmem>>, %arg9: memref<16x72xf32, #tpu.memory_space<vmem>>, %arg10: memref<16x144xf32, #tpu.memory_space<vmem>>, %arg11: memref<16x8xf32, #tpu.memory_space<vmem>>, %arg12: memref<16x8xf32, #tpu.memory_space<vmem>>, %arg13: memref<1x16x256xf32, #tpu.memory_space<vmem>>, %arg14: memref<16x384xf32, #tpu.memory_space<vmem>>, %arg15: memref<144x256xf32, #tpu.memory_space<vmem>>) attributes {dimension_semantics = [#tpu.dimension_semantics<parallel>], iteration_bounds = array<i64: 2>, scalar_prefetch = 0 : i64, scratch_operands = 2 : i64, tpu.core_type = #tpu.core_type<tc>, window_params = [{transform_indices = @transform_0, window_bounds = array<i64: 1, 8, 256>}, {pipeline_mode = #tpu.pipeline_mode<synchronous>, transform_indices = @transform_1, window_bounds = array<i64: 8, 72>}, {pipeline_mode = #tpu.pipeline_mode<synchronous>, transform_indices = @transform_2, window_bounds = array<i64: 8, 72>}, {pipeline_mode = #tpu.pipeline_mode<synchronous>, transform_indices = @transform_3, window_bounds = array<i64: 8, 8>}, {pipeline_mode = #tpu.pipeline_mode<synchronous>, transform_indices = @transform_4, window_bounds = array<i64: 8, 8>}, {pipeline_mode = #tpu.pipeline_mode<synchronous>, transform_indices = @transform_5, window_bounds = array<i64: 8, 72>}, {pipeline_mode = #tpu.pipeline_mode<synchronous>, transform_indices = @transform_6, window_bounds = array<i64: 8, 72>}, {pipeline_mode = #tpu.pipeline_mode<synchronous>, transform_indices = @transform_7, window_bounds = array<i64: 8, 8>}, {pipeline_mode = #tpu.pipeline_mode<synchronous>, transform_indices = @transform_8, window_bounds = array<i64: 16, 72>}, {pipeline_mode = #tpu.pipeline_mode<synchronous>, transform_indices = @transform_9, window_bounds = array<i64: 16, 144>}, {pipeline_mode = #tpu.pipeline_mode<synchronous>, transform_indices = @transform_10, window_bounds = array<i64: 16, 8>}, {pipeline_mode = #tpu.pipeline_mode<synchronous>, transform_indices = @transform_11, window_bounds = array<i64: 16, 8>}, {transform_indices = @transform_12, window_bounds = array<i64: 1, 16, 256>}]} {
    %cst = arith.constant 0.000000e+00 : f32
    %0 = vector.broadcast %cst : f32 to vector<16x16xf32>
    %c0 = arith.constant 0 : index
    %c0_0 = arith.constant 0 : index
    %1 = vector.load %arg14[%c0, %c0_0] : memref<16x384xf32, #tpu.memory_space<vmem>>, vector<16x16xf32>
    tpu.vector_store %arg14[%c0, %c0_0], %0 {strides = array<i32>} : memref<16x384xf32, #tpu.memory_space<vmem>>, vector<16x16xf32>,
    %cst_1 = arith.constant 0.000000e+00 : f32
    %2 = vector.broadcast %cst_1 : f32 to vector<16x80xf32>
    %c0_2 = arith.constant 0 : index
    %c304 = arith.constant 304 : index
    %3 = vector.load %arg14[%c0_2, %c304] : memref<16x384xf32, #tpu.memory_space<vmem>>, vector<16x80xf32>
    tpu.vector_store %arg14[%c0_2, %c304], %2 {strides = array<i32>} : memref<16x384xf32, #tpu.memory_space<vmem>>, vector<16x80xf32>,
    %4 = tpu.iota {dimensions = array<i32: 1>} : vector<1x256xi32>
    %c15_i32 = arith.constant 15 : i32
    %5 = vector.broadcast %c15_i32 : i32 to vector<1x256xi32>
    %6 = arith.andi %4, %5 : vector<1x256xi32>
    %c0_3 = arith.constant 0 : index
    %c0_4 = arith.constant 0 : index
    %c0_5 = arith.constant 0 : index
    %7 = vector.load %arg1[%c0_3, %c0_4, %c0_5] : memref<1x8x256xf32, #tpu.memory_space<vmem>>, vector<1x8x256xf32>
    %8 = vector.shape_cast %7 : vector<1x8x256xf32> to vector<8x256xf32>
    %c0_6 = arith.constant 0 : index
    %c0_7 = arith.constant 0 : index
    %9 = vector.load %arg4[%c0_6, %c0_7] : memref<8x8xf32, #tpu.memory_space<vmem>>, vector<8x8xf32>
    %10 = vector.extract_strided_slice %9 {offsets = [0, 0], sizes = [8, 1], strides = [1, 1]} : vector<8x8xf32> to vector<8x1xf32>
    %11 = vector.extract_strided_slice %9 {offsets = [0, 1], sizes = [8, 1], strides = [1, 1]} : vector<8x8xf32> to vector<8x1xf32>
    %12 = vector.extract_strided_slice %9 {offsets = [0, 2], sizes = [8, 1], strides = [1, 1]} : vector<8x8xf32> to vector<8x1xf32>
    %13 = vector.extract_strided_slice %9 {offsets = [0, 3], sizes = [8, 1], strides = [1, 1]} : vector<8x8xf32> to vector<8x1xf32>
    %14 = vector.extract_strided_slice %9 {offsets = [0, 4], sizes = [8, 1], strides = [1, 1]} : vector<8x8xf32> to vector<8x1xf32>
    %15 = vector.extract_strided_slice %9 {offsets = [0, 5], sizes = [8, 1], strides = [1, 1]} : vector<8x8xf32> to vector<8x1xf32>
    %cst_8 = arith.constant 0.000000e+00 : f32
    %16 = vector.broadcast %cst_8 : f32 to vector<8x256xf32>
    %17 = arith.cmpf oge, %8, %16 : vector<8x256xf32>
    %cst_9 = arith.constant 3.000000e-01 : f32
    %18 = vector.broadcast %cst_9 : f32 to vector<8x256xf32>
    %19 = arith.mulf %18, %8 : vector<8x256xf32>
    %20 = arith.select %17, %8, %19 : vector<8x256xi1>, vector<8x256xf32>
    %21 = vector.extract_strided_slice %20 {offsets = [0, 16], sizes = [8, 16], strides = [1, 1]} : vector<8x256xf32> to vector<8x16xf32>
    %c0_10 = arith.constant 0 : index
    %c16 = arith.constant 16 : index
    %22 = vector.load %arg14[%c0_10, %c16] : memref<16x384xf32, #tpu.memory_space<vmem>>, vector<8x16xf32>
    tpu.vector_store %arg14[%c0_10, %c16], %21 {strides = array<i32>} : memref<16x384xf32, #tpu.memory_space<vmem>>, vector<8x16xf32>,
    %c0_11 = arith.constant 0 : index
    %c32 = arith.constant 32 : index
    %23 = vector.load %arg14[%c0_11, %c32] : memref<16x384xf32, #tpu.memory_space<vmem>>, vector<8x256xf32>
    tpu.vector_store %arg14[%c0_11, %c32], %20 {strides = array<i32>} : memref<16x384xf32, #tpu.memory_space<vmem>>, vector<8x256xf32>,
    %24 = vector.extract_strided_slice %20 {offsets = [0, 224], sizes = [8, 16], strides = [1, 1]} : vector<8x256xf32> to vector<8x16xf32>
    %c0_12 = arith.constant 0 : index
    %c288 = arith.constant 288 : index
    %25 = vector.load %arg14[%c0_12, %c288] : memref<16x384xf32, #tpu.memory_space<vmem>>, vector<8x16xf32>
    tpu.vector_store %arg14[%c0_12, %c288], %24 {strides = array<i32>} : memref<16x384xf32, #tpu.memory_space<vmem>>, vector<8x16xf32>,
    %26 = vector.shape_cast %6 : vector<1x256xi32> to vector<1x256xi32>
    %27 = vector.broadcast %26 : vector<1x256xi32> to vector<8x256xi32>
    %c0_i32 = arith.constant 0 : i32
    %28 = vector.broadcast %c0_i32 : i32 to vector<8x256xi32>
    %29 = arith.cmpi eq, %27, %28 : vector<8x256xi32>
    %c15_i32_13 = arith.constant 15 : i32
    %30 = vector.broadcast %c15_i32_13 : i32 to vector<8x256xi32>
    %31 = arith.cmpi eq, %27, %30 : vector<8x256xi32>
    %c0_14 = arith.constant 0 : index
    %c16_15 = arith.constant 16 : index
    %32 = vector.load %arg14[%c0_14, %c16_15] : memref<16x384xf32, #tpu.memory_space<vmem>>, vector<8x256xf32>
    %c0_16 = arith.constant 0 : index
    %c31 = arith.constant 31 : index
    %33 = vector.load %arg14[%c0_16, %c31] : memref<16x384xf32, #tpu.memory_space<vmem>>, vector<8x256xf32>
    %c0_17 = arith.constant 0 : index
    %c15 = arith.constant 15 : index
    %34 = vector.load %arg14[%c0_17, %c15] : memref<16x384xf32, #tpu.memory_space<vmem>>, vector<8x256xf32>
    %35 = arith.select %29, %33, %34 : vector<8x256xi1>, vector<8x256xf32>
    %c0_18 = arith.constant 0 : index
    %c1 = arith.constant 1 : index
    %36 = vector.load %arg14[%c0_18, %c1] : memref<16x384xf32, #tpu.memory_space<vmem>>, vector<8x256xf32>
    %c0_19 = arith.constant 0 : index
    %c17 = arith.constant 17 : index
    %37 = vector.load %arg14[%c0_19, %c17] : memref<16x384xf32, #tpu.memory_space<vmem>>, vector<8x256xf32>
    %38 = arith.select %31, %36, %37 : vector<8x256xi1>, vector<8x256xf32>
    %c0_20 = arith.constant 0 : index
    %c0_21 = arith.constant 0 : index
    %39 = vector.load %arg15[%c0_20, %c0_21] : memref<144x256xf32, #tpu.memory_space<vmem>>, vector<8x256xf32>
    tpu.vector_store %arg15[%c0_20, %c0_21], %35 {strides = array<i32>} : memref<144x256xf32, #tpu.memory_space<vmem>>, vector<8x256xf32>,
    %c8 = arith.constant 8 : index
    %c0_22 = arith.constant 0 : index
    %40 = vector.load %arg15[%c8, %c0_22] : memref<144x256xf32, #tpu.memory_space<vmem>>, vector<8x256xf32>
    tpu.vector_store %arg15[%c8, %c0_22], %32 {strides = array<i32>} : memref<144x256xf32, #tpu.memory_space<vmem>>, vector<8x256xf32>,
    %c16_23 = arith.constant 16 : index
    %c0_24 = arith.constant 0 : index
    %41 = vector.load %arg15[%c16_23, %c0_24] : memref<144x256xf32, #tpu.memory_space<vmem>>, vector<8x256xf32>
    tpu.vector_store %arg15[%c16_23, %c0_24], %38 {strides = array<i32>} : memref<144x256xf32, #tpu.memory_space<vmem>>, vector<8x256xf32>,
    %c0_25 = arith.constant 0 : index
    %c32_26 = arith.constant 32 : index
    %42 = vector.load %arg14[%c0_25, %c32_26] : memref<16x384xf32, #tpu.memory_space<vmem>>, vector<8x256xf32>
    %c0_27 = arith.constant 0 : index
    %c47 = arith.constant 47 : index
    %43 = vector.load %arg14[%c0_27, %c47] : memref<16x384xf32, #tpu.memory_space<vmem>>, vector<8x256xf32>
    %c0_28 = arith.constant 0 : index
    %c31_29 = arith.constant 31 : index
    %44 = vector.load %arg14[%c0_28, %c31_29] : memref<16x384xf32, #tpu.memory_space<vmem>>, vector<8x256xf32>
    %45 = arith.select %29, %43, %44 : vector<8x256xi1>, vector<8x256xf32>
    %c0_30 = arith.constant 0 : index
    %c17_31 = arith.constant 17 : index
    %46 = vector.load %arg14[%c0_30, %c17_31] : memref<16x384xf32, #tpu.memory_space<vmem>>, vector<8x256xf32>
    %c0_32 = arith.constant 0 : index
    %c33 = arith.constant 33 : index
    %47 = vector.load %arg14[%c0_32, %c33] : memref<16x384xf32, #tpu.memory_space<vmem>>, vector<8x256xf32>
    %48 = arith.select %31, %46, %47 : vector<8x256xi1>, vector<8x256xf32>
    %c24 = arith.constant 24 : index
    %c0_33 = arith.constant 0 : index
    %49 = vector.load %arg15[%c24, %c0_33] : memref<144x256xf32, #tpu.memory_space<vmem>>, vector<8x256xf32>
    tpu.vector_store %arg15[%c24, %c0_33], %45 {strides = array<i32>} : memref<144x256xf32, #tpu.memory_space<vmem>>, vector<8x256xf32>,
    %c32_34 = arith.constant 32 : index
    %c0_35 = arith.constant 0 : index
    %50 = vector.load %arg15[%c32_34, %c0_35] : memref<144x256xf32, #tpu.memory_space<vmem>>, vector<8x256xf32>
    tpu.vector_store %arg15[%c32_34, %c0_35], %42 {strides = array<i32>} : memref<144x256xf32, #tpu.memory_space<vmem>>, vector<8x256xf32>,
    %c40 = arith.constant 40 : index
    %c0_36 = arith.constant 0 : index
    %51 = vector.load %arg15[%c40, %c0_36] : memref<144x256xf32, #tpu.memory_space<vmem>>, vector<8x256xf32>
    tpu.vector_store %arg15[%c40, %c0_36], %48 {strides = array<i32>} : memref<144x256xf32, #tpu.memory_space<vmem>>, vector<8x256xf32>,
    %c0_37 = arith.constant 0 : index
    %c48 = arith.constant 48 : index
    %52 = vector.load %arg14[%c0_37, %c48] : memref<16x384xf32, #tpu.memory_space<vmem>>, vector<8x256xf32>
    %c0_38 = arith.constant 0 : index
    %c63 = arith.constant 63 : index
    %53 = vector.load %arg14[%c0_38, %c63] : memref<16x384xf32, #tpu.memory_space<vmem>>, vector<8x256xf32>
    %c0_39 = arith.constant 0 : index
    %c47_40 = arith.constant 47 : index
    %54 = vector.load %arg14[%c0_39, %c47_40] : memref<16x384xf32, #tpu.memory_space<vmem>>, vector<8x256xf32>
    %55 = arith.select %29, %53, %54 : vector<8x256xi1>, vector<8x256xf32>
    %c0_41 = arith.constant 0 : index
    %c33_42 = arith.constant 33 : index
    %56 = vector.load %arg14[%c0_41, %c33_42] : memref<16x384xf32, #tpu.memory_space<vmem>>, vector<8x256xf32>
    %c0_43 = arith.constant 0 : index
    %c49 = arith.constant 49 : index
    %57 = vector.load %arg14[%c0_43, %c49] : memref<16x384xf32, #tpu.memory_space<vmem>>, vector<8x256xf32>
    %58 = arith.select %31, %56, %57 : vector<8x256xi1>, vector<8x256xf32>
    %c48_44 = arith.constant 48 : index
    %c0_45 = arith.constant 0 : index
    %59 = vector.load %arg15[%c48_44, %c0_45] : memref<144x256xf32, #tpu.memory_space<vmem>>, vector<8x256xf32>
    tpu.vector_store %arg15[%c48_44, %c0_45], %55 {strides = array<i32>} : memref<144x256xf32, #tpu.memory_space<vmem>>, vector<8x256xf32>,
    %c56 = arith.constant 56 : index
    %c0_46 = arith.constant 0 : index
    %60 = vector.load %arg15[%c56, %c0_46] : memref<144x256xf32, #tpu.memory_space<vmem>>, vector<8x256xf32>
    tpu.vector_store %arg15[%c56, %c0_46], %52 {strides = array<i32>} : memref<144x256xf32, #tpu.memory_space<vmem>>, vector<8x256xf32>,
    %c64 = arith.constant 64 : index
    %c0_47 = arith.constant 0 : index
    %61 = vector.load %arg15[%c64, %c0_47] : memref<144x256xf32, #tpu.memory_space<vmem>>, vector<8x256xf32>
    tpu.vector_store %arg15[%c64, %c0_47], %58 {strides = array<i32>} : memref<144x256xf32, #tpu.memory_space<vmem>>, vector<8x256xf32>,
    %c0_48 = arith.constant 0 : index
    %c0_49 = arith.constant 0 : index
    %62 = vector.load %arg2[%c0_48, %c0_49] : memref<8x72xf32, #tpu.memory_space<vmem>>, vector<8x72xf32>
    %c0_50 = arith.constant 0 : index
    %c0_51 = arith.constant 0 : index
    %63 = vector.load %arg15[%c0_50, %c0_51] : memref<144x256xf32, #tpu.memory_space<vmem>>, vector<72x256xf32>
    %cst_52 = arith.constant dense<0.000000e+00> : vector<8x256xf32>
    %64 = tpu.matmul %62, %63, %cst_52 {dimension_numbers = #tpu.dot_dimension_numbers<[1], [0], [0], [1], [0, 0, 1, 1], [], []>} : vector<8x72xf32>, vector<72x256xf32>, vector<8x256xf32> -> vector<8x256xf32>
    %65 = vector.broadcast %10 : vector<8x1xf32> to vector<8x256xf32>
    %66 = arith.addf %64, %65 : vector<8x256xf32>
    %cst_53 = arith.constant dense<0.000000e+00> : vector<8xf32>
    %67 = vector.multi_reduction <add>, %66, %cst_53 [1] : vector<8x256xf32> to vector<8xf32>
    %68 = vector.shape_cast %67 : vector<8xf32> to vector<8x1xf32>
    %cst_54 = arith.constant 3.906250e-03 : f32
    %69 = vector.broadcast %cst_54 : f32 to vector<8x1xf32>
    %70 = arith.mulf %68, %69 : vector<8x1xf32>
    %71 = vector.broadcast %70 : vector<8x1xf32> to vector<8x256xf32>
    %72 = arith.subf %66, %71 : vector<8x256xf32>
    %73 = arith.mulf %72, %72 : vector<8x256xf32>
    %cst_55 = arith.constant dense<0.000000e+00> : vector<8xf32>
    %74 = vector.multi_reduction <add>, %73, %cst_55 [1] : vector<8x256xf32> to vector<8xf32>
    %75 = vector.shape_cast %74 : vector<8xf32> to vector<8x1xf32>
    %cst_56 = arith.constant 3.906250e-03 : f32
    %76 = vector.broadcast %cst_56 : f32 to vector<8x1xf32>
    %77 = arith.mulf %75, %76 : vector<8x1xf32>
    %cst_57 = arith.constant 9.99999974E-6 : f32
    %78 = vector.broadcast %cst_57 : f32 to vector<8x1xf32>
    %79 = arith.addf %77, %78 : vector<8x1xf32>
    %80 = math.rsqrt %79 : vector<8x1xf32>
    %81 = vector.broadcast %80 : vector<8x1xf32> to vector<8x256xf32>
    %82 = arith.mulf %72, %81 : vector<8x256xf32>
    %83 = vector.broadcast %11 : vector<8x1xf32> to vector<8x256xf32>
    %84 = arith.mulf %82, %83 : vector<8x256xf32>
    %85 = vector.broadcast %12 : vector<8x1xf32> to vector<8x256xf32>
    %86 = arith.addf %84, %85 : vector<8x256xf32>
    %cst_58 = arith.constant 0.000000e+00 : f32
    %87 = vector.broadcast %cst_58 : f32 to vector<8x256xf32>
    %88 = arith.cmpf oge, %86, %87 : vector<8x256xf32>
    %cst_59 = arith.constant 3.000000e-01 : f32
    %89 = vector.broadcast %cst_59 : f32 to vector<8x256xf32>
    %90 = arith.mulf %89, %86 : vector<8x256xf32>
    %91 = arith.select %88, %86, %90 : vector<8x256xi1>, vector<8x256xf32>
    %92 = vector.extract_strided_slice %91 {offsets = [0, 16], sizes = [8, 16], strides = [1, 1]} : vector<8x256xf32> to vector<8x16xf32>
    %c0_60 = arith.constant 0 : index
    %c16_61 = arith.constant 16 : index
    %93 = vector.load %arg14[%c0_60, %c16_61] : memref<16x384xf32, #tpu.memory_space<vmem>>, vector<8x16xf32>
    tpu.vector_store %arg14[%c0_60, %c16_61], %92 {strides = array<i32>} : memref<16x384xf32, #tpu.memory_space<vmem>>, vector<8x16xf32>,
    %c0_62 = arith.constant 0 : index
    %c32_63 = arith.constant 32 : index
    %94 = vector.load %arg14[%c0_62, %c32_63] : memref<16x384xf32, #tpu.memory_space<vmem>>, vector<8x256xf32>
    tpu.vector_store %arg14[%c0_62, %c32_63], %91 {strides = array<i32>} : memref<16x384xf32, #tpu.memory_space<vmem>>, vector<8x256xf32>,
    %95 = vector.extract_strided_slice %91 {offsets = [0, 224], sizes = [8, 16], strides = [1, 1]} : vector<8x256xf32> to vector<8x16xf32>
    %c0_64 = arith.constant 0 : index
    %c288_65 = arith.constant 288 : index
    %96 = vector.load %arg14[%c0_64, %c288_65] : memref<16x384xf32, #tpu.memory_space<vmem>>, vector<8x16xf32>
    tpu.vector_store %arg14[%c0_64, %c288_65], %95 {strides = array<i32>} : memref<16x384xf32, #tpu.memory_space<vmem>>, vector<8x16xf32>,
    %c0_66 = arith.constant 0 : index
    %c16_67 = arith.constant 16 : index
    %97 = vector.load %arg14[%c0_66, %c16_67] : memref<16x384xf32, #tpu.memory_space<vmem>>, vector<8x256xf32>
    %c0_68 = arith.constant 0 : index
    %c31_69 = arith.constant 31 : index
    %98 = vector.load %arg14[%c0_68, %c31_69] : memref<16x384xf32, #tpu.memory_space<vmem>>, vector<8x256xf32>
    %c0_70 = arith.constant 0 : index
    %c15_71 = arith.constant 15 : index
    %99 = vector.load %arg14[%c0_70, %c15_71] : memref<16x384xf32, #tpu.memory_space<vmem>>, vector<8x256xf32>
    %100 = arith.select %29, %98, %99 : vector<8x256xi1>, vector<8x256xf32>
    %c0_72 = arith.constant 0 : index
    %c1_73 = arith.constant 1 : index
    %101 = vector.load %arg14[%c0_72, %c1_73] : memref<16x384xf32, #tpu.memory_space<vmem>>, vector<8x256xf32>
    %c0_74 = arith.constant 0 : index
    %c17_75 = arith.constant 17 : index
    %102 = vector.load %arg14[%c0_74, %c17_75] : memref<16x384xf32, #tpu.memory_space<vmem>>, vector<8x256xf32>
    %103 = arith.select %31, %101, %102 : vector<8x256xi1>, vector<8x256xf32>
    %c0_76 = arith.constant 0 : index
    %c0_77 = arith.constant 0 : index
    %104 = vector.load %arg15[%c0_76, %c0_77] : memref<144x256xf32, #tpu.memory_space<vmem>>, vector<8x256xf32>
    tpu.vector_store %arg15[%c0_76, %c0_77], %100 {strides = array<i32>} : memref<144x256xf32, #tpu.memory_space<vmem>>, vector<8x256xf32>,
    %c8_78 = arith.constant 8 : index
    %c0_79 = arith.constant 0 : index
    %105 = vector.load %arg15[%c8_78, %c0_79] : memref<144x256xf32, #tpu.memory_space<vmem>>, vector<8x256xf32>
    tpu.vector_store %arg15[%c8_78, %c0_79], %97 {strides = array<i32>} : memref<144x256xf32, #tpu.memory_space<vmem>>, vector<8x256xf32>,
    %c16_80 = arith.constant 16 : index
    %c0_81 = arith.constant 0 : index
    %106 = vector.load %arg15[%c16_80, %c0_81] : memref<144x256xf32, #tpu.memory_space<vmem>>, vector<8x256xf32>
    tpu.vector_store %arg15[%c16_80, %c0_81], %103 {strides = array<i32>} : memref<144x256xf32, #tpu.memory_space<vmem>>, vector<8x256xf32>,
    %c0_82 = arith.constant 0 : index
    %c32_83 = arith.constant 32 : index
    %107 = vector.load %arg14[%c0_82, %c32_83] : memref<16x384xf32, #tpu.memory_space<vmem>>, vector<8x256xf32>
    %c0_84 = arith.constant 0 : index
    %c47_85 = arith.constant 47 : index
    %108 = vector.load %arg14[%c0_84, %c47_85] : memref<16x384xf32, #tpu.memory_space<vmem>>, vector<8x256xf32>
    %c0_86 = arith.constant 0 : index
    %c31_87 = arith.constant 31 : index
    %109 = vector.load %arg14[%c0_86, %c31_87] : memref<16x384xf32, #tpu.memory_space<vmem>>, vector<8x256xf32>
    %110 = arith.select %29, %108, %109 : vector<8x256xi1>, vector<8x256xf32>
    %c0_88 = arith.constant 0 : index
    %c17_89 = arith.constant 17 : index
    %111 = vector.load %arg14[%c0_88, %c17_89] : memref<16x384xf32, #tpu.memory_space<vmem>>, vector<8x256xf32>
    %c0_90 = arith.constant 0 : index
    %c33_91 = arith.constant 33 : index
    %112 = vector.load %arg14[%c0_90, %c33_91] : memref<16x384xf32, #tpu.memory_space<vmem>>, vector<8x256xf32>
    %113 = arith.select %31, %111, %112 : vector<8x256xi1>, vector<8x256xf32>
    %c24_92 = arith.constant 24 : index
    %c0_93 = arith.constant 0 : index
    %114 = vector.load %arg15[%c24_92, %c0_93] : memref<144x256xf32, #tpu.memory_space<vmem>>, vector<8x256xf32>
    tpu.vector_store %arg15[%c24_92, %c0_93], %110 {strides = array<i32>} : memref<144x256xf32, #tpu.memory_space<vmem>>, vector<8x256xf32>,
    %c32_94 = arith.constant 32 : index
    %c0_95 = arith.constant 0 : index
    %115 = vector.load %arg15[%c32_94, %c0_95] : memref<144x256xf32, #tpu.memory_space<vmem>>, vector<8x256xf32>
    tpu.vector_store %arg15[%c32_94, %c0_95], %107 {strides = array<i32>} : memref<144x256xf32, #tpu.memory_space<vmem>>, vector<8x256xf32>,
    %c40_96 = arith.constant 40 : index
    %c0_97 = arith.constant 0 : index
    %116 = vector.load %arg15[%c40_96, %c0_97] : memref<144x256xf32, #tpu.memory_space<vmem>>, vector<8x256xf32>
    tpu.vector_store %arg15[%c40_96, %c0_97], %113 {strides = array<i32>} : memref<144x256xf32, #tpu.memory_space<vmem>>, vector<8x256xf32>,
    %c0_98 = arith.constant 0 : index
    %c48_99 = arith.constant 48 : index
    %117 = vector.load %arg14[%c0_98, %c48_99] : memref<16x384xf32, #tpu.memory_space<vmem>>, vector<8x256xf32>
    %c0_100 = arith.constant 0 : index
    %c63_101 = arith.constant 63 : index
    %118 = vector.load %arg14[%c0_100, %c63_101] : memref<16x384xf32, #tpu.memory_space<vmem>>, vector<8x256xf32>
    %c0_102 = arith.constant 0 : index
    %c47_103 = arith.constant 47 : index
    %119 = vector.load %arg14[%c0_102, %c47_103] : memref<16x384xf32, #tpu.memory_space<vmem>>, vector<8x256xf32>
    %120 = arith.select %29, %118, %119 : vector<8x256xi1>, vector<8x256xf32>
    %c0_104 = arith.constant 0 : index
    %c33_105 = arith.constant 33 : index
    %121 = vector.load %arg14[%c0_104, %c33_105] : memref<16x384xf32, #tpu.memory_space<vmem>>, vector<8x256xf32>
    %c0_106 = arith.constant 0 : index
    %c49_107 = arith.constant 49 : index
    %122 = vector.load %arg14[%c0_106, %c49_107] : memref<16x384xf32, #tpu.memory_space<vmem>>, vector<8x256xf32>
    %123 = arith.select %31, %121, %122 : vector<8x256xi1>, vector<8x256xf32>
    %c48_108 = arith.constant 48 : index
    %c0_109 = arith.constant 0 : index
    %124 = vector.load %arg15[%c48_108, %c0_109] : memref<144x256xf32, #tpu.memory_space<vmem>>, vector<8x256xf32>
    tpu.vector_store %arg15[%c48_108, %c0_109], %120 {strides = array<i32>} : memref<144x256xf32, #tpu.memory_space<vmem>>, vector<8x256xf32>,
    %c56_110 = arith.constant 56 : index
    %c0_111 = arith.constant 0 : index
    %125 = vector.load %arg15[%c56_110, %c0_111] : memref<144x256xf32, #tpu.memory_space<vmem>>, vector<8x256xf32>
    tpu.vector_store %arg15[%c56_110, %c0_111], %117 {strides = array<i32>} : memref<144x256xf32, #tpu.memory_space<vmem>>, vector<8x256xf32>,
    %c64_112 = arith.constant 64 : index
    %c0_113 = arith.constant 0 : index
    %126 = vector.load %arg15[%c64_112, %c0_113] : memref<144x256xf32, #tpu.memory_space<vmem>>, vector<8x256xf32>
    tpu.vector_store %arg15[%c64_112, %c0_113], %123 {strides = array<i32>} : memref<144x256xf32, #tpu.memory_space<vmem>>, vector<8x256xf32>,
    %c0_114 = arith.constant 0 : index
    %c0_115 = arith.constant 0 : index
    %127 = vector.load %arg3[%c0_114, %c0_115] : memref<8x72xf32, #tpu.memory_space<vmem>>, vector<8x72xf32>
    %c0_116 = arith.constant 0 : index
    %c0_117 = arith.constant 0 : index
    %128 = vector.load %arg15[%c0_116, %c0_117] : memref<144x256xf32, #tpu.memory_space<vmem>>, vector<72x256xf32>
    %cst_118 = arith.constant dense<0.000000e+00> : vector<8x256xf32>
    %129 = tpu.matmul %127, %128, %cst_118 {dimension_numbers = #tpu.dot_dimension_numbers<[1], [0], [0], [1], [0, 0, 1, 1], [], []>} : vector<8x72xf32>, vector<72x256xf32>, vector<8x256xf32> -> vector<8x256xf32>
    %130 = vector.broadcast %13 : vector<8x1xf32> to vector<8x256xf32>
    %131 = arith.addf %129, %130 : vector<8x256xf32>
    %cst_119 = arith.constant dense<0.000000e+00> : vector<8xf32>
    %132 = vector.multi_reduction <add>, %131, %cst_119 [1] : vector<8x256xf32> to vector<8xf32>
    %133 = vector.shape_cast %132 : vector<8xf32> to vector<8x1xf32>
    %cst_120 = arith.constant 3.906250e-03 : f32
    %134 = vector.broadcast %cst_120 : f32 to vector<8x1xf32>
    %135 = arith.mulf %133, %134 : vector<8x1xf32>
    %136 = vector.broadcast %135 : vector<8x1xf32> to vector<8x256xf32>
    %137 = arith.subf %131, %136 : vector<8x256xf32>
    %138 = arith.mulf %137, %137 : vector<8x256xf32>
    %cst_121 = arith.constant dense<0.000000e+00> : vector<8xf32>
    %139 = vector.multi_reduction <add>, %138, %cst_121 [1] : vector<8x256xf32> to vector<8xf32>
    %140 = vector.shape_cast %139 : vector<8xf32> to vector<8x1xf32>
    %cst_122 = arith.constant 3.906250e-03 : f32
    %141 = vector.broadcast %cst_122 : f32 to vector<8x1xf32>
    %142 = arith.mulf %140, %141 : vector<8x1xf32>
    %cst_123 = arith.constant 9.99999974E-6 : f32
    %143 = vector.broadcast %cst_123 : f32 to vector<8x1xf32>
    %144 = arith.addf %142, %143 : vector<8x1xf32>
    %145 = math.rsqrt %144 : vector<8x1xf32>
    %146 = vector.broadcast %145 : vector<8x1xf32> to vector<8x256xf32>
    %147 = arith.mulf %137, %146 : vector<8x256xf32>
    %148 = vector.broadcast %14 : vector<8x1xf32> to vector<8x256xf32>
    %149 = arith.mulf %147, %148 : vector<8x256xf32>
    %150 = vector.broadcast %15 : vector<8x1xf32> to vector<8x256xf32>
    %151 = arith.addf %149, %150 : vector<8x256xf32>
    %c0_124 = arith.constant 0 : index
    %c0_125 = arith.constant 0 : index
    %152 = vector.load %arg5[%c0_124, %c0_125] : memref<8x8xf32, #tpu.memory_space<vmem>>, vector<8x8xf32>
    %cst_126 = arith.constant dense<0.000000e+00> : vector<8x256xf32>
    %153 = tpu.matmul %152, %8, %cst_126 {dimension_numbers = #tpu.dot_dimension_numbers<[1], [0], [0], [1], [0, 0, 1, 1], [], []>} : vector<8x8xf32>, vector<8x256xf32>, vector<8x256xf32> -> vector<8x256xf32>
    %154 = vector.extract_strided_slice %9 {offsets = [0, 6], sizes = [8, 1], strides = [1, 1]} : vector<8x8xf32> to vector<8x1xf32>
    %155 = vector.broadcast %154 : vector<8x1xf32> to vector<8x256xf32>
    %156 = arith.addf %153, %155 : vector<8x256xf32>
    %157 = arith.addf %151, %156 : vector<8x256xf32>
    %c0_127 = arith.constant 0 : index
    %c0_128 = arith.constant 0 : index
    %158 = vector.load %arg8[%c0_127, %c0_128] : memref<8x8xf32, #tpu.memory_space<vmem>>, vector<8x8xf32>
    %159 = vector.extract_strided_slice %158 {offsets = [0, 0], sizes = [8, 1], strides = [1, 1]} : vector<8x8xf32> to vector<8x1xf32>
    %160 = vector.extract_strided_slice %158 {offsets = [0, 1], sizes = [8, 1], strides = [1, 1]} : vector<8x8xf32> to vector<8x1xf32>
    %161 = vector.extract_strided_slice %158 {offsets = [0, 2], sizes = [8, 1], strides = [1, 1]} : vector<8x8xf32> to vector<8x1xf32>
    %162 = vector.extract_strided_slice %158 {offsets = [0, 3], sizes = [8, 1], strides = [1, 1]} : vector<8x8xf32> to vector<8x1xf32>
    %163 = vector.extract_strided_slice %158 {offsets = [0, 4], sizes = [8, 1], strides = [1, 1]} : vector<8x8xf32> to vector<8x1xf32>
    %164 = vector.extract_strided_slice %158 {offsets = [0, 5], sizes = [8, 1], strides = [1, 1]} : vector<8x8xf32> to vector<8x1xf32>
    %cst_129 = arith.constant 0.000000e+00 : f32
    %165 = vector.broadcast %cst_129 : f32 to vector<8x256xf32>
    %166 = arith.cmpf oge, %157, %165 : vector<8x256xf32>
    %cst_130 = arith.constant 3.000000e-01 : f32
    %167 = vector.broadcast %cst_130 : f32 to vector<8x256xf32>
    %168 = arith.mulf %167, %157 : vector<8x256xf32>
    %169 = arith.select %166, %157, %168 : vector<8x256xi1>, vector<8x256xf32>
    %170 = vector.extract_strided_slice %169 {offsets = [0, 16], sizes = [8, 16], strides = [1, 1]} : vector<8x256xf32> to vector<8x16xf32>
    %c0_131 = arith.constant 0 : index
    %c16_132 = arith.constant 16 : index
    %171 = vector.load %arg14[%c0_131, %c16_132] : memref<16x384xf32, #tpu.memory_space<vmem>>, vector<8x16xf32>
    tpu.vector_store %arg14[%c0_131, %c16_132], %170 {strides = array<i32>} : memref<16x384xf32, #tpu.memory_space<vmem>>, vector<8x16xf32>,
    %c0_133 = arith.constant 0 : index
    %c32_134 = arith.constant 32 : index
    %172 = vector.load %arg14[%c0_133, %c32_134] : memref<16x384xf32, #tpu.memory_space<vmem>>, vector<8x256xf32>
    tpu.vector_store %arg14[%c0_133, %c32_134], %169 {strides = array<i32>} : memref<16x384xf32, #tpu.memory_space<vmem>>, vector<8x256xf32>,
    %173 = vector.extract_strided_slice %169 {offsets = [0, 224], sizes = [8, 16], strides = [1, 1]} : vector<8x256xf32> to vector<8x16xf32>
    %c0_135 = arith.constant 0 : index
    %c288_136 = arith.constant 288 : index
    %174 = vector.load %arg14[%c0_135, %c288_136] : memref<16x384xf32, #tpu.memory_space<vmem>>, vector<8x16xf32>
    tpu.vector_store %arg14[%c0_135, %c288_136], %173 {strides = array<i32>} : memref<16x384xf32, #tpu.memory_space<vmem>>, vector<8x16xf32>,
    %c0_137 = arith.constant 0 : index
    %c16_138 = arith.constant 16 : index
    %175 = vector.load %arg14[%c0_137, %c16_138] : memref<16x384xf32, #tpu.memory_space<vmem>>, vector<8x256xf32>
    %c0_139 = arith.constant 0 : index
    %c31_140 = arith.constant 31 : index
    %176 = vector.load %arg14[%c0_139, %c31_140] : memref<16x384xf32, #tpu.memory_space<vmem>>, vector<8x256xf32>
    %c0_141 = arith.constant 0 : index
    %c15_142 = arith.constant 15 : index
    %177 = vector.load %arg14[%c0_141, %c15_142] : memref<16x384xf32, #tpu.memory_space<vmem>>, vector<8x256xf32>
    %178 = arith.select %29, %176, %177 : vector<8x256xi1>, vector<8x256xf32>
    %c0_143 = arith.constant 0 : index
    %c1_144 = arith.constant 1 : index
    %179 = vector.load %arg14[%c0_143, %c1_144] : memref<16x384xf32, #tpu.memory_space<vmem>>, vector<8x256xf32>
    %c0_145 = arith.constant 0 : index
    %c17_146 = arith.constant 17 : index
    %180 = vector.load %arg14[%c0_145, %c17_146] : memref<16x384xf32, #tpu.memory_space<vmem>>, vector<8x256xf32>
    %181 = arith.select %31, %179, %180 : vector<8x256xi1>, vector<8x256xf32>
    %c0_147 = arith.constant 0 : index
    %c0_148 = arith.constant 0 : index
    %182 = vector.load %arg15[%c0_147, %c0_148] : memref<144x256xf32, #tpu.memory_space<vmem>>, vector<8x256xf32>
    tpu.vector_store %arg15[%c0_147, %c0_148], %178 {strides = array<i32>} : memref<144x256xf32, #tpu.memory_space<vmem>>, vector<8x256xf32>,
    %c8_149 = arith.constant 8 : index
    %c0_150 = arith.constant 0 : index
    %183 = vector.load %arg15[%c8_149, %c0_150] : memref<144x256xf32, #tpu.memory_space<vmem>>, vector<8x256xf32>
    tpu.vector_store %arg15[%c8_149, %c0_150], %175 {strides = array<i32>} : memref<144x256xf32, #tpu.memory_space<vmem>>, vector<8x256xf32>,
    %c16_151 = arith.constant 16 : index
    %c0_152 = arith.constant 0 : index
    %184 = vector.load %arg15[%c16_151, %c0_152] : memref<144x256xf32, #tpu.memory_space<vmem>>, vector<8x256xf32>
    tpu.vector_store %arg15[%c16_151, %c0_152], %181 {strides = array<i32>} : memref<144x256xf32, #tpu.memory_space<vmem>>, vector<8x256xf32>,
    %c0_153 = arith.constant 0 : index
    %c32_154 = arith.constant 32 : index
    %185 = vector.load %arg14[%c0_153, %c32_154] : memref<16x384xf32, #tpu.memory_space<vmem>>, vector<8x256xf32>
    %c0_155 = arith.constant 0 : index
    %c47_156 = arith.constant 47 : index
    %186 = vector.load %arg14[%c0_155, %c47_156] : memref<16x384xf32, #tpu.memory_space<vmem>>, vector<8x256xf32>
    %c0_157 = arith.constant 0 : index
    %c31_158 = arith.constant 31 : index
    %187 = vector.load %arg14[%c0_157, %c31_158] : memref<16x384xf32, #tpu.memory_space<vmem>>, vector<8x256xf32>
    %188 = arith.select %29, %186, %187 : vector<8x256xi1>, vector<8x256xf32>
    %c0_159 = arith.constant 0 : index
    %c17_160 = arith.constant 17 : index
    %189 = vector.load %arg14[%c0_159, %c17_160] : memref<16x384xf32, #tpu.memory_space<vmem>>, vector<8x256xf32>
    %c0_161 = arith.constant 0 : index
    %c33_162 = arith.constant 33 : index
    %190 = vector.load %arg14[%c0_161, %c33_162] : memref<16x384xf32, #tpu.memory_space<vmem>>, vector<8x256xf32>
    %191 = arith.select %31, %189, %190 : vector<8x256xi1>, vector<8x256xf32>
    %c24_163 = arith.constant 24 : index
    %c0_164 = arith.constant 0 : index
    %192 = vector.load %arg15[%c24_163, %c0_164] : memref<144x256xf32, #tpu.memory_space<vmem>>, vector<8x256xf32>
    tpu.vector_store %arg15[%c24_163, %c0_164], %188 {strides = array<i32>} : memref<144x256xf32, #tpu.memory_space<vmem>>, vector<8x256xf32>,
    %c32_165 = arith.constant 32 : index
    %c0_166 = arith.constant 0 : index
    %193 = vector.load %arg15[%c32_165, %c0_166] : memref<144x256xf32, #tpu.memory_space<vmem>>, vector<8x256xf32>
    tpu.vector_store %arg15[%c32_165, %c0_166], %185 {strides = array<i32>} : memref<144x256xf32, #tpu.memory_space<vmem>>, vector<8x256xf32>,
    %c40_167 = arith.constant 40 : index
    %c0_168 = arith.constant 0 : index
    %194 = vector.load %arg15[%c40_167, %c0_168] : memref<144x256xf32, #tpu.memory_space<vmem>>, vector<8x256xf32>
    tpu.vector_store %arg15[%c40_167, %c0_168], %191 {strides = array<i32>} : memref<144x256xf32, #tpu.memory_space<vmem>>, vector<8x256xf32>,
    %c0_169 = arith.constant 0 : index
    %c48_170 = arith.constant 48 : index
    %195 = vector.load %arg14[%c0_169, %c48_170] : memref<16x384xf32, #tpu.memory_space<vmem>>, vector<8x256xf32>
    %c0_171 = arith.constant 0 : index
    %c63_172 = arith.constant 63 : index
    %196 = vector.load %arg14[%c0_171, %c63_172] : memref<16x384xf32, #tpu.memory_space<vmem>>, vector<8x256xf32>
    %c0_173 = arith.constant 0 : index
    %c47_174 = arith.constant 47 : index
    %197 = vector.load %arg14[%c0_173, %c47_174] : memref<16x384xf32, #tpu.memory_space<vmem>>, vector<8x256xf32>
    %198 = arith.select %29, %196, %197 : vector<8x256xi1>, vector<8x256xf32>
    %c0_175 = arith.constant 0 : index
    %c33_176 = arith.constant 33 : index
    %199 = vector.load %arg14[%c0_175, %c33_176] : memref<16x384xf32, #tpu.memory_space<vmem>>, vector<8x256xf32>
    %c0_177 = arith.constant 0 : index
    %c49_178 = arith.constant 49 : index
    %200 = vector.load %arg14[%c0_177, %c49_178] : memref<16x384xf32, #tpu.memory_space<vmem>>, vector<8x256xf32>
    %201 = arith.select %31, %199, %200 : vector<8x256xi1>, vector<8x256xf32>
    %c48_179 = arith.constant 48 : index
    %c0_180 = arith.constant 0 : index
    %202 = vector.load %arg15[%c48_179, %c0_180] : memref<144x256xf32, #tpu.memory_space<vmem>>, vector<8x256xf32>
    tpu.vector_store %arg15[%c48_179, %c0_180], %198 {strides = array<i32>} : memref<144x256xf32, #tpu.memory_space<vmem>>, vector<8x256xf32>,
    %c56_181 = arith.constant 56 : index
    %c0_182 = arith.constant 0 : index
    %203 = vector.load %arg15[%c56_181, %c0_182] : memref<144x256xf32, #tpu.memory_space<vmem>>, vector<8x256xf32>
    tpu.vector_store %arg15[%c56_181, %c0_182], %195 {strides = array<i32>} : memref<144x256xf32, #tpu.memory_space<vmem>>, vector<8x256xf32>,
    %c64_183 = arith.constant 64 : index
    %c0_184 = arith.constant 0 : index
    %204 = vector.load %arg15[%c64_183, %c0_184] : memref<144x256xf32, #tpu.memory_space<vmem>>, vector<8x256xf32>
    tpu.vector_store %arg15[%c64_183, %c0_184], %201 {strides = array<i32>} : memref<144x256xf32, #tpu.memory_space<vmem>>, vector<8x256xf32>,
    %c0_185 = arith.constant 0 : index
    %c0_186 = arith.constant 0 : index
    %205 = vector.load %arg6[%c0_185, %c0_186] : memref<8x72xf32, #tpu.memory_space<vmem>>, vector<8x72xf32>
    %c0_187 = arith.constant 0 : index
    %c0_188 = arith.constant 0 : index
    %206 = vector.load %arg15[%c0_187, %c0_188] : memref<144x256xf32, #tpu.memory_space<vmem>>, vector<72x256xf32>
    %cst_189 = arith.constant dense<0.000000e+00> : vector<8x256xf32>
    %207 = tpu.matmul %205, %206, %cst_189 {dimension_numbers = #tpu.dot_dimension_numbers<[1], [0], [0], [1], [0, 0, 1, 1], [], []>} : vector<8x72xf32>, vector<72x256xf32>, vector<8x256xf32> -> vector<8x256xf32>
    %208 = vector.broadcast %159 : vector<8x1xf32> to vector<8x256xf32>
    %209 = arith.addf %207, %208 : vector<8x256xf32>
    %cst_190 = arith.constant dense<0.000000e+00> : vector<8xf32>
    %210 = vector.multi_reduction <add>, %209, %cst_190 [1] : vector<8x256xf32> to vector<8xf32>
    %211 = vector.shape_cast %210 : vector<8xf32> to vector<8x1xf32>
    %cst_191 = arith.constant 3.906250e-03 : f32
    %212 = vector.broadcast %cst_191 : f32 to vector<8x1xf32>
    %213 = arith.mulf %211, %212 : vector<8x1xf32>
    %214 = vector.broadcast %213 : vector<8x1xf32> to vector<8x256xf32>
    %215 = arith.subf %209, %214 : vector<8x256xf32>
    %216 = arith.mulf %215, %215 : vector<8x256xf32>
    %cst_192 = arith.constant dense<0.000000e+00> : vector<8xf32>
    %217 = vector.multi_reduction <add>, %216, %cst_192 [1] : vector<8x256xf32> to vector<8xf32>
    %218 = vector.shape_cast %217 : vector<8xf32> to vector<8x1xf32>
    %cst_193 = arith.constant 3.906250e-03 : f32
    %219 = vector.broadcast %cst_193 : f32 to vector<8x1xf32>
    %220 = arith.mulf %218, %219 : vector<8x1xf32>
    %cst_194 = arith.constant 9.99999974E-6 : f32
    %221 = vector.broadcast %cst_194 : f32 to vector<8x1xf32>
    %222 = arith.addf %220, %221 : vector<8x1xf32>
    %223 = math.rsqrt %222 : vector<8x1xf32>
    %224 = vector.broadcast %223 : vector<8x1xf32> to vector<8x256xf32>
    %225 = arith.mulf %215, %224 : vector<8x256xf32>
    %226 = vector.broadcast %160 : vector<8x1xf32> to vector<8x256xf32>
    %227 = arith.mulf %225, %226 : vector<8x256xf32>
    %228 = vector.broadcast %161 : vector<8x1xf32> to vector<8x256xf32>
    %229 = arith.addf %227, %228 : vector<8x256xf32>
    %cst_195 = arith.constant 0.000000e+00 : f32
    %230 = vector.broadcast %cst_195 : f32 to vector<8x256xf32>
    %231 = arith.cmpf oge, %229, %230 : vector<8x256xf32>
    %cst_196 = arith.constant 3.000000e-01 : f32
    %232 = vector.broadcast %cst_196 : f32 to vector<8x256xf32>
    %233 = arith.mulf %232, %229 : vector<8x256xf32>
    %234 = arith.select %231, %229, %233 : vector<8x256xi1>, vector<8x256xf32>
    %235 = vector.extract_strided_slice %234 {offsets = [0, 16], sizes = [8, 16], strides = [1, 1]} : vector<8x256xf32> to vector<8x16xf32>
    %c0_197 = arith.constant 0 : index
    %c16_198 = arith.constant 16 : index
    %236 = vector.load %arg14[%c0_197, %c16_198] : memref<16x384xf32, #tpu.memory_space<vmem>>, vector<8x16xf32>
    tpu.vector_store %arg14[%c0_197, %c16_198], %235 {strides = array<i32>} : memref<16x384xf32, #tpu.memory_space<vmem>>, vector<8x16xf32>,
    %c0_199 = arith.constant 0 : index
    %c32_200 = arith.constant 32 : index
    %237 = vector.load %arg14[%c0_199, %c32_200] : memref<16x384xf32, #tpu.memory_space<vmem>>, vector<8x256xf32>
    tpu.vector_store %arg14[%c0_199, %c32_200], %234 {strides = array<i32>} : memref<16x384xf32, #tpu.memory_space<vmem>>, vector<8x256xf32>,
    %238 = vector.extract_strided_slice %234 {offsets = [0, 224], sizes = [8, 16], strides = [1, 1]} : vector<8x256xf32> to vector<8x16xf32>
    %c0_201 = arith.constant 0 : index
    %c288_202 = arith.constant 288 : index
    %239 = vector.load %arg14[%c0_201, %c288_202] : memref<16x384xf32, #tpu.memory_space<vmem>>, vector<8x16xf32>
    tpu.vector_store %arg14[%c0_201, %c288_202], %238 {strides = array<i32>} : memref<16x384xf32, #tpu.memory_space<vmem>>, vector<8x16xf32>,
    %c0_203 = arith.constant 0 : index
    %c16_204 = arith.constant 16 : index
    %240 = vector.load %arg14[%c0_203, %c16_204] : memref<16x384xf32, #tpu.memory_space<vmem>>, vector<8x256xf32>
    %c0_205 = arith.constant 0 : index
    %c31_206 = arith.constant 31 : index
    %241 = vector.load %arg14[%c0_205, %c31_206] : memref<16x384xf32, #tpu.memory_space<vmem>>, vector<8x256xf32>
    %c0_207 = arith.constant 0 : index
    %c15_208 = arith.constant 15 : index
    %242 = vector.load %arg14[%c0_207, %c15_208] : memref<16x384xf32, #tpu.memory_space<vmem>>, vector<8x256xf32>
    %243 = arith.select %29, %241, %242 : vector<8x256xi1>, vector<8x256xf32>
    %c0_209 = arith.constant 0 : index
    %c1_210 = arith.constant 1 : index
    %244 = vector.load %arg14[%c0_209, %c1_210] : memref<16x384xf32, #tpu.memory_space<vmem>>, vector<8x256xf32>
    %c0_211 = arith.constant 0 : index
    %c17_212 = arith.constant 17 : index
    %245 = vector.load %arg14[%c0_211, %c17_212] : memref<16x384xf32, #tpu.memory_space<vmem>>, vector<8x256xf32>
    %246 = arith.select %31, %244, %245 : vector<8x256xi1>, vector<8x256xf32>
    %c0_213 = arith.constant 0 : index
    %c0_214 = arith.constant 0 : index
    %247 = vector.load %arg15[%c0_213, %c0_214] : memref<144x256xf32, #tpu.memory_space<vmem>>, vector<8x256xf32>
    tpu.vector_store %arg15[%c0_213, %c0_214], %243 {strides = array<i32>} : memref<144x256xf32, #tpu.memory_space<vmem>>, vector<8x256xf32>,
    %c8_215 = arith.constant 8 : index
    %c0_216 = arith.constant 0 : index
    %248 = vector.load %arg15[%c8_215, %c0_216] : memref<144x256xf32, #tpu.memory_space<vmem>>, vector<8x256xf32>
    tpu.vector_store %arg15[%c8_215, %c0_216], %240 {strides = array<i32>} : memref<144x256xf32, #tpu.memory_space<vmem>>, vector<8x256xf32>,
    %c16_217 = arith.constant 16 : index
    %c0_218 = arith.constant 0 : index
    %249 = vector.load %arg15[%c16_217, %c0_218] : memref<144x256xf32, #tpu.memory_space<vmem>>, vector<8x256xf32>
    tpu.vector_store %arg15[%c16_217, %c0_218], %246 {strides = array<i32>} : memref<144x256xf32, #tpu.memory_space<vmem>>, vector<8x256xf32>,
    %c0_219 = arith.constant 0 : index
    %c32_220 = arith.constant 32 : index
    %250 = vector.load %arg14[%c0_219, %c32_220] : memref<16x384xf32, #tpu.memory_space<vmem>>, vector<8x256xf32>
    %c0_221 = arith.constant 0 : index
    %c47_222 = arith.constant 47 : index
    %251 = vector.load %arg14[%c0_221, %c47_222] : memref<16x384xf32, #tpu.memory_space<vmem>>, vector<8x256xf32>
    %c0_223 = arith.constant 0 : index
    %c31_224 = arith.constant 31 : index
    %252 = vector.load %arg14[%c0_223, %c31_224] : memref<16x384xf32, #tpu.memory_space<vmem>>, vector<8x256xf32>
    %253 = arith.select %29, %251, %252 : vector<8x256xi1>, vector<8x256xf32>
    %c0_225 = arith.constant 0 : index
    %c17_226 = arith.constant 17 : index
    %254 = vector.load %arg14[%c0_225, %c17_226] : memref<16x384xf32, #tpu.memory_space<vmem>>, vector<8x256xf32>
    %c0_227 = arith.constant 0 : index
    %c33_228 = arith.constant 33 : index
    %255 = vector.load %arg14[%c0_227, %c33_228] : memref<16x384xf32, #tpu.memory_space<vmem>>, vector<8x256xf32>
    %256 = arith.select %31, %254, %255 : vector<8x256xi1>, vector<8x256xf32>
    %c24_229 = arith.constant 24 : index
    %c0_230 = arith.constant 0 : index
    %257 = vector.load %arg15[%c24_229, %c0_230] : memref<144x256xf32, #tpu.memory_space<vmem>>, vector<8x256xf32>
    tpu.vector_store %arg15[%c24_229, %c0_230], %253 {strides = array<i32>} : memref<144x256xf32, #tpu.memory_space<vmem>>, vector<8x256xf32>,
    %c32_231 = arith.constant 32 : index
    %c0_232 = arith.constant 0 : index
    %258 = vector.load %arg15[%c32_231, %c0_232] : memref<144x256xf32, #tpu.memory_space<vmem>>, vector<8x256xf32>
    tpu.vector_store %arg15[%c32_231, %c0_232], %250 {strides = array<i32>} : memref<144x256xf32, #tpu.memory_space<vmem>>, vector<8x256xf32>,
    %c40_233 = arith.constant 40 : index
    %c0_234 = arith.constant 0 : index
    %259 = vector.load %arg15[%c40_233, %c0_234] : memref<144x256xf32, #tpu.memory_space<vmem>>, vector<8x256xf32>
    tpu.vector_store %arg15[%c40_233, %c0_234], %256 {strides = array<i32>} : memref<144x256xf32, #tpu.memory_space<vmem>>, vector<8x256xf32>,
    %c0_235 = arith.constant 0 : index
    %c48_236 = arith.constant 48 : index
    %260 = vector.load %arg14[%c0_235, %c48_236] : memref<16x384xf32, #tpu.memory_space<vmem>>, vector<8x256xf32>
    %c0_237 = arith.constant 0 : index
    %c63_238 = arith.constant 63 : index
    %261 = vector.load %arg14[%c0_237, %c63_238] : memref<16x384xf32, #tpu.memory_space<vmem>>, vector<8x256xf32>
    %c0_239 = arith.constant 0 : index
    %c47_240 = arith.constant 47 : index
    %262 = vector.load %arg14[%c0_239, %c47_240] : memref<16x384xf32, #tpu.memory_space<vmem>>, vector<8x256xf32>
    %263 = arith.select %29, %261, %262 : vector<8x256xi1>, vector<8x256xf32>
    %c0_241 = arith.constant 0 : index
    %c33_242 = arith.constant 33 : index
    %264 = vector.load %arg14[%c0_241, %c33_242] : memref<16x384xf32, #tpu.memory_space<vmem>>, vector<8x256xf32>
    %c0_243 = arith.constant 0 : index
    %c49_244 = arith.constant 49 : index
    %265 = vector.load %arg14[%c0_243, %c49_244] : memref<16x384xf32, #tpu.memory_space<vmem>>, vector<8x256xf32>
    %266 = arith.select %31, %264, %265 : vector<8x256xi1>, vector<8x256xf32>
    %c48_245 = arith.constant 48 : index
    %c0_246 = arith.constant 0 : index
    %267 = vector.load %arg15[%c48_245, %c0_246] : memref<144x256xf32, #tpu.memory_space<vmem>>, vector<8x256xf32>
    tpu.vector_store %arg15[%c48_245, %c0_246], %263 {strides = array<i32>} : memref<144x256xf32, #tpu.memory_space<vmem>>, vector<8x256xf32>,
    %c56_247 = arith.constant 56 : index
    %c0_248 = arith.constant 0 : index
    %268 = vector.load %arg15[%c56_247, %c0_248] : memref<144x256xf32, #tpu.memory_space<vmem>>, vector<8x256xf32>
    tpu.vector_store %arg15[%c56_247, %c0_248], %260 {strides = array<i32>} : memref<144x256xf32, #tpu.memory_space<vmem>>, vector<8x256xf32>,
    %c64_249 = arith.constant 64 : index
    %c0_250 = arith.constant 0 : index
    %269 = vector.load %arg15[%c64_249, %c0_250] : memref<144x256xf32, #tpu.memory_space<vmem>>, vector<8x256xf32>
    tpu.vector_store %arg15[%c64_249, %c0_250], %266 {strides = array<i32>} : memref<144x256xf32, #tpu.memory_space<vmem>>, vector<8x256xf32>,
    %c0_251 = arith.constant 0 : index
    %c0_252 = arith.constant 0 : index
    %270 = vector.load %arg7[%c0_251, %c0_252] : memref<8x72xf32, #tpu.memory_space<vmem>>, vector<8x72xf32>
    %c0_253 = arith.constant 0 : index
    %c0_254 = arith.constant 0 : index
    %271 = vector.load %arg15[%c0_253, %c0_254] : memref<144x256xf32, #tpu.memory_space<vmem>>, vector<72x256xf32>
    %cst_255 = arith.constant dense<0.000000e+00> : vector<8x256xf32>
    %272 = tpu.matmul %270, %271, %cst_255 {dimension_numbers = #tpu.dot_dimension_numbers<[1], [0], [0], [1], [0, 0, 1, 1], [], []>} : vector<8x72xf32>, vector<72x256xf32>, vector<8x256xf32> -> vector<8x256xf32>
    %273 = vector.broadcast %162 : vector<8x1xf32> to vector<8x256xf32>
    %274 = arith.addf %272, %273 : vector<8x256xf32>
    %cst_256 = arith.constant dense<0.000000e+00> : vector<8xf32>
    %275 = vector.multi_reduction <add>, %274, %cst_256 [1] : vector<8x256xf32> to vector<8xf32>
    %276 = vector.shape_cast %275 : vector<8xf32> to vector<8x1xf32>
    %cst_257 = arith.constant 3.906250e-03 : f32
    %277 = vector.broadcast %cst_257 : f32 to vector<8x1xf32>
    %278 = arith.mulf %276, %277 : vector<8x1xf32>
    %279 = vector.broadcast %278 : vector<8x1xf32> to vector<8x256xf32>
    %280 = arith.subf %274, %279 : vector<8x256xf32>
    %281 = arith.mulf %280, %280 : vector<8x256xf32>
    %cst_258 = arith.constant dense<0.000000e+00> : vector<8xf32>
    %282 = vector.multi_reduction <add>, %281, %cst_258 [1] : vector<8x256xf32> to vector<8xf32>
    %283 = vector.shape_cast %282 : vector<8xf32> to vector<8x1xf32>
    %cst_259 = arith.constant 3.906250e-03 : f32
    %284 = vector.broadcast %cst_259 : f32 to vector<8x1xf32>
    %285 = arith.mulf %283, %284 : vector<8x1xf32>
    %cst_260 = arith.constant 9.99999974E-6 : f32
    %286 = vector.broadcast %cst_260 : f32 to vector<8x1xf32>
    %287 = arith.addf %285, %286 : vector<8x1xf32>
    %288 = math.rsqrt %287 : vector<8x1xf32>
    %289 = vector.broadcast %288 : vector<8x1xf32> to vector<8x256xf32>
    %290 = arith.mulf %280, %289 : vector<8x256xf32>
    %291 = vector.broadcast %163 : vector<8x1xf32> to vector<8x256xf32>
    %292 = arith.mulf %290, %291 : vector<8x256xf32>
    %293 = vector.broadcast %164 : vector<8x1xf32> to vector<8x256xf32>
    %294 = arith.addf %292, %293 : vector<8x256xf32>
    %295 = arith.addf %294, %157 : vector<8x256xf32>
    %c0_261 = arith.constant 0 : index
    %c0_262 = arith.constant 0 : index
    %296 = vector.load %arg11[%c0_261, %c0_262] : memref<16x8xf32, #tpu.memory_space<vmem>>, vector<16x8xf32>
    %297 = vector.extract_strided_slice %296 {offsets = [0, 0], sizes = [16, 1], strides = [1, 1]} : vector<16x8xf32> to vector<16x1xf32>
    %298 = vector.extract_strided_slice %296 {offsets = [0, 1], sizes = [16, 1], strides = [1, 1]} : vector<16x8xf32> to vector<16x1xf32>
    %299 = vector.extract_strided_slice %296 {offsets = [0, 2], sizes = [16, 1], strides = [1, 1]} : vector<16x8xf32> to vector<16x1xf32>
    %300 = vector.extract_strided_slice %296 {offsets = [0, 3], sizes = [16, 1], strides = [1, 1]} : vector<16x8xf32> to vector<16x1xf32>
    %301 = vector.extract_strided_slice %296 {offsets = [0, 4], sizes = [16, 1], strides = [1, 1]} : vector<16x8xf32> to vector<16x1xf32>
    %302 = vector.extract_strided_slice %296 {offsets = [0, 5], sizes = [16, 1], strides = [1, 1]} : vector<16x8xf32> to vector<16x1xf32>
    %cst_263 = arith.constant 0.000000e+00 : f32
    %303 = vector.broadcast %cst_263 : f32 to vector<8x256xf32>
    %304 = arith.cmpf oge, %295, %303 : vector<8x256xf32>
    %cst_264 = arith.constant 3.000000e-01 : f32
    %305 = vector.broadcast %cst_264 : f32 to vector<8x256xf32>
    %306 = arith.mulf %305, %295 : vector<8x256xf32>
    %307 = arith.select %304, %295, %306 : vector<8x256xi1>, vector<8x256xf32>
    %308 = vector.extract_strided_slice %307 {offsets = [0, 16], sizes = [8, 16], strides = [1, 1]} : vector<8x256xf32> to vector<8x16xf32>
    %c0_265 = arith.constant 0 : index
    %c16_266 = arith.constant 16 : index
    %309 = vector.load %arg14[%c0_265, %c16_266] : memref<16x384xf32, #tpu.memory_space<vmem>>, vector<8x16xf32>
    tpu.vector_store %arg14[%c0_265, %c16_266], %308 {strides = array<i32>} : memref<16x384xf32, #tpu.memory_space<vmem>>, vector<8x16xf32>,
    %c0_267 = arith.constant 0 : index
    %c32_268 = arith.constant 32 : index
    %310 = vector.load %arg14[%c0_267, %c32_268] : memref<16x384xf32, #tpu.memory_space<vmem>>, vector<8x256xf32>
    tpu.vector_store %arg14[%c0_267, %c32_268], %307 {strides = array<i32>} : memref<16x384xf32, #tpu.memory_space<vmem>>, vector<8x256xf32>,
    %311 = vector.extract_strided_slice %307 {offsets = [0, 224], sizes = [8, 16], strides = [1, 1]} : vector<8x256xf32> to vector<8x16xf32>
    %c0_269 = arith.constant 0 : index
    %c288_270 = arith.constant 288 : index
    %312 = vector.load %arg14[%c0_269, %c288_270] : memref<16x384xf32, #tpu.memory_space<vmem>>, vector<8x16xf32>
    tpu.vector_store %arg14[%c0_269, %c288_270], %311 {strides = array<i32>} : memref<16x384xf32, #tpu.memory_space<vmem>>, vector<8x16xf32>,
    %c0_271 = arith.constant 0 : index
    %c16_272 = arith.constant 16 : index
    %313 = vector.load %arg14[%c0_271, %c16_272] : memref<16x384xf32, #tpu.memory_space<vmem>>, vector<8x256xf32>
    %c0_273 = arith.constant 0 : index
    %c31_274 = arith.constant 31 : index
    %314 = vector.load %arg14[%c0_273, %c31_274] : memref<16x384xf32, #tpu.memory_space<vmem>>, vector<8x256xf32>
    %c0_275 = arith.constant 0 : index
    %c15_276 = arith.constant 15 : index
    %315 = vector.load %arg14[%c0_275, %c15_276] : memref<16x384xf32, #tpu.memory_space<vmem>>, vector<8x256xf32>
    %316 = arith.select %29, %314, %315 : vector<8x256xi1>, vector<8x256xf32>
    %c0_277 = arith.constant 0 : index
    %c1_278 = arith.constant 1 : index
    %317 = vector.load %arg14[%c0_277, %c1_278] : memref<16x384xf32, #tpu.memory_space<vmem>>, vector<8x256xf32>
    %c0_279 = arith.constant 0 : index
    %c17_280 = arith.constant 17 : index
    %318 = vector.load %arg14[%c0_279, %c17_280] : memref<16x384xf32, #tpu.memory_space<vmem>>, vector<8x256xf32>
    %319 = arith.select %31, %317, %318 : vector<8x256xi1>, vector<8x256xf32>
    %c0_281 = arith.constant 0 : index
    %c0_282 = arith.constant 0 : index
    %320 = vector.load %arg15[%c0_281, %c0_282] : memref<144x256xf32, #tpu.memory_space<vmem>>, vector<8x256xf32>
    tpu.vector_store %arg15[%c0_281, %c0_282], %316 {strides = array<i32>} : memref<144x256xf32, #tpu.memory_space<vmem>>, vector<8x256xf32>,
    %c8_283 = arith.constant 8 : index
    %c0_284 = arith.constant 0 : index
    %321 = vector.load %arg15[%c8_283, %c0_284] : memref<144x256xf32, #tpu.memory_space<vmem>>, vector<8x256xf32>
    tpu.vector_store %arg15[%c8_283, %c0_284], %313 {strides = array<i32>} : memref<144x256xf32, #tpu.memory_space<vmem>>, vector<8x256xf32>,
    %c16_285 = arith.constant 16 : index
    %c0_286 = arith.constant 0 : index
    %322 = vector.load %arg15[%c16_285, %c0_286] : memref<144x256xf32, #tpu.memory_space<vmem>>, vector<8x256xf32>
    tpu.vector_store %arg15[%c16_285, %c0_286], %319 {strides = array<i32>} : memref<144x256xf32, #tpu.memory_space<vmem>>, vector<8x256xf32>,
    %c0_287 = arith.constant 0 : index
    %c32_288 = arith.constant 32 : index
    %323 = vector.load %arg14[%c0_287, %c32_288] : memref<16x384xf32, #tpu.memory_space<vmem>>, vector<8x256xf32>
    %c0_289 = arith.constant 0 : index
    %c47_290 = arith.constant 47 : index
    %324 = vector.load %arg14[%c0_289, %c47_290] : memref<16x384xf32, #tpu.memory_space<vmem>>, vector<8x256xf32>
    %c0_291 = arith.constant 0 : index
    %c31_292 = arith.constant 31 : index
    %325 = vector.load %arg14[%c0_291, %c31_292] : memref<16x384xf32, #tpu.memory_space<vmem>>, vector<8x256xf32>
    %326 = arith.select %29, %324, %325 : vector<8x256xi1>, vector<8x256xf32>
    %c0_293 = arith.constant 0 : index
    %c17_294 = arith.constant 17 : index
    %327 = vector.load %arg14[%c0_293, %c17_294] : memref<16x384xf32, #tpu.memory_space<vmem>>, vector<8x256xf32>
    %c0_295 = arith.constant 0 : index
    %c33_296 = arith.constant 33 : index
    %328 = vector.load %arg14[%c0_295, %c33_296] : memref<16x384xf32, #tpu.memory_space<vmem>>, vector<8x256xf32>
    %329 = arith.select %31, %327, %328 : vector<8x256xi1>, vector<8x256xf32>
    %c24_297 = arith.constant 24 : index
    %c0_298 = arith.constant 0 : index
    %330 = vector.load %arg15[%c24_297, %c0_298] : memref<144x256xf32, #tpu.memory_space<vmem>>, vector<8x256xf32>
    tpu.vector_store %arg15[%c24_297, %c0_298], %326 {strides = array<i32>} : memref<144x256xf32, #tpu.memory_space<vmem>>, vector<8x256xf32>,
    %c32_299 = arith.constant 32 : index
    %c0_300 = arith.constant 0 : index
    %331 = vector.load %arg15[%c32_299, %c0_300] : memref<144x256xf32, #tpu.memory_space<vmem>>, vector<8x256xf32>
    tpu.vector_store %arg15[%c32_299, %c0_300], %323 {strides = array<i32>} : memref<144x256xf32, #tpu.memory_space<vmem>>, vector<8x256xf32>,
    %c40_301 = arith.constant 40 : index
    %c0_302 = arith.constant 0 : index
    %332 = vector.load %arg15[%c40_301, %c0_302] : memref<144x256xf32, #tpu.memory_space<vmem>>, vector<8x256xf32>
    tpu.vector_store %arg15[%c40_301, %c0_302], %329 {strides = array<i32>} : memref<144x256xf32, #tpu.memory_space<vmem>>, vector<8x256xf32>,
    %c0_303 = arith.constant 0 : index
    %c48_304 = arith.constant 48 : index
    %333 = vector.load %arg14[%c0_303, %c48_304] : memref<16x384xf32, #tpu.memory_space<vmem>>, vector<8x256xf32>
    %c0_305 = arith.constant 0 : index
    %c63_306 = arith.constant 63 : index
    %334 = vector.load %arg14[%c0_305, %c63_306] : memref<16x384xf32, #tpu.memory_space<vmem>>, vector<8x256xf32>
    %c0_307 = arith.constant 0 : index
    %c47_308 = arith.constant 47 : index
    %335 = vector.load %arg14[%c0_307, %c47_308] : memref<16x384xf32, #tpu.memory_space<vmem>>, vector<8x256xf32>
    %336 = arith.select %29, %334, %335 : vector<8x256xi1>, vector<8x256xf32>
    %c0_309 = arith.constant 0 : index
    %c33_310 = arith.constant 33 : index
    %337 = vector.load %arg14[%c0_309, %c33_310] : memref<16x384xf32, #tpu.memory_space<vmem>>, vector<8x256xf32>
    %c0_311 = arith.constant 0 : index
    %c49_312 = arith.constant 49 : index
    %338 = vector.load %arg14[%c0_311, %c49_312] : memref<16x384xf32, #tpu.memory_space<vmem>>, vector<8x256xf32>
    %339 = arith.select %31, %337, %338 : vector<8x256xi1>, vector<8x256xf32>
    %c48_313 = arith.constant 48 : index
    %c0_314 = arith.constant 0 : index
    %340 = vector.load %arg15[%c48_313, %c0_314] : memref<144x256xf32, #tpu.memory_space<vmem>>, vector<8x256xf32>
    tpu.vector_store %arg15[%c48_313, %c0_314], %336 {strides = array<i32>} : memref<144x256xf32, #tpu.memory_space<vmem>>, vector<8x256xf32>,
    %c56_315 = arith.constant 56 : index
    %c0_316 = arith.constant 0 : index
    %341 = vector.load %arg15[%c56_315, %c0_316] : memref<144x256xf32, #tpu.memory_space<vmem>>, vector<8x256xf32>
    tpu.vector_store %arg15[%c56_315, %c0_316], %333 {strides = array<i32>} : memref<144x256xf32, #tpu.memory_space<vmem>>, vector<8x256xf32>,
    %c64_317 = arith.constant 64 : index
    %c0_318 = arith.constant 0 : index
    %342 = vector.load %arg15[%c64_317, %c0_318] : memref<144x256xf32, #tpu.memory_space<vmem>>, vector<8x256xf32>
    tpu.vector_store %arg15[%c64_317, %c0_318], %339 {strides = array<i32>} : memref<144x256xf32, #tpu.memory_space<vmem>>, vector<8x256xf32>,
    %c0_319 = arith.constant 0 : index
    %c0_320 = arith.constant 0 : index
    %343 = vector.load %arg9[%c0_319, %c0_320] : memref<16x72xf32, #tpu.memory_space<vmem>>, vector<16x72xf32>
    %c0_321 = arith.constant 0 : index
    %c0_322 = arith.constant 0 : index
    %344 = vector.load %arg15[%c0_321, %c0_322] : memref<144x256xf32, #tpu.memory_space<vmem>>, vector<72x256xf32>
    %cst_323 = arith.constant dense<0.000000e+00> : vector<16x256xf32>
    %345 = tpu.matmul %343, %344, %cst_323 {dimension_numbers = #tpu.dot_dimension_numbers<[1], [0], [0], [1], [0, 0, 1, 1], [], []>} : vector<16x72xf32>, vector<72x256xf32>, vector<16x256xf32> -> vector<16x256xf32>
    %346 = vector.broadcast %297 : vector<16x1xf32> to vector<16x256xf32>
    %347 = arith.addf %345, %346 : vector<16x256xf32>
    %cst_324 = arith.constant dense<0.000000e+00> : vector<16xf32>
    %348 = vector.multi_reduction <add>, %347, %cst_324 [1] : vector<16x256xf32> to vector<16xf32>
    %349 = vector.shape_cast %348 : vector<16xf32> to vector<16x1xf32>
    %cst_325 = arith.constant 3.906250e-03 : f32
    %350 = vector.broadcast %cst_325 : f32 to vector<16x1xf32>
    %351 = arith.mulf %349, %350 : vector<16x1xf32>
    %352 = vector.broadcast %351 : vector<16x1xf32> to vector<16x256xf32>
    %353 = arith.subf %347, %352 : vector<16x256xf32>
    %354 = arith.mulf %353, %353 : vector<16x256xf32>
    %cst_326 = arith.constant dense<0.000000e+00> : vector<16xf32>
    %355 = vector.multi_reduction <add>, %354, %cst_326 [1] : vector<16x256xf32> to vector<16xf32>
    %356 = vector.shape_cast %355 : vector<16xf32> to vector<16x1xf32>
    %cst_327 = arith.constant 3.906250e-03 : f32
    %357 = vector.broadcast %cst_327 : f32 to vector<16x1xf32>
    %358 = arith.mulf %356, %357 : vector<16x1xf32>
    %cst_328 = arith.constant 9.99999974E-6 : f32
    %359 = vector.broadcast %cst_328 : f32 to vector<16x1xf32>
    %360 = arith.addf %358, %359 : vector<16x1xf32>
    %361 = math.rsqrt %360 : vector<16x1xf32>
    %362 = vector.broadcast %361 : vector<16x1xf32> to vector<16x256xf32>
    %363 = arith.mulf %353, %362 : vector<16x256xf32>
    %364 = vector.broadcast %298 : vector<16x1xf32> to vector<16x256xf32>
    %365 = arith.mulf %363, %364 : vector<16x256xf32>
    %366 = vector.broadcast %299 : vector<16x1xf32> to vector<16x256xf32>
    %367 = arith.addf %365, %366 : vector<16x256xf32>
    %cst_329 = arith.constant 0.000000e+00 : f32
    %368 = vector.broadcast %cst_329 : f32 to vector<16x256xf32>
    %369 = arith.cmpf oge, %367, %368 : vector<16x256xf32>
    %cst_330 = arith.constant 3.000000e-01 : f32
    %370 = vector.broadcast %cst_330 : f32 to vector<16x256xf32>
    %371 = arith.mulf %370, %367 : vector<16x256xf32>
    %372 = arith.select %369, %367, %371 : vector<16x256xi1>, vector<16x256xf32>
    %373 = vector.extract_strided_slice %372 {offsets = [0, 16], sizes = [16, 16], strides = [1, 1]} : vector<16x256xf32> to vector<16x16xf32>
    %c0_331 = arith.constant 0 : index
    %c16_332 = arith.constant 16 : index
    %374 = vector.load %arg14[%c0_331, %c16_332] : memref<16x384xf32, #tpu.memory_space<vmem>>, vector<16x16xf32>
    tpu.vector_store %arg14[%c0_331, %c16_332], %373 {strides = array<i32>} : memref<16x384xf32, #tpu.memory_space<vmem>>, vector<16x16xf32>,
    %c0_333 = arith.constant 0 : index
    %c32_334 = arith.constant 32 : index
    %375 = vector.load %arg14[%c0_333, %c32_334] : memref<16x384xf32, #tpu.memory_space<vmem>>, vector<16x256xf32>
    tpu.vector_store %arg14[%c0_333, %c32_334], %372 {strides = array<i32>} : memref<16x384xf32, #tpu.memory_space<vmem>>, vector<16x256xf32>,
    %376 = vector.extract_strided_slice %372 {offsets = [0, 224], sizes = [16, 16], strides = [1, 1]} : vector<16x256xf32> to vector<16x16xf32>
    %c0_335 = arith.constant 0 : index
    %c288_336 = arith.constant 288 : index
    %377 = vector.load %arg14[%c0_335, %c288_336] : memref<16x384xf32, #tpu.memory_space<vmem>>, vector<16x16xf32>
    tpu.vector_store %arg14[%c0_335, %c288_336], %376 {strides = array<i32>} : memref<16x384xf32, #tpu.memory_space<vmem>>, vector<16x16xf32>,
    %378 = vector.shape_cast %6 : vector<1x256xi32> to vector<1x256xi32>
    %379 = vector.broadcast %378 : vector<1x256xi32> to vector<16x256xi32>
    %c0_i32_337 = arith.constant 0 : i32
    %380 = vector.broadcast %c0_i32_337 : i32 to vector<16x256xi32>
    %381 = arith.cmpi eq, %379, %380 : vector<16x256xi32>
    %c15_i32_338 = arith.constant 15 : i32
    %382 = vector.broadcast %c15_i32_338 : i32 to vector<16x256xi32>
    %383 = arith.cmpi eq, %379, %382 : vector<16x256xi32>
    %c0_339 = arith.constant 0 : index
    %c16_340 = arith.constant 16 : index
    %384 = vector.load %arg14[%c0_339, %c16_340] : memref<16x384xf32, #tpu.memory_space<vmem>>, vector<16x256xf32>
    %c0_341 = arith.constant 0 : index
    %c31_342 = arith.constant 31 : index
    %385 = vector.load %arg14[%c0_341, %c31_342] : memref<16x384xf32, #tpu.memory_space<vmem>>, vector<16x256xf32>
    %c0_343 = arith.constant 0 : index
    %c15_344 = arith.constant 15 : index
    %386 = vector.load %arg14[%c0_343, %c15_344] : memref<16x384xf32, #tpu.memory_space<vmem>>, vector<16x256xf32>
    %387 = arith.select %381, %385, %386 : vector<16x256xi1>, vector<16x256xf32>
    %c0_345 = arith.constant 0 : index
    %c1_346 = arith.constant 1 : index
    %388 = vector.load %arg14[%c0_345, %c1_346] : memref<16x384xf32, #tpu.memory_space<vmem>>, vector<16x256xf32>
    %c0_347 = arith.constant 0 : index
    %c17_348 = arith.constant 17 : index
    %389 = vector.load %arg14[%c0_347, %c17_348] : memref<16x384xf32, #tpu.memory_space<vmem>>, vector<16x256xf32>
    %390 = arith.select %383, %388, %389 : vector<16x256xi1>, vector<16x256xf32>
    %c0_349 = arith.constant 0 : index
    %c0_350 = arith.constant 0 : index
    %391 = vector.load %arg15[%c0_349, %c0_350] : memref<144x256xf32, #tpu.memory_space<vmem>>, vector<16x256xf32>
    tpu.vector_store %arg15[%c0_349, %c0_350], %387 {strides = array<i32>} : memref<144x256xf32, #tpu.memory_space<vmem>>, vector<16x256xf32>,
    %c16_351 = arith.constant 16 : index
    %c0_352 = arith.constant 0 : index
    %392 = vector.load %arg15[%c16_351, %c0_352] : memref<144x256xf32, #tpu.memory_space<vmem>>, vector<16x256xf32>
    tpu.vector_store %arg15[%c16_351, %c0_352], %384 {strides = array<i32>} : memref<144x256xf32, #tpu.memory_space<vmem>>, vector<16x256xf32>,
    %c32_353 = arith.constant 32 : index
    %c0_354 = arith.constant 0 : index
    %393 = vector.load %arg15[%c32_353, %c0_354] : memref<144x256xf32, #tpu.memory_space<vmem>>, vector<16x256xf32>
    tpu.vector_store %arg15[%c32_353, %c0_354], %390 {strides = array<i32>} : memref<144x256xf32, #tpu.memory_space<vmem>>, vector<16x256xf32>,
    %c0_355 = arith.constant 0 : index
    %c32_356 = arith.constant 32 : index
    %394 = vector.load %arg14[%c0_355, %c32_356] : memref<16x384xf32, #tpu.memory_space<vmem>>, vector<16x256xf32>
    %c0_357 = arith.constant 0 : index
    %c47_358 = arith.constant 47 : index
    %395 = vector.load %arg14[%c0_357, %c47_358] : memref<16x384xf32, #tpu.memory_space<vmem>>, vector<16x256xf32>
    %c0_359 = arith.constant 0 : index
    %c31_360 = arith.constant 31 : index
    %396 = vector.load %arg14[%c0_359, %c31_360] : memref<16x384xf32, #tpu.memory_space<vmem>>, vector<16x256xf32>
    %397 = arith.select %381, %395, %396 : vector<16x256xi1>, vector<16x256xf32>
    %c0_361 = arith.constant 0 : index
    %c17_362 = arith.constant 17 : index
    %398 = vector.load %arg14[%c0_361, %c17_362] : memref<16x384xf32, #tpu.memory_space<vmem>>, vector<16x256xf32>
    %c0_363 = arith.constant 0 : index
    %c33_364 = arith.constant 33 : index
    %399 = vector.load %arg14[%c0_363, %c33_364] : memref<16x384xf32, #tpu.memory_space<vmem>>, vector<16x256xf32>
    %400 = arith.select %383, %398, %399 : vector<16x256xi1>, vector<16x256xf32>
    %c48_365 = arith.constant 48 : index
    %c0_366 = arith.constant 0 : index
    %401 = vector.load %arg15[%c48_365, %c0_366] : memref<144x256xf32, #tpu.memory_space<vmem>>, vector<16x256xf32>
    tpu.vector_store %arg15[%c48_365, %c0_366], %397 {strides = array<i32>} : memref<144x256xf32, #tpu.memory_space<vmem>>, vector<16x256xf32>,
    %c64_367 = arith.constant 64 : index
    %c0_368 = arith.constant 0 : index
    %402 = vector.load %arg15[%c64_367, %c0_368] : memref<144x256xf32, #tpu.memory_space<vmem>>, vector<16x256xf32>
    tpu.vector_store %arg15[%c64_367, %c0_368], %394 {strides = array<i32>} : memref<144x256xf32, #tpu.memory_space<vmem>>, vector<16x256xf32>,
    %c80 = arith.constant 80 : index
    %c0_369 = arith.constant 0 : index
    %403 = vector.load %arg15[%c80, %c0_369] : memref<144x256xf32, #tpu.memory_space<vmem>>, vector<16x256xf32>
    tpu.vector_store %arg15[%c80, %c0_369], %400 {strides = array<i32>} : memref<144x256xf32, #tpu.memory_space<vmem>>, vector<16x256xf32>,
    %c0_370 = arith.constant 0 : index
    %c48_371 = arith.constant 48 : index
    %404 = vector.load %arg14[%c0_370, %c48_371] : memref<16x384xf32, #tpu.memory_space<vmem>>, vector<16x256xf32>
    %c0_372 = arith.constant 0 : index
    %c63_373 = arith.constant 63 : index
    %405 = vector.load %arg14[%c0_372, %c63_373] : memref<16x384xf32, #tpu.memory_space<vmem>>, vector<16x256xf32>
    %c0_374 = arith.constant 0 : index
    %c47_375 = arith.constant 47 : index
    %406 = vector.load %arg14[%c0_374, %c47_375] : memref<16x384xf32, #tpu.memory_space<vmem>>, vector<16x256xf32>
    %407 = arith.select %381, %405, %406 : vector<16x256xi1>, vector<16x256xf32>
    %c0_376 = arith.constant 0 : index
    %c33_377 = arith.constant 33 : index
    %408 = vector.load %arg14[%c0_376, %c33_377] : memref<16x384xf32, #tpu.memory_space<vmem>>, vector<16x256xf32>
    %c0_378 = arith.constant 0 : index
    %c49_379 = arith.constant 49 : index
    %409 = vector.load %arg14[%c0_378, %c49_379] : memref<16x384xf32, #tpu.memory_space<vmem>>, vector<16x256xf32>
    %410 = arith.select %383, %408, %409 : vector<16x256xi1>, vector<16x256xf32>
    %c96 = arith.constant 96 : index
    %c0_380 = arith.constant 0 : index
    %411 = vector.load %arg15[%c96, %c0_380] : memref<144x256xf32, #tpu.memory_space<vmem>>, vector<16x256xf32>
    tpu.vector_store %arg15[%c96, %c0_380], %407 {strides = array<i32>} : memref<144x256xf32, #tpu.memory_space<vmem>>, vector<16x256xf32>,
    %c112 = arith.constant 112 : index
    %c0_381 = arith.constant 0 : index
    %412 = vector.load %arg15[%c112, %c0_381] : memref<144x256xf32, #tpu.memory_space<vmem>>, vector<16x256xf32>
    tpu.vector_store %arg15[%c112, %c0_381], %404 {strides = array<i32>} : memref<144x256xf32, #tpu.memory_space<vmem>>, vector<16x256xf32>,
    %c128 = arith.constant 128 : index
    %c0_382 = arith.constant 0 : index
    %413 = vector.load %arg15[%c128, %c0_382] : memref<144x256xf32, #tpu.memory_space<vmem>>, vector<16x256xf32>
    tpu.vector_store %arg15[%c128, %c0_382], %410 {strides = array<i32>} : memref<144x256xf32, #tpu.memory_space<vmem>>, vector<16x256xf32>,
    %c0_383 = arith.constant 0 : index
    %c0_384 = arith.constant 0 : index
    %414 = vector.load %arg10[%c0_383, %c0_384] : memref<16x144xf32, #tpu.memory_space<vmem>>, vector<16x144xf32>
    %c0_385 = arith.constant 0 : index
    %c0_386 = arith.constant 0 : index
    %415 = vector.load %arg15[%c0_385, %c0_386] : memref<144x256xf32, #tpu.memory_space<vmem>>, vector<144x256xf32>
    %cst_387 = arith.constant dense<0.000000e+00> : vector<16x256xf32>
    %416 = tpu.matmul %414, %415, %cst_387 {dimension_numbers = #tpu.dot_dimension_numbers<[1], [0], [0], [1], [0, 0, 1, 1], [], []>} : vector<16x144xf32>, vector<144x256xf32>, vector<16x256xf32> -> vector<16x256xf32>
    %417 = vector.broadcast %300 : vector<16x1xf32> to vector<16x256xf32>
    %418 = arith.addf %416, %417 : vector<16x256xf32>
    %cst_388 = arith.constant dense<0.000000e+00> : vector<16xf32>
    %419 = vector.multi_reduction <add>, %418, %cst_388 [1] : vector<16x256xf32> to vector<16xf32>
    %420 = vector.shape_cast %419 : vector<16xf32> to vector<16x1xf32>
    %cst_389 = arith.constant 3.906250e-03 : f32
    %421 = vector.broadcast %cst_389 : f32 to vector<16x1xf32>
    %422 = arith.mulf %420, %421 : vector<16x1xf32>
    %423 = vector.broadcast %422 : vector<16x1xf32> to vector<16x256xf32>
    %424 = arith.subf %418, %423 : vector<16x256xf32>
    %425 = arith.mulf %424, %424 : vector<16x256xf32>
    %cst_390 = arith.constant dense<0.000000e+00> : vector<16xf32>
    %426 = vector.multi_reduction <add>, %425, %cst_390 [1] : vector<16x256xf32> to vector<16xf32>
    %427 = vector.shape_cast %426 : vector<16xf32> to vector<16x1xf32>
    %cst_391 = arith.constant 3.906250e-03 : f32
    %428 = vector.broadcast %cst_391 : f32 to vector<16x1xf32>
    %429 = arith.mulf %427, %428 : vector<16x1xf32>
    %cst_392 = arith.constant 9.99999974E-6 : f32
    %430 = vector.broadcast %cst_392 : f32 to vector<16x1xf32>
    %431 = arith.addf %429, %430 : vector<16x1xf32>
    %432 = math.rsqrt %431 : vector<16x1xf32>
    %433 = vector.broadcast %432 : vector<16x1xf32> to vector<16x256xf32>
    %434 = arith.mulf %424, %433 : vector<16x256xf32>
    %435 = vector.broadcast %301 : vector<16x1xf32> to vector<16x256xf32>
    %436 = arith.mulf %434, %435 : vector<16x256xf32>
    %437 = vector.broadcast %302 : vector<16x1xf32> to vector<16x256xf32>
    %438 = arith.addf %436, %437 : vector<16x256xf32>
    %c0_393 = arith.constant 0 : index
    %c0_394 = arith.constant 0 : index
    %439 = vector.load %arg12[%c0_393, %c0_394] : memref<16x8xf32, #tpu.memory_space<vmem>>, vector<16x8xf32>
    %cst_395 = arith.constant dense<0.000000e+00> : vector<16x256xf32>
    %440 = tpu.matmul %439, %295, %cst_395 {dimension_numbers = #tpu.dot_dimension_numbers<[1], [0], [0], [1], [0, 0, 1, 1], [], []>} : vector<16x8xf32>, vector<8x256xf32>, vector<16x256xf32> -> vector<16x256xf32>
    %441 = vector.extract_strided_slice %296 {offsets = [0, 6], sizes = [16, 1], strides = [1, 1]} : vector<16x8xf32> to vector<16x1xf32>
    %442 = vector.broadcast %441 : vector<16x1xf32> to vector<16x256xf32>
    %443 = arith.addf %440, %442 : vector<16x256xf32>
    %444 = arith.addf %438, %443 : vector<16x256xf32>
    %c0_396 = arith.constant 0 : index
    %c0_397 = arith.constant 0 : index
    %c0_398 = arith.constant 0 : index
    %445 = vector.load %arg13[%c0_396, %c0_397, %c0_398] : memref<1x16x256xf32, #tpu.memory_space<vmem>>, vector<1x16x256xf32>
    %446 = vector.shape_cast %445 : vector<1x16x256xf32> to vector<16x256xf32>
    %447 = vector.shape_cast %444 : vector<16x256xf32> to vector<1x16x256xf32>
    tpu.vector_store %arg13[%c0_396, %c0_397, %c0_398], %447 {strides = array<i32>} : memref<1x16x256xf32, #tpu.memory_space<vmem>>, vector<1x16x256xf32>,
    return
  }
  func.func @transform_0(%arg0: i32) -> (i32, i32, i32) {
    %c0_i32 = arith.constant 0 : i32
    %c0_i32_0 = arith.constant 0 : i32
    %c0_i32_1 = arith.constant 0 : i32
    return %arg0, %c0_i32, %c0_i32_0 : i32, i32, i32
  }
  func.func @transform_1(%arg0: i32) -> (i32, i32) {
    %c0_i32 = arith.constant 0 : i32
    %c0_i32_0 = arith.constant 0 : i32
    %c0_i32_1 = arith.constant 0 : i32
    return %c0_i32, %c0_i32_0 : i32, i32
  }
  func.func @transform_2(%arg0: i32) -> (i32, i32) {
    %c0_i32 = arith.constant 0 : i32
    %c0_i32_0 = arith.constant 0 : i32
    %c0_i32_1 = arith.constant 0 : i32
    return %c0_i32, %c0_i32_0 : i32, i32
  }
  func.func @transform_3(%arg0: i32) -> (i32, i32) {
    %c0_i32 = arith.constant 0 : i32
    %c0_i32_0 = arith.constant 0 : i32
    %c0_i32_1 = arith.constant 0 : i32
    return %c0_i32, %c0_i32_0 : i32, i32
  }
  func.func @transform_4(%arg0: i32) -> (i32, i32) {
    %c0_i32 = arith.constant 0 : i32
    %c0_i32_0 = arith.constant 0 : i32
    %c0_i32_1 = arith.constant 0 : i32
    return %c0_i32, %c0_i32_0 : i32, i32
  }
  func.func @transform_5(%arg0: i32) -> (i32, i32) {
    %c0_i32 = arith.constant 0 : i32
    %c0_i32_0 = arith.constant 0 : i32
    %c0_i32_1 = arith.constant 0 : i32
    return %c0_i32, %c0_i32_0 : i32, i32
  }
  func.func @transform_6(%arg0: i32) -> (i32, i32) {
    %c0_i32 = arith.constant 0 : i32
    %c0_i32_0 = arith.constant 0 : i32
    %c0_i32_1 = arith.constant 0 : i32
    return %c0_i32, %c0_i32_0 : i32, i32
  }
  func.func @transform_7(%arg0: i32) -> (i32, i32) {
    %c0_i32 = arith.constant 0 : i32
    %c0_i32_0 = arith.constant 0 : i32
    %c0_i32_1 = arith.constant 0 : i32
    return %c0_i32, %c0_i32_0 : i32, i32
  }
  func.func @transform_8(%arg0: i32) -> (i32, i32) {
    %c0_i32 = arith.constant 0 : i32
    %c0_i32_0 = arith.constant 0 : i32
    %c0_i32_1 = arith.constant 0 : i32
    return %c0_i32, %c0_i32_0 : i32, i32
  }
  func.func @transform_9(%arg0: i32) -> (i32, i32) {
    %c0_i32 = arith.constant 0 : i32
    %c0_i32_0 = arith.constant 0 : i32
    %c0_i32_1 = arith.constant 0 : i32
    return %c0_i32, %c0_i32_0 : i32, i32
  }
  func.func @transform_10(%arg0: i32) -> (i32, i32) {
    %c0_i32 = arith.constant 0 : i32
    %c0_i32_0 = arith.constant 0 : i32
    %c0_i32_1 = arith.constant 0 : i32
    return %c0_i32, %c0_i32_0 : i32, i32
  }
  func.func @transform_11(%arg0: i32) -> (i32, i32) {
    %c0_i32 = arith.constant 0 : i32
    %c0_i32_0 = arith.constant 0 : i32
    %c0_i32_1 = arith.constant 0 : i32
    return %c0_i32, %c0_i32_0 : i32, i32
  }
  func.func @transform_12(%arg0: i32) -> (i32, i32, i32) {
    %c0_i32 = arith.constant 0 : i32
    %c0_i32_0 = arith.constant 0 : i32
    %c0_i32_1 = arith.constant 0 : i32
    return %arg0, %c0_i32, %c0_i32_0 : i32, i32, i32
  }
}

</mosaic_0001>

<llo_original>
// kernel: climate_resnet2d_pallas.1
$region0: #{climate_resnet2d_pallas.1}
  #allocation0 [shape = 'u32[]', space=smem, size = 0x4, offset = 0x4, fixed_abs, tag = 'smem constant byte address 0x4 - core index']
  #allocation1 [shape = 'u32[144,128]{1,0:T(1,128)}', space=vmem, size = 0x12000, scoped, tag = 'internal scratch']
  #allocation2 [shape = 'f32[16,384]{1,0:T(8,128)}', space=vmem, size = 0x6000, scoped, tag = 'scratch operand']
  #allocation3 [shape = 'f32[144,256]{1,0:T(8,128)}', space=vmem, size = 0x24000, scoped, tag = 'scratch operand']
  %s0 = inlined_call_operand.vmem [shape: f32[2,8,256], index: 0, kind: input, shape index: {}]
  %s1 = inlined_call_operand.vmem [shape: f32[8,72], index: 1, kind: input, shape index: {}]
  %s2 = inlined_call_operand.vmem [shape: f32[8,72], index: 2, kind: input, shape index: {}]
  %s3 = inlined_call_operand.vmem [shape: f32[8,8], index: 3, kind: input, shape index: {}]
  %s4 = inlined_call_operand.vmem [shape: f32[8,8], index: 4, kind: input, shape index: {}]
  %s5 = inlined_call_operand.vmem [shape: f32[8,72], index: 5, kind: input, shape index: {}]
  %s6 = inlined_call_operand.vmem [shape: f32[8,72], index: 6, kind: input, shape index: {}]
  %s7 = inlined_call_operand.vmem [shape: f32[8,8], index: 7, kind: input, shape index: {}]
  %s8 = inlined_call_operand.vmem [shape: f32[16,72], index: 8, kind: input, shape index: {}]
  %s9 = inlined_call_operand.vmem [shape: f32[16,144], index: 9, kind: input, shape index: {}]
  %s10 = inlined_call_operand.vmem [shape: f32[16,8], index: 10, kind: input, shape index: {}]
  %s11 = inlined_call_operand.vmem [shape: f32[16,8], index: 11, kind: input, shape index: {}]
  %s12 = inlined_call_operand.vmem [shape: f32[2,16,256], index: 12, kind: output, shape index: {}]
  %s13 = sld [smem:[#allocation0]]
  $region81: #{climate_resnet2d_pallas.1} parent=0
    _
  %s15 = ssub.s32 1, %s13
  %s16 = scalar_select 0, %s15, %s13
  loop: start=0, step=1, limit=4
  $region2: #{climate_resnet2d_pallas.1} parent=0 // loop_pre_header
    _
  $region3: #{climate_resnet2d_pallas.1} parent=0 // loop_header
    %s18 = sphi 0, %s22
    %p19 = scmp.ge.s32.totalorder %s18, 4
    %s28 = sphi 0, %s30
    %s31 = sphi 0, %s28
    %s32 = sphi 0, %s31
    %s48 = sphi 0, %s32
    %s52 = sphi 0, %s52
    %s54 = sphi 0, %s52
    %s55 = sphi 0, %s54
    %s69 = sphi 0, %s55
    %s73 = sphi 0, %s73
    %s75 = sphi 0, %s73
    %s76 = sphi 0, %s75
    %s90 = sphi 0, %s76
    %s94 = sphi 0, %s94
    %s96 = sphi 0, %s94
    %s97 = sphi 0, %s96
    %s111 = sphi 0, %s97
    %s115 = sphi 0, %s115
    %s117 = sphi 0, %s115
    %s118 = sphi 0, %s117
    %s132 = sphi 0, %s118
    %s136 = sphi 0, %s136
    %s138 = sphi 0, %s136
    %s139 = sphi 0, %s138
    %s153 = sphi 0, %s139
    %s157 = sphi 0, %s157
    %s159 = sphi 0, %s157
    %s160 = sphi 0, %s159
    %s174 = sphi 0, %s160
    %s178 = sphi 0, %s178
    %s180 = sphi 0, %s178
    %s181 = sphi 0, %s180
    %s195 = sphi 0, %s181
    %s199 = sphi 0, %s199
    %s201 = sphi 0, %s199
    %s202 = sphi 0, %s201
    %s216 = sphi 0, %s202
    %s220 = sphi 0, %s220
    %s222 = sphi 0, %s220
    %s223 = sphi 0, %s222
    %s237 = sphi 0, %s223
    %s241 = sphi 0, %s241
    %s243 = sphi 0, %s241
    %s244 = sphi 0, %s243
    %s258 = sphi 0, %s244
    %s262 = sphi 0, %s262
    %s264 = sphi 0, %s262
    %s265 = sphi 0, %s264
    %s279 = sphi 0, %s265
    %s285 = sphi 0, %s287
    %s288 = sphi 0, %s285
    %s289 = sphi 0, %s288
    %s305 = sphi 0, %s289
  $region4: #{climate_resnet2d_pallas.1} parent=0 // loop_header_branch
    %21 = sbr.rel (%p19) target = $region8
  $region5: #{climate_resnet2d_pallas.1} parent=0 // loop_body
    %s23 = ssub.s32 %s18, 1
    %s24 = ssub.s32 %s18, 2
    %s25 = sadd.s32 %s18, 1
    %s26 = ssub.s32 %s18, %s25
    %p27 = scmp.eq.s32.totalorder %s26, 0
    %s29 = sadd.s32 %s28, 1
    %s30 = scalar_select %p27, %s28, %s29
    %p33 = pneg %p27
    %p34 = scmp.eq.s32.totalorder %s18, 1
    %p35 = por %p33, %p34
    %p36 = scmp.ne.s32.totalorder %s28, %s31
    %p37 = scmp.eq.s32.totalorder %s18, 0
    %p38 = por %p36, %p37
    %p39 = scmp.ne.s32.totalorder %s28, %s31
    %p40 = scmp.eq.s32.totalorder %s23, 1
    %p41 = por %p39, %p40
    %p42 = scmp.ne.s32.totalorder %s31, %s32
    %p43 = scmp.eq.s32.totalorder %s23, 0
    %p44 = por %p42, %p43
    %p45 = scmp.ne.s32.totalorder %s31, %s32
    %p46 = scmp.eq.s32.totalorder %s24, 1
    %p47 = por %p45, %p46
    %p49 = scmp.ne.s32.totalorder %s32, %s48
    %p50 = scmp.eq.s32.totalorder %s24, 0
    %p51 = por %p49, %p50
    %s53 = sadd.s32 %s52, 1
    %p56 = scmp.eq.s32.totalorder %s18, 1
    %p57 = scmp.ne.s32.totalorder %s52, %s54
    %p58 = scmp.eq.s32.totalorder %s18, 0
    %p59 = por %p57, %p58
    %p60 = scmp.ne.s32.totalorder %s52, %s54
    %p61 = scmp.eq.s32.totalorder %s23, 1
    %p62 = por %p60, %p61
    %p63 = scmp.ne.s32.totalorder %s54, %s55
    %p64 = scmp.eq.s32.totalorder %s23, 0
    %p65 = por %p63, %p64
    %p66 = scmp.ne.s32.totalorder %s54, %s55
    %p67 = scmp.eq.s32.totalorder %s24, 1
    %p68 = por %p66, %p67
    %p70 = scmp.ne.s32.totalorder %s55, %s69
    %p71 = scmp.eq.s32.totalorder %s24, 0
    %p72 = por %p70, %p71
    %s74 = sadd.s32 %s73, 1
    %p77 = scmp.eq.s32.totalorder %s18, 1
    %p78 = scmp.ne.s32.totalorder %s73, %s75
    %p79 = scmp.eq.s32.totalorder %s18, 0
    %p80 = por %p78, %p79
    %p81 = scmp.ne.s32.totalorder %s73, %s75
    %p82 = scmp.eq.s32.totalorder %s23, 1
    %p83 = por %p81, %p82
    %p84 = scmp.ne.s32.totalorder %s75, %s76
    %p85 = scmp.eq.s32.totalorder %s23, 0
    %p86 = por %p84, %p85
    %p87 = scmp.ne.s32.totalorder %s75, %s76
    %p88 = scmp.eq.s32.totalorder %s24, 1
    %p89 = por %p87, %p88
    %p91 = scmp.ne.s32.totalorder %s76, %s90
    %p92 = scmp.eq.s32.totalorder %s24, 0
    %p93 = por %p91, %p92
    %s95 = sadd.s32 %s94, 1
    %p98 = scmp.eq.s32.totalorder %s18, 1
    %p99 = scmp.ne.s32.totalorder %s94, %s96
    %p100 = scmp.eq.s32.totalorder %s18, 0
    %p101 = por %p99, %p100
    %p102 = scmp.ne.s32.totalorder %s94, %s96
    %p103 = scmp.eq.s32.totalorder %s23, 1
    %p104 = por %p102, %p103
    %p105 = scmp.ne.s32.totalorder %s96, %s97
    %p106 = scmp.eq.s32.totalorder %s23, 0
    %p107 = por %p105, %p106
    %p108 = scmp.ne.s32.totalorder %s96, %s97
    %p109 = scmp.eq.s32.totalorder %s24, 1
    %p110 = por %p108, %p109
    %p112 = scmp.ne.s32.totalorder %s97, %s111
    %p113 = scmp.eq.s32.totalorder %s24, 0
    %p114 = por %p112, %p113
    %s116 = sadd.s32 %s115, 1
    %p119 = scmp.eq.s32.totalorder %s18, 1
    %p120 = scmp.ne.s32.totalorder %s115, %s117
    %p121 = scmp.eq.s32.totalorder %s18, 0
    %p122 = por %p120, %p121
    %p123 = scmp.ne.s32.totalorder %s115, %s117
    %p124 = scmp.eq.s32.totalorder %s23, 1
    %p125 = por %p123, %p124
    %p126 = scmp.ne.s32.totalorder %s117, %s118
    %p127 = scmp.eq.s32.totalorder %s23, 0
    %p128 = por %p126, %p127
    %p129 = scmp.ne.s32.totalorder %s117, %s118
    %p130 = scmp.eq.s32.totalorder %s24, 1
    %p131 = por %p129, %p130
    %p133 = scmp.ne.s32.totalorder %s118, %s132
    %p134 = scmp.eq.s32.totalorder %s24, 0
    %p135 = por %p133, %p134
    %s137 = sadd.s32 %s136, 1
    %p140 = scmp.eq.s32.totalorder %s18, 1
    %p141 = scmp.ne.s32.totalorder %s136, %s138
    %p142 = scmp.eq.s32.totalorder %s18, 0
    %p143 = por %p141, %p142
    %p144 = scmp.ne.s32.totalorder %s136, %s138
    %p145 = scmp.eq.s32.totalorder %s23, 1
    %p146 = por %p144, %p145
    %p147 = scmp.ne.s32.totalorder %s138, %s139
    %p148 = scmp.eq.s32.totalorder %s23, 0
    %p149 = por %p147, %p148
    %p150 = scmp.ne.s32.totalorder %s138, %s139
    %p151 = scmp.eq.s32.totalorder %s24, 1
    %p152 = por %p150, %p151
    %p154 = scmp.ne.s32.totalorder %s139, %s153
    %p155 = scmp.eq.s32.totalorder %s24, 0
    %p156 = por %p154, %p155
    %s158 = sadd.s32 %s157, 1
    %p161 = scmp.eq.s32.totalorder %s18, 1
    %p162 = scmp.ne.s32.totalorder %s157, %s159
    %p163 = scmp.eq.s32.totalorder %s18, 0
    %p164 = por %p162, %p163
    %p165 = scmp.ne.s32.totalorder %s157, %s159
    %p166 = scmp.eq.s32.totalorder %s23, 1
    %p167 = por %p165, %p166
    %p168 = scmp.ne.s32.totalorder %s159, %s160
    %p169 = scmp.eq.s32.totalorder %s23, 0
    %p170 = por %p168, %p169
    %p171 = scmp.ne.s32.totalorder %s159, %s160
    %p172 = scmp.eq.s32.totalorder %s24, 1
    %p173 = por %p171, %p172
    %p175 = scmp.ne.s32.totalorder %s160, %s174
    %p176 = scmp.eq.s32.totalorder %s24, 0
    %p177 = por %p175, %p176
    %s179 = sadd.s32 %s178, 1
    %p182 = scmp.eq.s32.totalorder %s18, 1
    %p183 = scmp.ne.s32.totalorder %s178, %s180
    %p184 = scmp.eq.s32.totalorder %s18, 0
    %p185 = por %p183, %p184
    %p186 = scmp.ne.s32.totalorder %s178, %s180
    %p187 = scmp.eq.s32.totalorder %s23, 1
    %p188 = por %p186, %p187
    %p189 = scmp.ne.s32.totalorder %s180, %s181
    %p190 = scmp.eq.s32.totalorder %s23, 0
    %p191 = por %p189, %p190
    %p192 = scmp.ne.s32.totalorder %s180, %s181
    %p193 = scmp.eq.s32.totalorder %s24, 1
    %p194 = por %p192, %p193
    %p196 = scmp.ne.s32.totalorder %s181, %s195
    %p197 = scmp.eq.s32.totalorder %s24, 0
    %p198 = por %p196, %p197
    %s200 = sadd.s32 %s199, 1
    %p203 = scmp.eq.s32.totalorder %s18, 1
    %p204 = scmp.ne.s32.totalorder %s199, %s201
    %p205 = scmp.eq.s32.totalorder %s18, 0
    %p206 = por %p204, %p205
    %p207 = scmp.ne.s32.totalorder %s199, %s201
    %p208 = scmp.eq.s32.totalorder %s23, 1
    %p209 = por %p207, %p208
    %p210 = scmp.ne.s32.totalorder %s201, %s202
    %p211 = scmp.eq.s32.totalorder %s23, 0
    %p212 = por %p210, %p211
    %p213 = scmp.ne.s32.totalorder %s201, %s202
    %p214 = scmp.eq.s32.totalorder %s24, 1
    %p215 = por %p213, %p214
    %p217 = scmp.ne.s32.totalorder %s202, %s216
    %p218 = scmp.eq.s32.totalorder %s24, 0
    %p219 = por %p217, %p218
    %s221 = sadd.s32 %s220, 1
    %p224 = scmp.eq.s32.totalorder %s18, 1
    %p225 = scmp.ne.s32.totalorder %s220, %s222
    %p226 = scmp.eq.s32.totalorder %s18, 0
    %p227 = por %p225, %p226
    %p228 = scmp.ne.s32.totalorder %s220, %s222
    %p229 = scmp.eq.s32.totalorder %s23, 1
    %p230 = por %p228, %p229
    %p231 = scmp.ne.s32.totalorder %s222, %s223
    %p232 = scmp.eq.s32.totalorder %s23, 0
    %p233 = por %p231, %p232
    %p234 = scmp.ne.s32.totalorder %s222, %s223
    %p235 = scmp.eq.s32.totalorder %s24, 1
    %p236 = por %p234, %p235
    %p238 = scmp.ne.s32.totalorder %s223, %s237
    %p239 = scmp.eq.s32.totalorder %s24, 0
    %p240 = por %p238, %p239
    %s242 = sadd.s32 %s241, 1
    %p245 = scmp.eq.s32.totalorder %s18, 1
    %p246 = scmp.ne.s32.totalorder %s241, %s243
    %p247 = scmp.eq.s32.totalorder %s18, 0
    %p248 = por %p246, %p247
    %p249 = scmp.ne.s32.totalorder %s241, %s243
    %p250 = scmp.eq.s32.totalorder %s23, 1
    %p251 = por %p249, %p250
    %p252 = scmp.ne.s32.totalorder %s243, %s244
    %p253 = scmp.eq.s32.totalorder %s23, 0
    %p254 = por %p252, %p253
    %p255 = scmp.ne.s32.totalorder %s243, %s244
    %p256 = scmp.eq.s32.totalorder %s24, 1
    %p257 = por %p255, %p256
    %p259 = scmp.ne.s32.totalorder %s244, %s258
    %p260 = scmp.eq.s32.totalorder %s24, 0
    %p261 = por %p259, %p260
    %s263 = sadd.s32 %s262, 1
    %p266 = scmp.eq.s32.totalorder %s18, 1
    %p267 = scmp.ne.s32.totalorder %s262, %s264
    %p268 = scmp.eq.s32.totalorder %s18, 0
    %p269 = por %p267, %p268
    %p270 = scmp.ne.s32.totalorder %s262, %s264
    %p271 = scmp.eq.s32.totalorder %s23, 1
    %p272 = por %p270, %p271
    %p273 = scmp.ne.s32.totalorder %s264, %s265
    %p274 = scmp.eq.s32.totalorder %s23, 0
    %p275 = por %p273, %p274
    %p276 = scmp.ne.s32.totalorder %s264, %s265
    %p277 = scmp.eq.s32.totalorder %s24, 1
    %p278 = por %p276, %p277
    %p280 = scmp.ne.s32.totalorder %s265, %s279
    %p281 = scmp.eq.s32.totalorder %s24, 0
    %p282 = por %p280, %p281
    %s283 = ssub.s32 %s18, %s25
    %p284 = scmp.eq.s32.totalorder %s283, 0
    %s286 = sadd.s32 %s285, 1
    %s287 = scalar_select %p284, %s285, %s286
    %p290 = pneg %p284
    %p291 = scmp.eq.s32.totalorder %s18, 1
    %p292 = por %p290, %p291
    %p293 = scmp.ne.s32.totalorder %s285, %s288
    %p294 = scmp.eq.s32.totalorder %s18, 0
    %p295 = por %p293, %p294
    %p296 = scmp.ne.s32.totalorder %s285, %s288
    %p297 = scmp.eq.s32.totalorder %s23, 1
    %p298 = por %p296, %p297
    %p299 = scmp.ne.s32.totalorder %s288, %s289
    %p300 = scmp.eq.s32.totalorder %s23, 0
    %p301 = por %p299, %p300
    %p302 = scmp.ne.s32.totalorder %s288, %s289
    %p303 = scmp.eq.s32.totalorder %s24, 1
    %p304 = por %p302, %p303
    %p306 = scmp.ne.s32.totalorder %s289, %s305
    %p307 = scmp.eq.s32.totalorder %s24, 0
    %p308 = por %p306, %p307
    %p309 = scmp.le.s32.totalorder 1, %s18
    %p310 = scmp.lt.s32.totalorder %s18, 3
    %p311 = pnand %p309, %p310
    %p312 = pneg %p311
    // Predicated region
    $region9: #{climate_resnet2d_pallas.1} parent=5 // pred_check
      _
    $region10: #{climate_resnet2d_pallas.1} parent=5 // pred_check_branch
      %314 = sbr.rel (%p311) target = $region12
    $region11: #{climate_resnet2d_pallas.1} parent=5 // pred_region
      %s315 = ssub.s32 %s18, 1
      // Predicated region
      $region13: #{climate_resnet2d_pallas.1} parent=11 // pred_check
        %p316 = pneg %p65
      $region14: #{climate_resnet2d_pallas.1} parent=11 // pred_check_branch
        %318 = sbr.rel (%p316) target = $region16
      $region15: #{climate_resnet2d_pallas.1} parent=11 // pred_region
        _
      $region16: #{climate_resnet2d_pallas.1} parent=11 // pred_fallthru
        _
      // Predicated region
      $region17: #{climate_resnet2d_pallas.1} parent=11 // pred_check
        %p319 = pneg %p86
      $region18: #{climate_resnet2d_pallas.1} parent=11 // pred_check_branch
        %321 = sbr.rel (%p319) target = $region20
      $region19: #{climate_resnet2d_pallas.1} parent=11 // pred_region
        _
      $region20: #{climate_resnet2d_pallas.1} parent=11 // pred_fallthru
        _
      // Predicated region
      $region21: #{climate_resnet2d_pallas.1} parent=11 // pred_check
        %p322 = pneg %p107
      $region22: #{climate_resnet2d_pallas.1} parent=11 // pred_check_branch
        %324 = sbr.rel (%p322) target = $region24
      $region23: #{climate_resnet2d_pallas.1} parent=11 // pred_region
        _
      $region24: #{climate_resnet2d_pallas.1} parent=11 // pred_fallthru
        _
      // Predicated region
      $region25: #{climate_resnet2d_pallas.1} parent=11 // pred_check
        %p325 = pneg %p128
      $region26: #{climate_resnet2d_pallas.1} parent=11 // pred_check_branch
        %327 = sbr.rel (%p325) target = $region28
      $region27: #{climate_resnet2d_pallas.1} parent=11 // pred_region
        _
      $region28: #{climate_resnet2d_pallas.1} parent=11 // pred_fallthru
        _
      // Predicated region
      $region29: #{climate_resnet2d_pallas.1} parent=11 // pred_check
        %p328 = pneg %p149
      $region30: #{climate_resnet2d_pallas.1} parent=11 // pred_check_branch
        %330 = sbr.rel (%p328) target = $region32
      $region31: #{climate_resnet2d_pallas.1} parent=11 // pred_region
        _
      $region32: #{climate_resnet2d_pallas.1} parent=11 // pred_fallthru
        _
      // Predicated region
      $region33: #{climate_resnet2d_pallas.1} parent=11 // pred_check
        %p331 = pneg %p170
      $region34: #{climate_resnet2d_pallas.1} parent=11 // pred_check_branch
        %333 = sbr.rel (%p331) target = $region36
      $region35: #{climate_resnet2d_pallas.1} parent=11 // pred_region
        _
      $region36: #{climate_resnet2d_pallas.1} parent=11 // pred_fallthru
        _
      // Predicated region
      $region37: #{climate_resnet2d_pallas.1} parent=11 // pred_check
        %p334 = pneg %p191
      $region38: #{climate_resnet2d_pallas.1} parent=11 // pred_check_branch
        %336 = sbr.rel (%p334) target = $region40
      $region39: #{climate_resnet2d_pallas.1} parent=11 // pred_region
        _
      $region40: #{climate_resnet2d_pallas.1} parent=11 // pred_fallthru
        _
      // Predicated region
      $region41: #{climate_resnet2d_pallas.1} parent=11 // pred_check
        %p337 = pneg %p212
      $region42: #{climate_resnet2d_pallas.1} parent=11 // pred_check_branch
        %339 = sbr.rel (%p337) target = $region44
      $region43: #{climate_resnet2d_pallas.1} parent=11 // pred_region
        _
      $region44: #{climate_resnet2d_pallas.1} parent=11 // pred_fallthru
        _
      // Predicated region
      $region45: #{climate_resnet2d_pallas.1} parent=11 // pred_check
        %p340 = pneg %p233
      $region46: #{climate_resnet2d_pallas.1} parent=11 // pred_check_branch
        %342 = sbr.rel (%p340) target = $region48
      $region47: #{climate_resnet2d_pallas.1} parent=11 // pred_region
        _
      $region48: #{climate_resnet2d_pallas.1} parent=11 // pred_fallthru
        _
      // Predicated region
      $region49: #{climate_resnet2d_pallas.1} parent=11 // pred_check
        %p343 = pneg %p254
      $region50: #{climate_resnet2d_pallas.1} parent=11 // pred_check_branch
        %345 = sbr.rel (%p343) target = $region52
      $region51: #{climate_resnet2d_pallas.1} parent=11 // pred_region
        _
      $region52: #{climate_resnet2d_pallas.1} parent=11 // pred_fallthru
        _
      // Predicated region
      $region53: #{climate_resnet2d_pallas.1} parent=11 // pred_check
        %p346 = pneg %p275
      $region54: #{climate_resnet2d_pallas.1} parent=11 // pred_check_branch
        %348 = sbr.rel (%p346) target = $region56
      $region55: #{climate_resnet2d_pallas.1} parent=11 // pred_region
        _
      $region56: #{climate_resnet2d_pallas.1} parent=11 // pred_fallthru
        _
    $region12: #{climate_resnet2d_pallas.1} parent=5 // pred_fallthru
      _
    %p349 = scmp.lt.s32.totalorder %s18, 2
    // Predicated region
    $region57: #{climate_resnet2d_pallas.1} parent=5 // pred_check
      %p350 = pneg %p349
    $region58: #{climate_resnet2d_pallas.1} parent=5 // pred_check_branch
      %352 = sbr.rel (%p350) target = $region60
    $region59: #{climate_resnet2d_pallas.1} parent=5 // pred_region
      // Predicated region
      $region61: #{climate_resnet2d_pallas.1} parent=59 // pred_check
        %p353 = pneg %p38
      $region62: #{climate_resnet2d_pallas.1} parent=59 // pred_check_branch
        %355 = sbr.rel (%p353) target = $region64
      $region63: #{climate_resnet2d_pallas.1} parent=59 // pred_region
        %p356 = scmp.lt.s32.totalorder %s18, 1
        %s357 = scalar_select %p356, %s18, 1
        %s358 = smul.addr %s357, 2
        %s359 = smul.addr %s358, 8
        %s360 = scalar_lea.vmem %s0, %s359
      $region64: #{climate_resnet2d_pallas.1} parent=59 // pred_fallthru
        _
    $region60: #{climate_resnet2d_pallas.1} parent=5 // pred_fallthru
      _
    %p361 = scmp.le.s32.totalorder 1, %s18
    %p362 = scmp.lt.s32.totalorder %s18, 3
    %p363 = pnand %p361, %p362
    %p364 = pneg %p363
    // Predicated region
    $region65: #{climate_resnet2d_pallas.1} parent=5 // pred_check
      _
    $region66: #{climate_resnet2d_pallas.1} parent=5 // pred_check_branch
      %366 = sbr.rel (%p363) target = $region68
    $region67: #{climate_resnet2d_pallas.1} parent=5 // pred_region
      %s367 = ssub.s32 %s18, 1
      %p368 = scmp.lt.s32.totalorder %s23, 1
      %s369 = scalar_select %p368, %s23, 1
      %s370 = smul.addr %s369, 2
      %s371 = smul.addr %s370, 8
      %s372 = scalar_lea.vmem %s0, %s371
      %p373 = pneg %p44
      %p374 = pneg %p41
      %p375 = pneg %p65
      %p376 = pneg %p62
      %p377 = pneg %p86
      %p378 = pneg %p83
      %p379 = pneg %p107
      %p380 = pneg %p104
      %p381 = pneg %p128
      %p382 = pneg %p125
      %p383 = pneg %p149
      %p384 = pneg %p146
      %p385 = pneg %p170
      %p386 = pneg %p167
      %p387 = pneg %p191
      %p388 = pneg %p188
      %p389 = pneg %p212
      %p390 = pneg %p209
      %p391 = pneg %p233
      %p392 = pneg %p230
      %p393 = pneg %p254
      %p394 = pneg %p251
      %p395 = pneg %p275
      %p396 = pneg %p272
      %p397 = pneg %p301
      %p398 = pneg %p298
      %p399 = scmp.lt.s32.totalorder %s23, 1
      %s400 = scalar_select %p399, %s23, 1
      %s401 = smul.addr %s400, 4
      %s402 = smul.addr %s401, 8
      %s403 = scalar_lea.vmem %s12, %s402
      %p404 = scmp.lt.s32.totalorder %s23, 1
      %s405 = scalar_select %p404, %s23, 1
      %s406 = smul.addr %s405, 2
      %s407 = smul.addr %s406, 8
      %s408 = scalar_lea.vmem %s0, %s407
      %p409 = scmp.lt.s32.totalorder %s23, 1
      %s410 = scalar_select %p409, %s23, 1
      %s411 = smul.addr %s410, 4
      %s412 = smul.addr %s411, 8
      %s413 = scalar_lea.vmem %s12, %s412
      %vm414 = vcmask 130048
      %415 = vst.msk [vmem:[#allocation2] sm:$0xff] %vm414, 0.0
      %416 = vst.msk [vmem:[#allocation2 + $0x18] sm:$0xff] %vm414, 0.0
      %vm417 = vcmask 1047936
      %418 = vst.msk [vmem:[#allocation2 + $0x10] sm:$0xff] %vm417, 0.0
      %419 = vst.msk [vmem:[#allocation2 + $0x28] sm:$0xff] %vm417, 0.0
      %v420 = vlaneseq
      %v421 = vand.u32 %v420, 127
      %v422 = vadd.s32 %v421, 128
      %v423 = vand.u32 %v421, 15
      %v424 = vand.u32 %v422, 15
      %v425 = vld [vmem:[%s408] sm:$0xff]
      %v426 = vld [vmem:[%s408 + $0x8] sm:$0xff]
      %v427 = vld [vmem:[%s3] sm:$0xff]
      %vm428 = vcmp.ge.f32.partialorder %v425, 0.0
      %vm429 = vcmp.ge.f32.partialorder %v426, 0.0
      %v430 = vmul.f32 %v425, 0.3
      %v431 = vmul.f32 %v426, 0.3
      %v432 = vsel %vm428, %v425, %v430
      %v433 = vsel %vm429, %v426, %v431
      %vm434 = vcmask 261248
      %435 = vst.msk [vmem:[#allocation2] sm:$0xff] %vm434, %v432
      %438 = vrot.lane.b32.xlu0 %v432, 32
      %v439 = vpop.permute.xlu0 %438
      %440 = vrot.lane.b32.xlu0 %v433, 32
      %v441 = vpop.permute.xlu0 %440
      %vm442 = vcmask 261120
      %v443 = vsel %vm442, %v439, %v441
      %vm447 = vcmask 1047808
      %448 = vst.msk [vmem:[#allocation2] sm:$0xff] %vm447, %v439
      %449 = vst [vmem:[#allocation2 + $0x8] sm:$0xff] %v443
      %450 = vst.msk [vmem:[#allocation2 + $0x10] sm:$0xff] %vm442, %v441
      %451 = vrot.lane.b32.xlu0 %v433, 64
      %v452 = vpop.permute.xlu0 %451
      %vm454 = vcmask 392448
      %455 = vst.msk [vmem:[#allocation2 + $0x10] sm:$0xff] %vm454, %v452
      %vm456 = vcmp.eq.s32.totalorder %v423, 0
      %vm457 = vcmp.eq.s32.totalorder %v424, 0
      %vm458 = vcmp.eq.s32.totalorder %v423, 15
      %vm459 = vcmp.eq.s32.totalorder %v424, 15
      %v460 = vld [vmem:[#allocation2] sm:$0xff]
      %v461 = vld [vmem:[#allocation2 + $0x8] sm:$0xff]
      %v462 = vld [vmem:[#allocation2 + $0x10] sm:$0xff]
      %466 = vrot.lane.b32.xlu0 %v460, 97
      %v467 = vpop.permute.xlu0 %466
      %468 = vrot.lane.b32.xlu0 %v461, 97
      %v469 = vpop.permute.xlu0 %468
      %470 = vrot.lane.b32.xlu0 %v462, 97
      %v471 = vpop.permute.xlu0 %470
      %vm472 = vcmask 793600
      %v473 = vsel %vm472, %v467, %v469
      %v474 = vsel %vm472, %v469, %v471
      %477 = vrot.lane.b32.xlu0 %v460, 113
      %v478 = vpop.permute.xlu0 %477
      %479 = vrot.lane.b32.xlu0 %v461, 113
      %v480 = vpop.permute.xlu0 %479
      %481 = vrot.lane.b32.xlu0 %v462, 113
      %v482 = vpop.permute.xlu0 %481
      %vm483 = vcmask 924672
      %v484 = vsel %vm483, %v478, %v480
      %v485 = vsel %vm483, %v480, %v482
      %v488 = vsel %vm456, %v473, %v484
      %v489 = vsel %vm457, %v474, %v485
      %490 = vrot.lane.b32.xlu0 %v460, 127
      %v491 = vpop.permute.xlu0 %490
      %492 = vrot.lane.b32.xlu0 %v461, 127
      %v493 = vpop.permute.xlu0 %492
      %494 = vrot.lane.b32.xlu0 %v462, 127
      %v495 = vpop.permute.xlu0 %494
      %vm496 = vcmask 1039360
      %v497 = vsel %vm496, %v491, %v493
      %v498 = vsel %vm496, %v493, %v495
      %501 = vrot.lane.b32.xlu0 %v460, 111
      %v502 = vpop.permute.xlu0 %501
      %503 = vrot.lane.b32.xlu0 %v461, 111
      %v504 = vpop.permute.xlu0 %503
      %505 = vrot.lane.b32.xlu0 %v462, 111
      %v506 = vpop.permute.xlu0 %505
      %vm507 = vcmask 908288
      %v508 = vsel %vm507, %v502, %v504
      %v509 = vsel %vm507, %v504, %v506
      %v512 = vsel %vm458, %v497, %v508
      %v513 = vsel %vm459, %v498, %v509
      %514 = vst [vmem:[#allocation3] sm:$0xff] %v488
      %515 = vst [vmem:[#allocation3 + $0x8] sm:$0xff] %v489
      %516 = vrot.lane.b32.xlu0 %v460, 112
      %v517 = vpop.permute.xlu0 %516
      %518 = vrot.lane.b32.xlu0 %v461, 112
      %v519 = vpop.permute.xlu0 %518
      %520 = vrot.lane.b32.xlu0 %v462, 112
      %v521 = vpop.permute.xlu0 %520
      %vm522 = vcmask 916480
      %v523 = vsel %vm522, %v517, %v519
      %v524 = vsel %vm522, %v519, %v521
      %527 = vst [vmem:[#allocation3 + $0x10] sm:$0xff] %v523
      %528 = vst [vmem:[#allocation3 + $0x18] sm:$0xff] %v524
      %529 = vst [vmem:[#allocation3 + $0x20] sm:$0xff] %v512
      %530 = vst [vmem:[#allocation3 + $0x28] sm:$0xff] %v513
      %v531 = vld [vmem:[#allocation2] sm:$0xff]
      %v532 = vld [vmem:[#allocation2 + $0x8] sm:$0xff]
      %v533 = vld [vmem:[#allocation2 + $0x10] sm:$0xff]
      %537 = vrot.lane.b32.xlu0 %v531, 81
      %v538 = vpop.permute.xlu0 %537
      %539 = vrot.lane.b32.xlu0 %v532, 81
      %v540 = vpop.permute.xlu0 %539
      %541 = vrot.lane.b32.xlu0 %v533, 81
      %v542 = vpop.permute.xlu0 %541
      %vm543 = vcmask 662528
      %v544 = vsel %vm543, %v538, %v540
      %v545 = vsel %vm543, %v540, %v542
      %548 = vrot.lane.b32.xlu0 %v531, 97
      %v549 = vpop.permute.xlu0 %548
      %550 = vrot.lane.b32.xlu0 %v532, 97
      %v551 = vpop.permute.xlu0 %550
      %552 = vrot.lane.b32.xlu0 %v533, 97
      %v553 = vpop.permute.xlu0 %552
      %v554 = vsel %vm472, %v549, %v551
      %v555 = vsel %vm472, %v551, %v553
      %v558 = vsel %vm456, %v544, %v554
      %v559 = vsel %vm457, %v545, %v555
      %560 = vrot.lane.b32.xlu0 %v531, 111
      %v561 = vpop.permute.xlu0 %560
      %562 = vrot.lane.b32.xlu0 %v532, 111
      %v563 = vpop.permute.xlu0 %562
      %564 = vrot.lane.b32.xlu0 %v533, 111
      %v565 = vpop.permute.xlu0 %564
      %v566 = vsel %vm507, %v561, %v563
      %v567 = vsel %vm507, %v563, %v565
      %570 = vrot.lane.b32.xlu0 %v531, 95
      %v571 = vpop.permute.xlu0 %570
      %572 = vrot.lane.b32.xlu0 %v532, 95
      %v573 = vpop.permute.xlu0 %572
      %574 = vrot.lane.b32.xlu0 %v533, 95
      %v575 = vpop.permute.xlu0 %574
      %vm576 = vcmask 777216
      %v577 = vsel %vm576, %v571, %v573
      %v578 = vsel %vm576, %v573, %v575
      %v581 = vsel %vm458, %v566, %v577
      %v582 = vsel %vm459, %v567, %v578
      %583 = vst [vmem:[#allocation3 + $0x30] sm:$0xff] %v558
      %584 = vst [vmem:[#allocation3 + $0x38] sm:$0xff] %v559
      %585 = vrot.lane.b32.xlu0 %v531, 96
      %v586 = vpop.permute.xlu0 %585
      %587 = vrot.lane.b32.xlu0 %v532, 96
      %v588 = vpop.permute.xlu0 %587
      %589 = vrot.lane.b32.xlu0 %v533, 96
      %v590 = vpop.permute.xlu0 %589
      %vm591 = vcmask 785408
      %v592 = vsel %vm591, %v586, %v588
      %v593 = vsel %vm591, %v588, %v590
      %596 = vst [vmem:[#allocation3 + $0x40] sm:$0xff] %v592
      %597 = vst [vmem:[#allocation3 + $0x48] sm:$0xff] %v593
      %598 = vst [vmem:[#allocation3 + $0x50] sm:$0xff] %v581
      %599 = vst [vmem:[#allocation3 + $0x58] sm:$0xff] %v582
      %v600 = vld [vmem:[#allocation2] sm:$0xff]
      %v601 = vld [vmem:[#allocation2 + $0x8] sm:$0xff]
      %v602 = vld [vmem:[#allocation2 + $0x10] sm:$0xff]
      %606 = vrot.lane.b32.xlu0 %v600, 65
      %v607 = vpop.permute.xlu0 %606
      %608 = vrot.lane.b32.xlu0 %v601, 65
      %v609 = vpop.permute.xlu0 %608
      %610 = vrot.lane.b32.xlu0 %v602, 65
      %v611 = vpop.permute.xlu0 %610
      %vm612 = vcmask 531456
      %v613 = vsel %vm612, %v607, %v609
      %v614 = vsel %vm612, %v609, %v611
      %617 = vrot.lane.b32.xlu0 %v600, 81
      %v618 = vpop.permute.xlu0 %617
      %619 = vrot.lane.b32.xlu0 %v601, 81
      %v620 = vpop.permute.xlu0 %619
      %621 = vrot.lane.b32.xlu0 %v602, 81
      %v622 = vpop.permute.xlu0 %621
      %v623 = vsel %vm543, %v618, %v620
      %v624 = vsel %vm543, %v620, %v622
      %v627 = vsel %vm456, %v613, %v623
      %v628 = vsel %vm457, %v614, %v624
      %629 = vrot.lane.b32.xlu0 %v600, 95
      %v630 = vpop.permute.xlu0 %629
      %631 = vrot.lane.b32.xlu0 %v601, 95
      %v632 = vpop.permute.xlu0 %631
      %633 = vrot.lane.b32.xlu0 %v602, 95
      %v634 = vpop.permute.xlu0 %633
      %v635 = vsel %vm576, %v630, %v632
      %v636 = vsel %vm576, %v632, %v634
      %639 = vrot.lane.b32.xlu0 %v600, 79
      %v640 = vpop.permute.xlu0 %639
      %641 = vrot.lane.b32.xlu0 %v601, 79
      %v642 = vpop.permute.xlu0 %641
      %643 = vrot.lane.b32.xlu0 %v602, 79
      %v644 = vpop.permute.xlu0 %643
      %vm645 = vcmask 646144
      %v646 = vsel %vm645, %v640, %v642
      %v647 = vsel %vm645, %v642, %v644
      %v650 = vsel %vm458, %v635, %v646
      %v651 = vsel %vm459, %v636, %v647
      %652 = vst [vmem:[#allocation3 + $0x60] sm:$0xff] %v627
      %653 = vst [vmem:[#allocation3 + $0x68] sm:$0xff] %v628
      %654 = vrot.lane.b32.xlu0 %v600, 80
      %v655 = vpop.permute.xlu0 %654
      %656 = vrot.lane.b32.xlu0 %v601, 80
      %v657 = vpop.permute.xlu0 %656
      %658 = vrot.lane.b32.xlu0 %v602, 80
      %v659 = vpop.permute.xlu0 %658
      %vm660 = vcmask 654336
      %v661 = vsel %vm660, %v655, %v657
      %v662 = vsel %vm660, %v657, %v659
      %665 = vst [vmem:[#allocation3 + $0x70] sm:$0xff] %v661
      %666 = vst [vmem:[#allocation3 + $0x78] sm:$0xff] %v662
      %667 = vst [vmem:[#allocation3 + $0x80] sm:$0xff] %v650
      %668 = vst [vmem:[#allocation3 + $0x88] sm:$0xff] %v651
      %v669 = vld [vmem:[%s1] sm:$0xff]
      %v670 = vld [vmem:[#allocation3] sm:$0xff]
      %v671 = vld [vmem:[#allocation3 + $0x8] sm:$0xff]
      %v672 = vld [vmem:[#allocation3 + $0x10] sm:$0xff]
      %v673 = vld [vmem:[#allocation3 + $0x18] sm:$0xff]
      %v674 = vld [vmem:[#allocation3 + $0x20] sm:$0xff]
      %v675 = vld [vmem:[#allocation3 + $0x28] sm:$0xff]
      %v676 = vld [vmem:[#allocation3 + $0x30] sm:$0xff]
      %v677 = vld [vmem:[#allocation3 + $0x38] sm:$0xff]
      %v678 = vld [vmem:[#allocation3 + $0x40] sm:$0xff]
      %v679 = vld [vmem:[#allocation3 + $0x48] sm:$0xff]
      %v680 = vld [vmem:[#allocation3 + $0x50] sm:$0xff]
      %v681 = vld [vmem:[#allocation3 + $0x58] sm:$0xff]
      %v682 = vld [vmem:[#allocation3 + $0x60] sm:$0xff]
      %v683 = vld [vmem:[#allocation3 + $0x68] sm:$0xff]
      %v684 = vld [vmem:[#allocation3 + $0x70] sm:$0xff]
      %v685 = vld [vmem:[#allocation3 + $0x78] sm:$0xff]
      %v686 = vld [vmem:[#allocation3 + $0x80] sm:$0xff]
      %v687 = vld [vmem:[#allocation3 + $0x88] sm:$0xff]
      %689 = vset.pattern.permute.xlu0 0
      %690 = vperm.xlu0 %689, %v427
      %v691 = vpop.permute.xlu0 %690
      %vm693 = vcmask 588800
      %v695 = vsel %vm693, %v669, 0
      %697 = vmatprep.subr.mxu0 %v671
      %698 = vmatpush1.msra.mxu0 %v670
      %699 = vmatprep.subr.mxu0 %v673
      %700 = vmatpush1.msra.mxu0 %v672
      %701 = vmatprep.subr.mxu0 %v675
      %702 = vmatpush1.msra.mxu0 %v674
      %703 = vmatprep.subr.mxu0 %v677
      %704 = vmatpush1.msra.mxu0 %v676
      %705 = vmatprep.subr.mxu0 %v679
      %706 = vmatpush1.msra.mxu0 %v678
      %707 = vmatprep.subr.mxu0 %v681
      %708 = vmatpush1.msra.mxu0 %v680
      %709 = vmatprep.subr.mxu0 %v683
      %710 = vmatpush1.msra.mxu0 %v682
      %711 = vmatprep.subr.mxu0 %v685
      %712 = vmatpush1.msra.mxu0 %v684
      %713 = vmatprep.subr.mxu0 %v687
      %714 = vmatpush1.msra.mxu0 %v686
      %715 = vmatprep.subr.mxu0 0.0
      %716 = vmatpush1.msra.mxu0 0.0
      %717 = vmatprep.subr.mxu0 0.0
      %718 = vmatpush1.msra.mxu0 0.0
      %719 = vmatprep.subr.mxu0 0.0
      %720 = vmatpush1.msra.mxu0 0.0
      %721 = vmatprep.subr.mxu0 0.0
      %722 = vmatpush1.msra.mxu0 0.0
      %723 = vmatprep.subr.mxu0 0.0
      %724 = vmatpush1.msra.mxu0 0.0
      %725 = vmatprep.subr.mxu0 0.0
      %726 = vmatpush1.msra.mxu0 0.0
      %727 = vmatprep.subr.mxu0 0.0
      %728 = vmatpush1.msra.mxu0 0.0
      %729 = vmatprep.subr.mxu0 0.0
      %730 = vmatpush1.msra.mxu0 0.0
      %731 = vmatprep.subr.mxu0 0.0
      %732 = vmatpush1.msra.mxu0 0.0
      %733 = vmatprep.subr.mxu0 0.0
      %734 = vmatpush1.msra.mxu0 0.0
      %735 = vmatprep.subr.mxu0 0.0
      %736 = vmatpush1.msra.mxu0 0.0
      %737 = vmatprep.subr.mxu0 0.0
      %738 = vmatpush1.msra.mxu0 0.0
      %739 = vmatprep.subr.mxu0 0.0
      %740 = vmatpush1.msra.mxu0 0.0
      %741 = vmatprep.subr.mxu0 0.0
      %742 = vmatpush1.msra.mxu0 0.0
      %743 = vmatprep.subr.mxu0 0.0
      %744 = vmatpush1.msra.mxu0 0.0
      %745 = vmatprep.subr.mxu0 0.0
      %746 = vmatpush1.msra.mxu0 0.0
      %747 = vmatprep.subr.mxu0 0.0
      %748 = vmatpush1.msra.mxu0 0.0
      %749 = vmatprep.subr.mxu0 0.0
      %750 = vmatpush1.msra.mxu0 0.0
      %751 = vmatprep.subr.mxu0 0.0
      %752 = vmatpush1.msra.mxu0 0.0
      %753 = vmatprep.subr.mxu0 0.0
      %754 = vmatpush1.msra.mxu0 0.0
      %755 = vmatprep.subr.mxu0 0.0
      %756 = vmatpush1.msra.mxu0 0.0
      %757 = vmatprep.subr.mxu0 0.0
      %758 = vmatpush1.msra.mxu0 0.0
      %759 = vmatprep.subr.mxu0 0.0
      %760 = vmatpush1.msra.mxu0 0.0
      %761 = vmatprep.mubr.f32.mxu0 0.0
      %762 = vmatmul.mubr.f32.gmra.mrb[0].mxu0 %v695
      %v763 = vpop.f32.mrb[0].mxu0
      %v764 = vadd.f32 %v691, %v763
      %v765 = vpop.f32.mrb[0].mxu0
      %v766 = vadd.f32 %v691, %v765
      %767 = vdwg.mxu0
      %v768 = vadd.f32 %v764, %v766
      %769 = vadd.xlane.f32.xlu0 %v768
      %v770 = vpop.xlane.xlu0 %769
      %v771 = vmul.f32 %v770, 0.00390625
      %v772 = vsub.f32 %v764, %v771
      %v773 = vsub.f32 %v766, %v771
      %v774 = vmul.f32 %v772, %v772
      %v775 = vmul.f32 %v773, %v773
      %v776 = vadd.f32 %v774, %v775
      %777 = vadd.xlane.f32.xlu0 %v776
      %v778 = vpop.xlane.xlu0 %777
      %v779 = vmul.f32 %v778, 0.00390625
      %v780 = vadd.f32 %v779, 1e-05
      %v781 = vrsqrt.pop %v780
      %v782 = vmul.f32 %v772, %v781
      %v783 = vmul.f32 %v773, %v781
      %784 = vset.pattern.permute.xlu0 1
      %785 = vperm.xlu0 %784, %v427
      %v786 = vpop.permute.xlu0 %785
      %v788 = vmul.f32 %v782, %v786
      %v789 = vmul.f32 %v783, %v786
      %790 = vset.pattern.permute.xlu0 2
      %791 = vperm.xlu0 %790, %v427
      %v792 = vpop.permute.xlu0 %791
      %v794 = vadd.f32 %v788, %v792
      %v795 = vadd.f32 %v789, %v792
      %vm796 = vcmp.ge.f32.partialorder %v794, 0.0
      %vm797 = vcmp.ge.f32.partialorder %v795, 0.0
      %v798 = vmul.f32 %v794, 0.3
      %v799 = vmul.f32 %v795, 0.3
      %v800 = vsel %vm796, %v794, %v798
      %v801 = vsel %vm797, %v795, %v799
      %802 = vst.msk [vmem:[#allocation2] sm:$0xff] %vm434, %v800
      %805 = vrot.lane.b32.xlu0 %v800, 32
      %v806 = vpop.permute.xlu0 %805
      %807 = vrot.lane.b32.xlu0 %v801, 32
      %v808 = vpop.permute.xlu0 %807
      %v809 = vsel %vm442, %v806, %v808
      %813 = vst.msk [vmem:[#allocation2] sm:$0xff] %vm447, %v806
      %814 = vst [vmem:[#allocation2 + $0x8] sm:$0xff] %v809
      %815 = vst.msk [vmem:[#allocation2 + $0x10] sm:$0xff] %vm442, %v808
      %816 = vrot.lane.b32.xlu0 %v801, 64
      %v817 = vpop.permute.xlu0 %816
      %819 = vst.msk [vmem:[#allocation2 + $0x10] sm:$0xff] %vm454, %v817
      %v820 = vld [vmem:[#allocation2] sm:$0xff]
      %v821 = vld [vmem:[#allocation2 + $0x8] sm:$0xff]
      %v822 = vld [vmem:[#allocation2 + $0x10] sm:$0xff]
      %826 = vrot.lane.b32.xlu0 %v820, 97
      %v827 = vpop.permute.xlu0 %826
      %828 = vrot.lane.b32.xlu0 %v821, 97
      %v829 = vpop.permute.xlu0 %828
      %830 = vrot.lane.b32.xlu0 %v822, 97
      %v831 = vpop.permute.xlu0 %830
      %v832 = vsel %vm472, %v827, %v829
      %v833 = vsel %vm472, %v829, %v831
      %836 = vrot.lane.b32.xlu0 %v820, 113
      %v837 = vpop.permute.xlu0 %836
      %838 = vrot.lane.b32.xlu0 %v821, 113
      %v839 = vpop.permute.xlu0 %838
      %840 = vrot.lane.b32.xlu0 %v822, 113
      %v841 = vpop.permute.xlu0 %840
      %v842 = vsel %vm483, %v837, %v839
      %v843 = vsel %vm483, %v839, %v841
      %v846 = vsel %vm456, %v832, %v842
      %v847 = vsel %vm457, %v833, %v843
      %848 = vrot.lane.b32.xlu0 %v820, 127
      %v849 = vpop.permute.xlu0 %848
      %850 = vrot.lane.b32.xlu0 %v821, 127
      %v851 = vpop.permute.xlu0 %850
      %852 = vrot.lane.b32.xlu0 %v822, 127
      %v853 = vpop.permute.xlu0 %852
      %v854 = vsel %vm496, %v849, %v851
      %v855 = vsel %vm496, %v851, %v853
      %858 = vrot.lane.b32.xlu0 %v820, 111
      %v859 = vpop.permute.xlu0 %858
      %860 = vrot.lane.b32.xlu0 %v821, 111
      %v861 = vpop.permute.xlu0 %860
      %862 = vrot.lane.b32.xlu0 %v822, 111
      %v863 = vpop.permute.xlu0 %862
      %v864 = vsel %vm507, %v859, %v861
      %v865 = vsel %vm507, %v861, %v863
      %v868 = vsel %vm458, %v854, %v864
      %v869 = vsel %vm459, %v855, %v865
      %870 = vst [vmem:[#allocation3] sm:$0xff] %v846
      %871 = vst [vmem:[#allocation3 + $0x8] sm:$0xff] %v847
      %872 = vrot.lane.b32.xlu0 %v820, 112
      %v873 = vpop.permute.xlu0 %872
      %874 = vrot.lane.b32.xlu0 %v821, 112
      %v875 = vpop.permute.xlu0 %874
      %876 = vrot.lane.b32.xlu0 %v822, 112
      %v877 = vpop.permute.xlu0 %876
      %v878 = vsel %vm522, %v873, %v875
      %v879 = vsel %vm522, %v875, %v877
      %882 = vst [vmem:[#allocation3 + $0x10] sm:$0xff] %v878
      %883 = vst [vmem:[#allocation3 + $0x18] sm:$0xff] %v879
      %884 = vst [vmem:[#allocation3 + $0x20] sm:$0xff] %v868
      %885 = vst [vmem:[#allocation3 + $0x28] sm:$0xff] %v869
      %v886 = vld [vmem:[#allocation2] sm:$0xff]
      %v887 = vld [vmem:[#allocation2 + $0x8] sm:$0xff]
      %v888 = vld [vmem:[#allocation2 + $0x10] sm:$0xff]
      %892 = vrot.lane.b32.xlu0 %v886, 81
      %v893 = vpop.permute.xlu0 %892
      %894 = vrot.lane.b32.xlu0 %v887, 81
      %v895 = vpop.permute.xlu0 %894
      %896 = vrot.lane.b32.xlu0 %v888, 81
      %v897 = vpop.permute.xlu0 %896
      %v898 = vsel %vm543, %v893, %v895
      %v899 = vsel %vm543, %v895, %v897
      %902 = vrot.lane.b32.xlu0 %v886, 97
      %v903 = vpop.permute.xlu0 %902
      %904 = vrot.lane.b32.xlu0 %v887, 97
      %v905 = vpop.permute.xlu0 %904
      %906 = vrot.lane.b32.xlu0 %v888, 97
      %v907 = vpop.permute.xlu0 %906
      %v908 = vsel %vm472, %v903, %v905
      %v909 = vsel %vm472, %v905, %v907
      %v912 = vsel %vm456, %v898, %v908
      %v913 = vsel %vm457, %v899, %v909
      %914 = vrot.lane.b32.xlu0 %v886, 111
      %v915 = vpop.permute.xlu0 %914
      %916 = vrot.lane.b32.xlu0 %v887, 111
      %v917 = vpop.permute.xlu0 %916
      %918 = vrot.lane.b32.xlu0 %v888, 111
      %v919 = vpop.permute.xlu0 %918
      %v920 = vsel %vm507, %v915, %v917
      %v921 = vsel %vm507, %v917, %v919
      %924 = vrot.lane.b32.xlu0 %v886, 95
      %v925 = vpop.permute.xlu0 %924
      %926 = vrot.lane.b32.xlu0 %v887, 95
      %v927 = vpop.permute.xlu0 %926
      %928 = vrot.lane.b32.xlu0 %v888, 95
      %v929 = vpop.permute.xlu0 %928
      %v930 = vsel %vm576, %v925, %v927
      %v931 = vsel %vm576, %v927, %v929
      %v934 = vsel %vm458, %v920, %v930
      %v935 = vsel %vm459, %v921, %v931
      %936 = vst [vmem:[#allocation3 + $0x30] sm:$0xff] %v912
      %937 = vst [vmem:[#allocation3 + $0x38] sm:$0xff] %v913
      %938 = vrot.lane.b32.xlu0 %v886, 96
      %v939 = vpop.permute.xlu0 %938
      %940 = vrot.lane.b32.xlu0 %v887, 96
      %v941 = vpop.permute.xlu0 %940
      %942 = vrot.lane.b32.xlu0 %v888, 96
      %v943 = vpop.permute.xlu0 %942
      %v944 = vsel %vm591, %v939, %v941
      %v945 = vsel %vm591, %v941, %v943
      %948 = vst [vmem:[#allocation3 + $0x40] sm:$0xff] %v944
      %949 = vst [vmem:[#allocation3 + $0x48] sm:$0xff] %v945
      %950 = vst [vmem:[#allocation3 + $0x50] sm:$0xff] %v934
      %951 = vst [vmem:[#allocation3 + $0x58] sm:$0xff] %v935
      %v952 = vld [vmem:[#allocation2] sm:$0xff]
      %v953 = vld [vmem:[#allocation2 + $0x8] sm:$0xff]
      %v954 = vld [vmem:[#allocation2 + $0x10] sm:$0xff]
      %958 = vrot.lane.b32.xlu0 %v952, 65
      %v959 = vpop.permute.xlu0 %958
      %960 = vrot.lane.b32.xlu0 %v953, 65
      %v961 = vpop.permute.xlu0 %960
      %962 = vrot.lane.b32.xlu0 %v954, 65
      %v963 = vpop.permute.xlu0 %962
      %v964 = vsel %vm612, %v959, %v961
      %v965 = vsel %vm612, %v961, %v963
      %968 = vrot.lane.b32.xlu0 %v952, 81
      %v969 = vpop.permute.xlu0 %968
      %970 = vrot.lane.b32.xlu0 %v953, 81
      %v971 = vpop.permute.xlu0 %970
      %972 = vrot.lane.b32.xlu0 %v954, 81
      %v973 = vpop.permute.xlu0 %972
      %v974 = vsel %vm543, %v969, %v971
      %v975 = vsel %vm543, %v971, %v973
      %v978 = vsel %vm456, %v964, %v974
      %v979 = vsel %vm457, %v965, %v975
      %980 = vrot.lane.b32.xlu0 %v952, 95
      %v981 = vpop.permute.xlu0 %980
      %982 = vrot.lane.b32.xlu0 %v953, 95
      %v983 = vpop.permute.xlu0 %982
      %984 = vrot.lane.b32.xlu0 %v954, 95
      %v985 = vpop.permute.xlu0 %984
      %v986 = vsel %vm576, %v981, %v983
      %v987 = vsel %vm576, %v983, %v985
      %990 = vrot.lane.b32.xlu0 %v952, 79
      %v991 = vpop.permute.xlu0 %990
      %992 = vrot.lane.b32.xlu0 %v953, 79
      %v993 = vpop.permute.xlu0 %992
      %994 = vrot.lane.b32.xlu0 %v954, 79
      %v995 = vpop.permute.xlu0 %994
      %v996 = vsel %vm645, %v991, %v993
      %v997 = vsel %vm645, %v993, %v995
      %v1000 = vsel %vm458, %v986, %v996
      %v1001 = vsel %vm459, %v987, %v997
      %1002 = vst [vmem:[#allocation3 + $0x60] sm:$0xff] %v978
      %1003 = vst [vmem:[#allocation3 + $0x68] sm:$0xff] %v979
      %1004 = vrot.lane.b32.xlu0 %v952, 80
      %v1005 = vpop.permute.xlu0 %1004
      %1006 = vrot.lane.b32.xlu0 %v953, 80
      %v1007 = vpop.permute.xlu0 %1006
      %1008 = vrot.lane.b32.xlu0 %v954, 80
      %v1009 = vpop.permute.xlu0 %1008
      %v1010 = vsel %vm660, %v1005, %v1007
      %v1011 = vsel %vm660, %v1007, %v1009
      %1014 = vst [vmem:[#allocation3 + $0x70] sm:$0xff] %v1010
      %1015 = vst [vmem:[#allocation3 + $0x78] sm:$0xff] %v1011
      %1016 = vst [vmem:[#allocation3 + $0x80] sm:$0xff] %v1000
      %1017 = vst [vmem:[#allocation3 + $0x88] sm:$0xff] %v1001
      %v1018 = vld [vmem:[%s2] sm:$0xff]
      %v1019 = vld [vmem:[#allocation3] sm:$0xff]
      %v1020 = vld [vmem:[#allocation3 + $0x8] sm:$0xff]
      %v1021 = vld [vmem:[#allocation3 + $0x10] sm:$0xff]
      %v1022 = vld [vmem:[#allocation3 + $0x18] sm:$0xff]
      %v1023 = vld [vmem:[#allocation3 + $0x20] sm:$0xff]
      %v1024 = vld [vmem:[#allocation3 + $0x28] sm:$0xff]
      %v1025 = vld [vmem:[#allocation3 + $0x30] sm:$0xff]
      %v1026 = vld [vmem:[#allocation3 + $0x38] sm:$0xff]
      %v1027 = vld [vmem:[#allocation3 + $0x40] sm:$0xff]
      %v1028 = vld [vmem:[#allocation3 + $0x48] sm:$0xff]
      %v1029 = vld [vmem:[#allocation3 + $0x50] sm:$0xff]
      %v1030 = vld [vmem:[#allocation3 + $0x58] sm:$0xff]
      %v1031 = vld [vmem:[#allocation3 + $0x60] sm:$0xff]
      %v1032 = vld [vmem:[#allocation3 + $0x68] sm:$0xff]
      %v1033 = vld [vmem:[#allocation3 + $0x70] sm:$0xff]
      %v1034 = vld [vmem:[#allocation3 + $0x78] sm:$0xff]
      %v1035 = vld [vmem:[#allocation3 + $0x80] sm:$0xff]
      %v1036 = vld [vmem:[#allocation3 + $0x88] sm:$0xff]
      %1037 = vset.pattern.permute.xlu0 3
      %1038 = vperm.xlu0 %1037, %v427
      %v1039 = vpop.permute.xlu0 %1038
      %v1042 = vsel %vm693, %v1018, 0
      %1044 = vmatprep.subr.mxu0 %v1020
      %1045 = vmatpush1.msra.mxu0 %v1019
      %1046 = vmatprep.subr.mxu0 %v1022
      %1047 = vmatpush1.msra.mxu0 %v1021
      %1048 = vmatprep.subr.mxu0 %v1024
      %1049 = vmatpush1.msra.mxu0 %v1023
      %1050 = vmatprep.subr.mxu0 %v1026
      %1051 = vmatpush1.msra.mxu0 %v1025
      %1052 = vmatprep.subr.mxu0 %v1028
      %1053 = vmatpush1.msra.mxu0 %v1027
      %1054 = vmatprep.subr.mxu0 %v1030
      %1055 = vmatpush1.msra.mxu0 %v1029
      %1056 = vmatprep.subr.mxu0 %v1032
      %1057 = vmatpush1.msra.mxu0 %v1031
      %1058 = vmatprep.subr.mxu0 %v1034
      %1059 = vmatpush1.msra.mxu0 %v1033
      %1060 = vmatprep.subr.mxu0 %v1036
      %1061 = vmatpush1.msra.mxu0 %v1035
      %1062 = vmatprep.subr.mxu0 0.0
      %1063 = vmatpush1.msra.mxu0 0.0
      %1064 = vmatprep.subr.mxu0 0.0
      %1065 = vmatpush1.msra.mxu0 0.0
      %1066 = vmatprep.subr.mxu0 0.0
      %1067 = vmatpush1.msra.mxu0 0.0
      %1068 = vmatprep.subr.mxu0 0.0
      %1069 = vmatpush1.msra.mxu0 0.0
      %1070 = vmatprep.subr.mxu0 0.0
      %1071 = vmatpush1.msra.mxu0 0.0
      %1072 = vmatprep.subr.mxu0 0.0
      %1073 = vmatpush1.msra.mxu0 0.0
      %1074 = vmatprep.subr.mxu0 0.0
      %1075 = vmatpush1.msra.mxu0 0.0
      %1076 = vmatprep.subr.mxu0 0.0
      %1077 = vmatpush1.msra.mxu0 0.0
      %1078 = vmatprep.subr.mxu0 0.0
      %1079 = vmatpush1.msra.mxu0 0.0
      %1080 = vmatprep.subr.mxu0 0.0
      %1081 = vmatpush1.msra.mxu0 0.0
      %1082 = vmatprep.subr.mxu0 0.0
      %1083 = vmatpush1.msra.mxu0 0.0
      %1084 = vmatprep.subr.mxu0 0.0
      %1085 = vmatpush1.msra.mxu0 0.0
      %1086 = vmatprep.subr.mxu0 0.0
      %1087 = vmatpush1.msra.mxu0 0.0
      %1088 = vmatprep.subr.mxu0 0.0
      %1089 = vmatpush1.msra.mxu0 0.0
      %1090 = vmatprep.subr.mxu0 0.0
      %1091 = vmatpush1.msra.mxu0 0.0
      %1092 = vmatprep.subr.mxu0 0.0
      %1093 = vmatpush1.msra.mxu0 0.0
      %1094 = vmatprep.subr.mxu0 0.0
      %1095 = vmatpush1.msra.mxu0 0.0
      %1096 = vmatprep.subr.mxu0 0.0
      %1097 = vmatpush1.msra.mxu0 0.0
      %1098 = vmatprep.subr.mxu0 0.0
      %1099 = vmatpush1.msra.mxu0 0.0
      %1100 = vmatprep.subr.mxu0 0.0
      %1101 = vmatpush1.msra.mxu0 0.0
      %1102 = vmatprep.subr.mxu0 0.0
      %1103 = vmatpush1.msra.mxu0 0.0
      %1104 = vmatprep.subr.mxu0 0.0
      %1105 = vmatpush1.msra.mxu0 0.0
      %1106 = vmatprep.subr.mxu0 0.0
      %1107 = vmatpush1.msra.mxu0 0.0
      %1108 = vmatprep.mubr.f32.mxu0 0.0
      %1109 = vmatmul.mubr.f32.gmra.mrb[0].mxu0 %v1042
      %v1110 = vpop.f32.mrb[0].mxu0
      %v1111 = vadd.f32 %v1039, %v1110
      %v1112 = vpop.f32.mrb[0].mxu0
      %v1113 = vadd.f32 %v1039, %v1112
      %1114 = vdwg.mxu0
      %v1115 = vadd.f32 %v1111, %v1113
      %1116 = vadd.xlane.f32.xlu0 %v1115
      %v1117 = vpop.xlane.xlu0 %1116
      %v1118 = vmul.f32 %v1117, 0.00390625
      %v1119 = vsub.f32 %v1111, %v1118
      %v1120 = vsub.f32 %v1113, %v1118
      %v1121 = vmul.f32 %v1119, %v1119
      %v1122 = vmul.f32 %v1120, %v1120
      %v1123 = vadd.f32 %v1121, %v1122
      %1124 = vadd.xlane.f32.xlu0 %v1123
      %v1125 = vpop.xlane.xlu0 %1124
      %v1126 = vmul.f32 %v1125, 0.00390625
      %v1127 = vadd.f32 %v1126, 1e-05
      %v1128 = vrsqrt.pop %v1127
      %v1129 = vmul.f32 %v1119, %v1128
      %v1130 = vmul.f32 %v1120, %v1128
      %1131 = vset.pattern.permute.xlu0 4
      %1132 = vperm.xlu0 %1131, %v427
      %v1133 = vpop.permute.xlu0 %1132
      %v1135 = vmul.f32 %v1129, %v1133
      %v1136 = vmul.f32 %v1130, %v1133
      %1137 = vset.pattern.permute.xlu0 5
      %1138 = vperm.xlu0 %1137, %v427
      %v1139 = vpop.permute.xlu0 %1138
      %v1141 = vadd.f32 %v1135, %v1139
      %v1142 = vadd.f32 %v1136, %v1139
      %v1143 = vld [vmem:[%s4] sm:$0xff]
      %1144 = vset.pattern.permute.xlu0 6
      %1145 = vperm.xlu0 %1144, %v427
      %v1146 = vpop.permute.xlu0 %1145
      %vm1148 = vcmask 64512
      %v1150 = vsel %vm1148, %v1143, 0
      %1152 = vmatprep.subr.mxu0 %v426
      %1153 = vmatpush1.msra.mxu0 %v425
      %1154 = vmatprep.subr.mxu0 0.0
      %1155 = vmatpush1.msra.mxu0 0.0
      %1156 = vmatprep.subr.mxu0 0.0
      %1157 = vmatpush1.msra.mxu0 0.0
      %1158 = vmatprep.subr.mxu0 0.0
      %1159 = vmatpush1.msra.mxu0 0.0
      %1160 = vmatprep.subr.mxu0 0.0
      %1161 = vmatpush1.msra.mxu0 0.0
      %1162 = vmatprep.subr.mxu0 0.0
      %1163 = vmatpush1.msra.mxu0 0.0
      %1164 = vmatprep.subr.mxu0 0.0
      %1165 = vmatpush1.msra.mxu0 0.0
      %1166 = vmatprep.subr.mxu0 0.0
      %1167 = vmatpush1.msra.mxu0 0.0
      %1168 = vmatprep.subr.mxu0 0.0
      %1169 = vmatpush1.msra.mxu0 0.0
      %1170 = vmatprep.subr.mxu0 0.0
      %1171 = vmatpush1.msra.mxu0 0.0
      %1172 = vmatprep.subr.mxu0 0.0
      %1173 = vmatpush1.msra.mxu0 0.0
      %1174 = vmatprep.subr.mxu0 0.0
      %1175 = vmatpush1.msra.mxu0 0.0
      %1176 = vmatprep.subr.mxu0 0.0
      %1177 = vmatpush1.msra.mxu0 0.0
      %1178 = vmatprep.subr.mxu0 0.0
      %1179 = vmatpush1.msra.mxu0 0.0
      %1180 = vmatprep.subr.mxu0 0.0
      %1181 = vmatpush1.msra.mxu0 0.0
      %1182 = vmatprep.subr.mxu0 0.0
      %1183 = vmatpush1.msra.mxu0 0.0
      %1184 = vmatprep.subr.mxu0 0.0
      %1185 = vmatpush1.msra.mxu0 0.0
      %1186 = vmatprep.subr.mxu0 0.0
      %1187 = vmatpush1.msra.mxu0 0.0
      %1188 = vmatprep.subr.mxu0 0.0
      %1189 = vmatpush1.msra.mxu0 0.0
      %1190 = vmatprep.subr.mxu0 0.0
      %1191 = vmatpush1.msra.mxu0 0.0
      %1192 = vmatprep.subr.mxu0 0.0
      %1193 = vmatpush1.msra.mxu0 0.0
      %1194 = vmatprep.subr.mxu0 0.0
      %1195 = vmatpush1.msra.mxu0 0.0
      %1196 = vmatprep.subr.mxu0 0.0
      %1197 = vmatpush1.msra.mxu0 0.0
      %1198 = vmatprep.subr.mxu0 0.0
      %1199 = vmatpush1.msra.mxu0 0.0
      %1200 = vmatprep.subr.mxu0 0.0
      %1201 = vmatpush1.msra.mxu0 0.0
      %1202 = vmatprep.subr.mxu0 0.0
      %1203 = vmatpush1.msra.mxu0 0.0
      %1204 = vmatprep.subr.mxu0 0.0
      %1205 = vmatpush1.msra.mxu0 0.0
      %1206 = vmatprep.subr.mxu0 0.0
      %1207 = vmatpush1.msra.mxu0 0.0
      %1208 = vmatprep.subr.mxu0 0.0
      %1209 = vmatpush1.msra.mxu0 0.0
      %1210 = vmatprep.subr.mxu0 0.0
      %1211 = vmatpush1.msra.mxu0 0.0
      %1212 = vmatprep.subr.mxu0 0.0
      %1213 = vmatpush1.msra.mxu0 0.0
      %1214 = vmatprep.subr.mxu0 0.0
      %1215 = vmatpush1.msra.mxu0 0.0
      %1216 = vmatprep.mubr.f32.mxu0 0.0
      %1217 = vmatmul.mubr.f32.gmra.mrb[0].mxu0 %v1150
      %v1218 = vpop.f32.mrb[0].mxu0
      %v1219 = vadd.f32 %v1146, %v1218
      %v1220 = vpop.f32.mrb[0].mxu0
      %v1221 = vadd.f32 %v1146, %v1220
      %1222 = vdwg.mxu0
      %v1223 = vadd.f32 %v1141, %v1219
      %v1224 = vadd.f32 %v1142, %v1221
      %v1225 = vld [vmem:[%s7] sm:$0xff]
      %vm1226 = vcmp.ge.f32.partialorder %v1223, 0.0
      %vm1227 = vcmp.ge.f32.partialorder %v1224, 0.0
      %v1228 = vmul.f32 %v1223, 0.3
      %v1229 = vmul.f32 %v1224, 0.3
      %v1230 = vsel %vm1226, %v1223, %v1228
      %v1231 = vsel %vm1227, %v1224, %v1229
      %1232 = vst.msk [vmem:[#allocation2] sm:$0xff] %vm434, %v1230
      %1235 = vrot.lane.b32.xlu0 %v1230, 32
      %v1236 = vpop.permute.xlu0 %1235
      %1237 = vrot.lane.b32.xlu0 %v1231, 32
      %v1238 = vpop.permute.xlu0 %1237
      %v1239 = vsel %vm442, %v1236, %v1238
      %1243 = vst.msk [vmem:[#allocation2] sm:$0xff] %vm447, %v1236
      %1244 = vst [vmem:[#allocation2 + $0x8] sm:$0xff] %v1239
      %1245 = vst.msk [vmem:[#allocation2 + $0x10] sm:$0xff] %vm442, %v1238
      %1246 = vrot.lane.b32.xlu0 %v1231, 64
      %v1247 = vpop.permute.xlu0 %1246
      %1249 = vst.msk [vmem:[#allocation2 + $0x10] sm:$0xff] %vm454, %v1247
      %v1250 = vld [vmem:[#allocation2] sm:$0xff]
      %v1251 = vld [vmem:[#allocation2 + $0x8] sm:$0xff]
      %v1252 = vld [vmem:[#allocation2 + $0x10] sm:$0xff]
      %1256 = vrot.lane.b32.xlu0 %v1250, 97
      %v1257 = vpop.permute.xlu0 %1256
      %1258 = vrot.lane.b32.xlu0 %v1251, 97
      %v1259 = vpop.permute.xlu0 %1258
      %1260 = vrot.lane.b32.xlu0 %v1252, 97
      %v1261 = vpop.permute.xlu0 %1260
      %v1262 = vsel %vm472, %v1257, %v1259
      %v1263 = vsel %vm472, %v1259, %v1261
      %1266 = vrot.lane.b32.xlu0 %v1250, 113
      %v1267 = vpop.permute.xlu0 %1266
      %1268 = vrot.lane.b32.xlu0 %v1251, 113
      %v1269 = vpop.permute.xlu0 %1268
      %1270 = vrot.lane.b32.xlu0 %v1252, 113
      %v1271 = vpop.permute.xlu0 %1270
      %v1272 = vsel %vm483, %v1267, %v1269
      %v1273 = vsel %vm483, %v1269, %v1271
      %v1276 = vsel %vm456, %v1262, %v1272
      %v1277 = vsel %vm457, %v1263, %v1273
      %1278 = vrot.lane.b32.xlu0 %v1250, 127
      %v1279 = vpop.permute.xlu0 %1278
      %1280 = vrot.lane.b32.xlu0 %v1251, 127
      %v1281 = vpop.permute.xlu0 %1280
      %1282 = vrot.lane.b32.xlu0 %v1252, 127
      %v1283 = vpop.permute.xlu0 %1282
      %v1284 = vsel %vm496, %v1279, %v1281
      %v1285 = vsel %vm496, %v1281, %v1283
      %1288 = vrot.lane.b32.xlu0 %v1250, 111
      %v1289 = vpop.permute.xlu0 %1288
      %1290 = vrot.lane.b32.xlu0 %v1251, 111
      %v1291 = vpop.permute.xlu0 %1290
      %1292 = vrot.lane.b32.xlu0 %v1252, 111
      %v1293 = vpop.permute.xlu0 %1292
      %v1294 = vsel %vm507, %v1289, %v1291
      %v1295 = vsel %vm507, %v1291, %v1293
      %v1298 = vsel %vm458, %v1284, %v1294
      %v1299 = vsel %vm459, %v1285, %v1295
      %1300 = vst [vmem:[#allocation3] sm:$0xff] %v1276
      %1301 = vst [vmem:[#allocation3 + $0x8] sm:$0xff] %v1277
      %1302 = vrot.lane.b32.xlu0 %v1250, 112
      %v1303 = vpop.permute.xlu0 %1302
      %1304 = vrot.lane.b32.xlu0 %v1251, 112
      %v1305 = vpop.permute.xlu0 %1304
      %1306 = vrot.lane.b32.xlu0 %v1252, 112
      %v1307 = vpop.permute.xlu0 %1306
      %v1308 = vsel %vm522, %v1303, %v1305
      %v1309 = vsel %vm522, %v1305, %v1307
      %1312 = vst [vmem:[#allocation3 + $0x10] sm:$0xff] %v1308
      %1313 = vst [vmem:[#allocation3 + $0x18] sm:$0xff] %v1309
      %1314 = vst [vmem:[#allocation3 + $0x20] sm:$0xff] %v1298
      %1315 = vst [vmem:[#allocation3 + $0x28] sm:$0xff] %v1299
      %v1316 = vld [vmem:[#allocation2] sm:$0xff]
      %v1317 = vld [vmem:[#allocation2 + $0x8] sm:$0xff]
      %v1318 = vld [vmem:[#allocation2 + $0x10] sm:$0xff]
      %1322 = vrot.lane.b32.xlu0 %v1316, 81
      %v1323 = vpop.permute.xlu0 %1322
      %1324 = vrot.lane.b32.xlu0 %v1317, 81
      %v1325 = vpop.permute.xlu0 %1324
      %1326 = vrot.lane.b32.xlu0 %v1318, 81
      %v1327 = vpop.permute.xlu0 %1326
      %v1328 = vsel %vm543, %v1323, %v1325
      %v1329 = vsel %vm543, %v1325, %v1327
      %1332 = vrot.lane.b32.xlu0 %v1316, 97
      %v1333 = vpop.permute.xlu0 %1332
      %1334 = vrot.lane.b32.xlu0 %v1317, 97
      %v1335 = vpop.permute.xlu0 %1334
      %1336 = vrot.lane.b32.xlu0 %v1318, 97
      %v1337 = vpop.permute.xlu0 %1336
      %v1338 = vsel %vm472, %v1333, %v1335
      %v1339 = vsel %vm472, %v1335, %v1337
      %v1342 = vsel %vm456, %v1328, %v1338
      %v1343 = vsel %vm457, %v1329, %v1339
      %1344 = vrot.lane.b32.xlu0 %v1316, 111
      %v1345 = vpop.permute.xlu0 %1344
      %1346 = vrot.lane.b32.xlu0 %v1317, 111
      %v1347 = vpop.permute.xlu0 %1346
      %1348 = vrot.lane.b32.xlu0 %v1318, 111
      %v1349 = vpop.permute.xlu0 %1348
      %v1350 = vsel %vm507, %v1345, %v1347
      %v1351 = vsel %vm507, %v1347, %v1349
      %1354 = vrot.lane.b32.xlu0 %v1316, 95
      %v1355 = vpop.permute.xlu0 %1354
      %1356 = vrot.lane.b32.xlu0 %v1317, 95
      %v1357 = vpop.permute.xlu0 %1356
      %1358 = vrot.lane.b32.xlu0 %v1318, 95
      %v1359 = vpop.permute.xlu0 %1358
      %v1360 = vsel %vm576, %v1355, %v1357
      %v1361 = vsel %vm576, %v1357, %v1359
      %v1364 = vsel %vm458, %v1350, %v1360
      %v1365 = vsel %vm459, %v1351, %v1361
      %1366 = vst [vmem:[#allocation3 + $0x30] sm:$0xff] %v1342
      %1367 = vst [vmem:[#allocation3 + $0x38] sm:$0xff] %v1343
      %1368 = vrot.lane.b32.xlu0 %v1316, 96
      %v1369 = vpop.permute.xlu0 %1368
      %1370 = vrot.lane.b32.xlu0 %v1317, 96
      %v1371 = vpop.permute.xlu0 %1370
      %1372 = vrot.lane.b32.xlu0 %v1318, 96
      %v1373 = vpop.permute.xlu0 %1372
      %v1374 = vsel %vm591, %v1369, %v1371
      %v1375 = vsel %vm591, %v1371, %v1373
      %1378 = vst [vmem:[#allocation3 + $0x40] sm:$0xff] %v1374
      %1379 = vst [vmem:[#allocation3 + $0x48] sm:$0xff] %v1375
      %1380 = vst [vmem:[#allocation3 + $0x50] sm:$0xff] %v1364
      %1381 = vst [vmem:[#allocation3 + $0x58] sm:$0xff] %v1365
      %v1382 = vld [vmem:[#allocation2] sm:$0xff]
      %v1383 = vld [vmem:[#allocation2 + $0x8] sm:$0xff]
      %v1384 = vld [vmem:[#allocation2 + $0x10] sm:$0xff]
      %1388 = vrot.lane.b32.xlu0 %v1382, 65
      %v1389 = vpop.permute.xlu0 %1388
      %1390 = vrot.lane.b32.xlu0 %v1383, 65
      %v1391 = vpop.permute.xlu0 %1390
      %1392 = vrot.lane.b32.xlu0 %v1384, 65
      %v1393 = vpop.permute.xlu0 %1392
      %v1394 = vsel %vm612, %v1389, %v1391
      %v1395 = vsel %vm612, %v1391, %v1393
      %1398 = vrot.lane.b32.xlu0 %v1382, 81
      %v1399 = vpop.permute.xlu0 %1398
      %1400 = vrot.lane.b32.xlu0 %v1383, 81
      %v1401 = vpop.permute.xlu0 %1400
      %1402 = vrot.lane.b32.xlu0 %v1384, 81
      %v1403 = vpop.permute.xlu0 %1402
      %v1404 = vsel %vm543, %v1399, %v1401
      %v1405 = vsel %vm543, %v1401, %v1403
      %v1408 = vsel %vm456, %v1394, %v1404
      %v1409 = vsel %vm457, %v1395, %v1405
      %1410 = vrot.lane.b32.xlu0 %v1382, 95
      %v1411 = vpop.permute.xlu0 %1410
      %1412 = vrot.lane.b32.xlu0 %v1383, 95
      %v1413 = vpop.permute.xlu0 %1412
      %1414 = vrot.lane.b32.xlu0 %v1384, 95
      %v1415 = vpop.permute.xlu0 %1414
      %v1416 = vsel %vm576, %v1411, %v1413
      %v1417 = vsel %vm576, %v1413, %v1415
      %1420 = vrot.lane.b32.xlu0 %v1382, 79
      %v1421 = vpop.permute.xlu0 %1420
      %1422 = vrot.lane.b32.xlu0 %v1383, 79
      %v1423 = vpop.permute.xlu0 %1422
      %1424 = vrot.lane.b32.xlu0 %v1384, 79
      %v1425 = vpop.permute.xlu0 %1424
      %v1426 = vsel %vm645, %v1421, %v1423
      %v1427 = vsel %vm645, %v1423, %v1425
      %v1430 = vsel %vm458, %v1416, %v1426
      %v1431 = vsel %vm459, %v1417, %v1427
      %1432 = vst [vmem:[#allocation3 + $0x60] sm:$0xff] %v1408
      %1433 = vst [vmem:[#allocation3 + $0x68] sm:$0xff] %v1409
      %1434 = vrot.lane.b32.xlu0 %v1382, 80
      %v1435 = vpop.permute.xlu0 %1434
      %1436 = vrot.lane.b32.xlu0 %v1383, 80
      %v1437 = vpop.permute.xlu0 %1436
      %1438 = vrot.lane.b32.xlu0 %v1384, 80
      %v1439 = vpop.permute.xlu0 %1438
      %v1440 = vsel %vm660, %v1435, %v1437
      %v1441 = vsel %vm660, %v1437, %v1439
      %1444 = vst [vmem:[#allocation3 + $0x70] sm:$0xff] %v1440
      %1445 = vst [vmem:[#allocation3 + $0x78] sm:$0xff] %v1441
      %1446 = vst [vmem:[#allocation3 + $0x80] sm:$0xff] %v1430
      %1447 = vst [vmem:[#allocation3 + $0x88] sm:$0xff] %v1431
      %v1448 = vld [vmem:[%s5] sm:$0xff]
      %v1449 = vld [vmem:[#allocation3] sm:$0xff]
      %v1450 = vld [vmem:[#allocation3 + $0x8] sm:$0xff]
      %v1451 = vld [vmem:[#allocation3 + $0x10] sm:$0xff]
      %v1452 = vld [vmem:[#allocation3 + $0x18] sm:$0xff]
      %v1453 = vld [vmem:[#allocation3 + $0x20] sm:$0xff]
      %v1454 = vld [vmem:[#allocation3 + $0x28] sm:$0xff]
      %v1455 = vld [vmem:[#allocation3 + $0x30] sm:$0xff]
      %v1456 = vld [vmem:[#allocation3 + $0x38] sm:$0xff]
      %v1457 = vld [vmem:[#allocation3 + $0x40] sm:$0xff]
      %v1458 = vld [vmem:[#allocation3 + $0x48] sm:$0xff]
      %v1459 = vld [vmem:[#allocation3 + $0x50] sm:$0xff]
      %v1460 = vld [vmem:[#allocation3 + $0x58] sm:$0xff]
      %v1461 = vld [vmem:[#allocation3 + $0x60] sm:$0xff]
      %v1462 = vld [vmem:[#allocation3 + $0x68] sm:$0xff]
      %v1463 = vld [vmem:[#allocation3 + $0x70] sm:$0xff]
      %v1464 = vld [vmem:[#allocation3 + $0x78] sm:$0xff]
      %v1465 = vld [vmem:[#allocation3 + $0x80] sm:$0xff]
      %v1466 = vld [vmem:[#allocation3 + $0x88] sm:$0xff]
      %1468 = vset.pattern.permute.xlu0 0
      %1469 = vperm.xlu0 %1468, %v1225
      %v1470 = vpop.permute.xlu0 %1469
      %v1473 = vsel %vm693, %v1448, 0
      %1475 = vmatprep.subr.mxu0 %v1450
      %1476 = vmatpush1.msra.mxu0 %v1449
      %1477 = vmatprep.subr.mxu0 %v1452
      %1478 = vmatpush1.msra.mxu0 %v1451
      %1479 = vmatprep.subr.mxu0 %v1454
      %1480 = vmatpush1.msra.mxu0 %v1453
      %1481 = vmatprep.subr.mxu0 %v1456
      %1482 = vmatpush1.msra.mxu0 %v1455
      %1483 = vmatprep.subr.mxu0 %v1458
      %1484 = vmatpush1.msra.mxu0 %v1457
      %1485 = vmatprep.subr.mxu0 %v1460
      %1486 = vmatpush1.msra.mxu0 %v1459
      %1487 = vmatprep.subr.mxu0 %v1462
      %1488 = vmatpush1.msra.mxu0 %v1461
      %1489 = vmatprep.subr.mxu0 %v1464
      %1490 = vmatpush1.msra.mxu0 %v1463
      %1491 = vmatprep.subr.mxu0 %v1466
      %1492 = vmatpush1.msra.mxu0 %v1465
      %1493 = vmatprep.subr.mxu0 0.0
      %1494 = vmatpush1.msra.mxu0 0.0
      %1495 = vmatprep.subr.mxu0 0.0
      %1496 = vmatpush1.msra.mxu0 0.0
      %1497 = vmatprep.subr.mxu0 0.0
      %1498 = vmatpush1.msra.mxu0 0.0
      %1499 = vmatprep.subr.mxu0 0.0
      %1500 = vmatpush1.msra.mxu0 0.0
      %1501 = vmatprep.subr.mxu0 0.0
      %1502 = vmatpush1.msra.mxu0 0.0
      %1503 = vmatprep.subr.mxu0 0.0
      %1504 = vmatpush1.msra.mxu0 0.0
      %1505 = vmatprep.subr.mxu0 0.0
      %1506 = vmatpush1.msra.mxu0 0.0
      %1507 = vmatprep.subr.mxu0 0.0
      %1508 = vmatpush1.msra.mxu0 0.0
      %1509 = vmatprep.subr.mxu0 0.0
      %1510 = vmatpush1.msra.mxu0 0.0
      %1511 = vmatprep.subr.mxu0 0.0
      %1512 = vmatpush1.msra.mxu0 0.0
      %1513 = vmatprep.subr.mxu0 0.0
      %1514 = vmatpush1.msra.mxu0 0.0
      %1515 = vmatprep.subr.mxu0 0.0
      %1516 = vmatpush1.msra.mxu0 0.0
      %1517 = vmatprep.subr.mxu0 0.0
      %1518 = vmatpush1.msra.mxu0 0.0
      %1519 = vmatprep.subr.mxu0 0.0
      %1520 = vmatpush1.msra.mxu0 0.0
      %1521 = vmatprep.subr.mxu0 0.0
      %1522 = vmatpush1.msra.mxu0 0.0
      %1523 = vmatprep.subr.mxu0 0.0
      %1524 = vmatpush1.msra.mxu0 0.0
      %1525 = vmatprep.subr.mxu0 0.0
      %1526 = vmatpush1.msra.mxu0 0.0
      %1527 = vmatprep.subr.mxu0 0.0
      %1528 = vmatpush1.msra.mxu0 0.0
      %1529 = vmatprep.subr.mxu0 0.0
      %1530 = vmatpush1.msra.mxu0 0.0
      %1531 = vmatprep.subr.mxu0 0.0
      %1532 = vmatpush1.msra.mxu0 0.0
      %1533 = vmatprep.subr.mxu0 0.0
      %1534 = vmatpush1.msra.mxu0 0.0
      %1535 = vmatprep.subr.mxu0 0.0
      %1536 = vmatpush1.msra.mxu0 0.0
      %1537 = vmatprep.subr.mxu0 0.0
      %1538 = vmatpush1.msra.mxu0 0.0
      %1539 = vmatprep.mubr.f32.mxu0 0.0
      %1540 = vmatmul.mubr.f32.gmra.mrb[0].mxu0 %v1473
      %v1541 = vpop.f32.mrb[0].mxu0
      %v1542 = vadd.f32 %v1470, %v1541
      %v1543 = vpop.f32.mrb[0].mxu0
      %v1544 = vadd.f32 %v1470, %v1543
      %1545 = vdwg.mxu0
      %v1546 = vadd.f32 %v1542, %v1544
      %1547 = vadd.xlane.f32.xlu0 %v1546
      %v1548 = vpop.xlane.xlu0 %1547
      %v1549 = vmul.f32 %v1548, 0.00390625
      %v1550 = vsub.f32 %v1542, %v1549
      %v1551 = vsub.f32 %v1544, %v1549
      %v1552 = vmul.f32 %v1550, %v1550
      %v1553 = vmul.f32 %v1551, %v1551
      %v1554 = vadd.f32 %v1552, %v1553
      %1555 = vadd.xlane.f32.xlu0 %v1554
      %v1556 = vpop.xlane.xlu0 %1555
      %v1557 = vmul.f32 %v1556, 0.00390625
      %v1558 = vadd.f32 %v1557, 1e-05
      %v1559 = vrsqrt.pop %v1558
      %v1560 = vmul.f32 %v1550, %v1559
      %v1561 = vmul.f32 %v1551, %v1559
      %1562 = vset.pattern.permute.xlu0 1
      %1563 = vperm.xlu0 %1562, %v1225
      %v1564 = vpop.permute.xlu0 %1563
      %v1566 = vmul.f32 %v1560, %v1564
      %v1567 = vmul.f32 %v1561, %v1564
      %1568 = vset.pattern.permute.xlu0 2
      %1569 = vperm.xlu0 %1568, %v1225
      %v1570 = vpop.permute.xlu0 %1569
      %v1572 = vadd.f32 %v1566, %v1570
      %v1573 = vadd.f32 %v1567, %v1570
      %vm1574 = vcmp.ge.f32.partialorder %v1572, 0.0
      %vm1575 = vcmp.ge.f32.partialorder %v1573, 0.0
      %v1576 = vmul.f32 %v1572, 0.3
      %v1577 = vmul.f32 %v1573, 0.3
      %v1578 = vsel %vm1574, %v1572, %v1576
      %v1579 = vsel %vm1575, %v1573, %v1577
      %1580 = vst.msk [vmem:[#allocation2] sm:$0xff] %vm434, %v1578
      %1583 = vrot.lane.b32.xlu0 %v1578, 32
      %v1584 = vpop.permute.xlu0 %1583
      %1585 = vrot.lane.b32.xlu0 %v1579, 32
      %v1586 = vpop.permute.xlu0 %1585
      %v1587 = vsel %vm442, %v1584, %v1586
      %1591 = vst.msk [vmem:[#allocation2] sm:$0xff] %vm447, %v1584
      %1592 = vst [vmem:[#allocation2 + $0x8] sm:$0xff] %v1587
      %1593 = vst.msk [vmem:[#allocation2 + $0x10] sm:$0xff] %vm442, %v1586
      %1594 = vrot.lane.b32.xlu0 %v1579, 64
      %v1595 = vpop.permute.xlu0 %1594
      %1597 = vst.msk [vmem:[#allocation2 + $0x10] sm:$0xff] %vm454, %v1595
      %v1598 = vld [vmem:[#allocation2] sm:$0xff]
      %v1599 = vld [vmem:[#allocation2 + $0x8] sm:$0xff]
      %v1600 = vld [vmem:[#allocation2 + $0x10] sm:$0xff]
      %1604 = vrot.lane.b32.xlu0 %v1598, 97
      %v1605 = vpop.permute.xlu0 %1604
      %1606 = vrot.lane.b32.xlu0 %v1599, 97
      %v1607 = vpop.permute.xlu0 %1606
      %1608 = vrot.lane.b32.xlu0 %v1600, 97
      %v1609 = vpop.permute.xlu0 %1608
      %v1610 = vsel %vm472, %v1605, %v1607
      %v1611 = vsel %vm472, %v1607, %v1609
      %1614 = vrot.lane.b32.xlu0 %v1598, 113
      %v1615 = vpop.permute.xlu0 %1614
      %1616 = vrot.lane.b32.xlu0 %v1599, 113
      %v1617 = vpop.permute.xlu0 %1616
      %1618 = vrot.lane.b32.xlu0 %v1600, 113
      %v1619 = vpop.permute.xlu0 %1618
      %v1620 = vsel %vm483, %v1615, %v1617
      %v1621 = vsel %vm483, %v1617, %v1619
      %v1624 = vsel %vm456, %v1610, %v1620
      %v1625 = vsel %vm457, %v1611, %v1621
      %1626 = vrot.lane.b32.xlu0 %v1598, 127
      %v1627 = vpop.permute.xlu0 %1626
      %1628 = vrot.lane.b32.xlu0 %v1599, 127
      %v1629 = vpop.permute.xlu0 %1628
      %1630 = vrot.lane.b32.xlu0 %v1600, 127
      %v1631 = vpop.permute.xlu0 %1630
      %v1632 = vsel %vm496, %v1627, %v1629
      %v1633 = vsel %vm496, %v1629, %v1631
      %1636 = vrot.lane.b32.xlu0 %v1598, 111
      %v1637 = vpop.permute.xlu0 %1636
      %1638 = vrot.lane.b32.xlu0 %v1599, 111
      %v1639 = vpop.permute.xlu0 %1638
      %1640 = vrot.lane.b32.xlu0 %v1600, 111
      %v1641 = vpop.permute.xlu0 %1640
      %v1642 = vsel %vm507, %v1637, %v1639
      %v1643 = vsel %vm507, %v1639, %v1641
      %v1646 = vsel %vm458, %v1632, %v1642
      %v1647 = vsel %vm459, %v1633, %v1643
      %1648 = vst [vmem:[#allocation3] sm:$0xff] %v1624
      %1649 = vst [vmem:[#allocation3 + $0x8] sm:$0xff] %v1625
      %1650 = vrot.lane.b32.xlu0 %v1598, 112
      %v1651 = vpop.permute.xlu0 %1650
      %1652 = vrot.lane.b32.xlu0 %v1599, 112
      %v1653 = vpop.permute.xlu0 %1652
      %1654 = vrot.lane.b32.xlu0 %v1600, 112
      %v1655 = vpop.permute.xlu0 %1654
      %v1656 = vsel %vm522, %v1651, %v1653
      %v1657 = vsel %vm522, %v1653, %v1655
      %1660 = vst [vmem:[#allocation3 + $0x10] sm:$0xff] %v1656
      %1661 = vst [vmem:[#allocation3 + $0x18] sm:$0xff] %v1657
      %1662 = vst [vmem:[#allocation3 + $0x20] sm:$0xff] %v1646
      %1663 = vst [vmem:[#allocation3 + $0x28] sm:$0xff] %v1647
      %v1664 = vld [vmem:[#allocation2] sm:$0xff]
      %v1665 = vld [vmem:[#allocation2 + $0x8] sm:$0xff]
      %v1666 = vld [vmem:[#allocation2 + $0x10] sm:$0xff]
      %1670 = vrot.lane.b32.xlu0 %v1664, 81
      %v1671 = vpop.permute.xlu0 %1670
      %1672 = vrot.lane.b32.xlu0 %v1665, 81
      %v1673 = vpop.permute.xlu0 %1672
      %1674 = vrot.lane.b32.xlu0 %v1666, 81
      %v1675 = vpop.permute.xlu0 %1674
      %v1676 = vsel %vm543, %v1671, %v1673
      %v1677 = vsel %vm543, %v1673, %v1675
      %1680 = vrot.lane.b32.xlu0 %v1664, 97
      %v1681 = vpop.permute.xlu0 %1680
      %1682 = vrot.lane.b32.xlu0 %v1665, 97
      %v1683 = vpop.permute.xlu0 %1682
      %1684 = vrot.lane.b32.xlu0 %v1666, 97
      %v1685 = vpop.permute.xlu0 %1684
      %v1686 = vsel %vm472, %v1681, %v1683
      %v1687 = vsel %vm472, %v1683, %v1685
      %v1690 = vsel %vm456, %v1676, %v1686
      %v1691 = vsel %vm457, %v1677, %v1687
      %1692 = vrot.lane.b32.xlu0 %v1664, 111
      %v1693 = vpop.permute.xlu0 %1692
      %1694 = vrot.lane.b32.xlu0 %v1665, 111
      %v1695 = vpop.permute.xlu0 %1694
      %1696 = vrot.lane.b32.xlu0 %v1666, 111
      %v1697 = vpop.permute.xlu0 %1696
      %v1698 = vsel %vm507, %v1693, %v1695
      %v1699 = vsel %vm507, %v1695, %v1697
      %1702 = vrot.lane.b32.xlu0 %v1664, 95
      %v1703 = vpop.permute.xlu0 %1702
      %1704 = vrot.lane.b32.xlu0 %v1665, 95
      %v1705 = vpop.permute.xlu0 %1704
      %1706 = vrot.lane.b32.xlu0 %v1666, 95
      %v1707 = vpop.permute.xlu0 %1706
      %v1708 = vsel %vm576, %v1703, %v1705
      %v1709 = vsel %vm576, %v1705, %v1707
      %v1712 = vsel %vm458, %v1698, %v1708
      %v1713 = vsel %vm459, %v1699, %v1709
      %1714 = vst [vmem:[#allocation3 + $0x30] sm:$0xff] %v1690
      %1715 = vst [vmem:[#allocation3 + $0x38] sm:$0xff] %v1691
      %1716 = vrot.lane.b32.xlu0 %v1664, 96
      %v1717 = vpop.permute.xlu0 %1716
      %1718 = vrot.lane.b32.xlu0 %v1665, 96
      %v1719 = vpop.permute.xlu0 %1718
      %1720 = vrot.lane.b32.xlu0 %v1666, 96
      %v1721 = vpop.permute.xlu0 %1720
      %v1722 = vsel %vm591, %v1717, %v1719
      %v1723 = vsel %vm591, %v1719, %v1721
      %1726 = vst [vmem:[#allocation3 + $0x40] sm:$0xff] %v1722
      %1727 = vst [vmem:[#allocation3 + $0x48] sm:$0xff] %v1723
      %1728 = vst [vmem:[#allocation3 + $0x50] sm:$0xff] %v1712
      %1729 = vst [vmem:[#allocation3 + $0x58] sm:$0xff] %v1713
      %v1730 = vld [vmem:[#allocation2] sm:$0xff]
      %v1731 = vld [vmem:[#allocation2 + $0x8] sm:$0xff]
      %v1732 = vld [vmem:[#allocation2 + $0x10] sm:$0xff]
      %1736 = vrot.lane.b32.xlu0 %v1730, 65
      %v1737 = vpop.permute.xlu0 %1736
      %1738 = vrot.lane.b32.xlu0 %v1731, 65
      %v1739 = vpop.permute.xlu0 %1738
      %1740 = vrot.lane.b32.xlu0 %v1732, 65
      %v1741 = vpop.permute.xlu0 %1740
      %v1742 = vsel %vm612, %v1737, %v1739
      %v1743 = vsel %vm612, %v1739, %v1741
      %1746 = vrot.lane.b32.xlu0 %v1730, 81
      %v1747 = vpop.permute.xlu0 %1746
      %1748 = vrot.lane.b32.xlu0 %v1731, 81
      %v1749 = vpop.permute.xlu0 %1748
      %1750 = vrot.lane.b32.xlu0 %v1732, 81
      %v1751 = vpop.permute.xlu0 %1750
      %v1752 = vsel %vm543, %v1747, %v1749
      %v1753 = vsel %vm543, %v1749, %v1751
      %v1756 = vsel %vm456, %v1742, %v1752
      %v1757 = vsel %vm457, %v1743, %v1753
      %1758 = vrot.lane.b32.xlu0 %v1730, 95
      %v1759 = vpop.permute.xlu0 %1758
      %1760 = vrot.lane.b32.xlu0 %v1731, 95
      %v1761 = vpop.permute.xlu0 %1760
      %1762 = vrot.lane.b32.xlu0 %v1732, 95
      %v1763 = vpop.permute.xlu0 %1762
      %v1764 = vsel %vm576, %v1759, %v1761
      %v1765 = vsel %vm576, %v1761, %v1763
      %1768 = vrot.lane.b32.xlu0 %v1730, 79
      %v1769 = vpop.permute.xlu0 %1768
      %1770 = vrot.lane.b32.xlu0 %v1731, 79
      %v1771 = vpop.permute.xlu0 %1770
      %1772 = vrot.lane.b32.xlu0 %v1732, 79
      %v1773 = vpop.permute.xlu0 %1772
      %v1774 = vsel %vm645, %v1769, %v1771
      %v1775 = vsel %vm645, %v1771, %v1773
      %v1778 = vsel %vm458, %v1764, %v1774
      %v1779 = vsel %vm459, %v1765, %v1775
      %1780 = vst [vmem:[#allocation3 + $0x60] sm:$0xff] %v1756
      %1781 = vst [vmem:[#allocation3 + $0x68] sm:$0xff] %v1757
      %1782 = vrot.lane.b32.xlu0 %v1730, 80
      %v1783 = vpop.permute.xlu0 %1782
      %1784 = vrot.lane.b32.xlu0 %v1731, 80
      %v1785 = vpop.permute.xlu0 %1784
      %1786 = vrot.lane.b32.xlu0 %v1732, 80
      %v1787 = vpop.permute.xlu0 %1786
      %v1788 = vsel %vm660, %v1783, %v1785
      %v1789 = vsel %vm660, %v1785, %v1787
      %1792 = vst [vmem:[#allocation3 + $0x70] sm:$0xff] %v1788
      %1793 = vst [vmem:[#allocation3 + $0x78] sm:$0xff] %v1789
      %1794 = vst [vmem:[#allocation3 + $0x80] sm:$0xff] %v1778
      %1795 = vst [vmem:[#allocation3 + $0x88] sm:$0xff] %v1779
      %v1796 = vld [vmem:[%s6] sm:$0xff]
      %v1797 = vld [vmem:[#allocation3] sm:$0xff]
      %v1798 = vld [vmem:[#allocation3 + $0x8] sm:$0xff]
      %v1799 = vld [vmem:[#allocation3 + $0x10] sm:$0xff]
      %v1800 = vld [vmem:[#allocation3 + $0x18] sm:$0xff]
      %v1801 = vld [vmem:[#allocation3 + $0x20] sm:$0xff]
      %v1802 = vld [vmem:[#allocation3 + $0x28] sm:$0xff]
      %v1803 = vld [vmem:[#allocation3 + $0x30] sm:$0xff]
      %v1804 = vld [vmem:[#allocation3 + $0x38] sm:$0xff]
      %v1805 = vld [vmem:[#allocation3 + $0x40] sm:$0xff]
      %v1806 = vld [vmem:[#allocation3 + $0x48] sm:$0xff]
      %v1807 = vld [vmem:[#allocation3 + $0x50] sm:$0xff]
      %v1808 = vld [vmem:[#allocation3 + $0x58] sm:$0xff]
      %v1809 = vld [vmem:[#allocation3 + $0x60] sm:$0xff]
      %v1810 = vld [vmem:[#allocation3 + $0x68] sm:$0xff]
      %v1811 = vld [vmem:[#allocation3 + $0x70] sm:$0xff]
      %v1812 = vld [vmem:[#allocation3 + $0x78] sm:$0xff]
      %v1813 = vld [vmem:[#allocation3 + $0x80] sm:$0xff]
      %v1814 = vld [vmem:[#allocation3 + $0x88] sm:$0xff]
      %1815 = vset.pattern.permute.xlu0 3
      %1816 = vperm.xlu0 %1815, %v1225
      %v1817 = vpop.permute.xlu0 %1816
      %v1820 = vsel %vm693, %v1796, 0
      %1822 = vmatprep.subr.mxu0 %v1798
      %1823 = vmatpush1.msra.mxu0 %v1797
      %1824 = vmatprep.subr.mxu0 %v1800
      %1825 = vmatpush1.msra.mxu0 %v1799
      %1826 = vmatprep.subr.mxu0 %v1802
      %1827 = vmatpush1.msra.mxu0 %v1801
      %1828 = vmatprep.subr.mxu0 %v1804
      %1829 = vmatpush1.msra.mxu0 %v1803
      %1830 = vmatprep.subr.mxu0 %v1806
      %1831 = vmatpush1.msra.mxu0 %v1805
      %1832 = vmatprep.subr.mxu0 %v1808
      %1833 = vmatpush1.msra.mxu0 %v1807
      %1834 = vmatprep.subr.mxu0 %v1810
      %1835 = vmatpush1.msra.mxu0 %v1809
      %1836 = vmatprep.subr.mxu0 %v1812
      %1837 = vmatpush1.msra.mxu0 %v1811
      %1838 = vmatprep.subr.mxu0 %v1814
      %1839 = vmatpush1.msra.mxu0 %v1813
      %1840 = vmatprep.subr.mxu0 0.0
      %1841 = vmatpush1.msra.mxu0 0.0
      %1842 = vmatprep.subr.mxu0 0.0
      %1843 = vmatpush1.msra.mxu0 0.0
      %1844 = vmatprep.subr.mxu0 0.0
      %1845 = vmatpush1.msra.mxu0 0.0
      %1846 = vmatprep.subr.mxu0 0.0
      %1847 = vmatpush1.msra.mxu0 0.0
      %1848 = vmatprep.subr.mxu0 0.0
      %1849 = vmatpush1.msra.mxu0 0.0
      %1850 = vmatprep.subr.mxu0 0.0
      %1851 = vmatpush1.msra.mxu0 0.0
      %1852 = vmatprep.subr.mxu0 0.0
      %1853 = vmatpush1.msra.mxu0 0.0
      %1854 = vmatprep.subr.mxu0 0.0
      %1855 = vmatpush1.msra.mxu0 0.0
      %1856 = vmatprep.subr.mxu0 0.0
      %1857 = vmatpush1.msra.mxu0 0.0
      %1858 = vmatprep.subr.mxu0 0.0
      %1859 = vmatpush1.msra.mxu0 0.0
      %1860 = vmatprep.subr.mxu0 0.0
      %1861 = vmatpush1.msra.mxu0 0.0
      %1862 = vmatprep.subr.mxu0 0.0
      %1863 = vmatpush1.msra.mxu0 0.0
      %1864 = vmatprep.subr.mxu0 0.0
      %1865 = vmatpush1.msra.mxu0 0.0
      %1866 = vmatprep.subr.mxu0 0.0
      %1867 = vmatpush1.msra.mxu0 0.0
      %1868 = vmatprep.subr.mxu0 0.0
      %1869 = vmatpush1.msra.mxu0 0.0
      %1870 = vmatprep.subr.mxu0 0.0
      %1871 = vmatpush1.msra.mxu0 0.0
      %1872 = vmatprep.subr.mxu0 0.0
      %1873 = vmatpush1.msra.mxu0 0.0
      %1874 = vmatprep.subr.mxu0 0.0
      %1875 = vmatpush1.msra.mxu0 0.0
      %1876 = vmatprep.subr.mxu0 0.0
      %1877 = vmatpush1.msra.mxu0 0.0
      %1878 = vmatprep.subr.mxu0 0.0
      %1879 = vmatpush1.msra.mxu0 0.0
      %1880 = vmatprep.subr.mxu0 0.0
      %1881 = vmatpush1.msra.mxu0 0.0
      %1882 = vmatprep.subr.mxu0 0.0
      %1883 = vmatpush1.msra.mxu0 0.0
      %1884 = vmatprep.subr.mxu0 0.0
      %1885 = vmatpush1.msra.mxu0 0.0
      %1886 = vmatprep.mubr.f32.mxu0 0.0
      %1887 = vmatmul.mubr.f32.gmra.mrb[0].mxu0 %v1820
      %v1888 = vpop.f32.mrb[0].mxu0
      %v1889 = vadd.f32 %v1817, %v1888
      %v1890 = vpop.f32.mrb[0].mxu0
      %v1891 = vadd.f32 %v1817, %v1890
      %1892 = vdwg.mxu0
      %v1893 = vadd.f32 %v1889, %v1891
      %1894 = vadd.xlane.f32.xlu0 %v1893
      %v1895 = vpop.xlane.xlu0 %1894
      %v1896 = vmul.f32 %v1895, 0.00390625
      %v1897 = vsub.f32 %v1889, %v1896
      %v1898 = vsub.f32 %v1891, %v1896
      %v1899 = vmul.f32 %v1897, %v1897
      %v1900 = vmul.f32 %v1898, %v1898
      %v1901 = vadd.f32 %v1899, %v1900
      %1902 = vadd.xlane.f32.xlu0 %v1901
      %v1903 = vpop.xlane.xlu0 %1902
      %v1904 = vmul.f32 %v1903, 0.00390625
      %v1905 = vadd.f32 %v1904, 1e-05
      %v1906 = vrsqrt.pop %v1905
      %v1907 = vmul.f32 %v1897, %v1906
      %v1908 = vmul.f32 %v1898, %v1906
      %1909 = vset.pattern.permute.xlu0 4
      %1910 = vperm.xlu0 %1909, %v1225
      %v1911 = vpop.permute.xlu0 %1910
      %v1913 = vmul.f32 %v1907, %v1911
      %v1914 = vmul.f32 %v1908, %v1911
      %1915 = vset.pattern.permute.xlu0 5
      %1916 = vperm.xlu0 %1915, %v1225
      %v1917 = vpop.permute.xlu0 %1916
      %v1919 = vadd.f32 %v1913, %v1917
      %v1920 = vadd.f32 %v1914, %v1917
      %v1921 = vadd.f32 %v1919, %v1223
      %v1922 = vadd.f32 %v1920, %v1224
      %v1923 = vld [vmem:[%s10] sm:$0xff]
      %v1924 = vld [vmem:[%s10 + $0x8] sm:$0xff]
      %vm1925 = vcmp.ge.f32.partialorder %v1921, 0.0
      %vm1926 = vcmp.ge.f32.partialorder %v1922, 0.0
      %v1927 = vmul.f32 %v1921, 0.3
      %v1928 = vmul.f32 %v1922, 0.3
      %v1929 = vsel %vm1925, %v1921, %v1927
      %v1930 = vsel %vm1926, %v1922, %v1928
      %1931 = vst.msk [vmem:[#allocation2] sm:$0xff] %vm434, %v1929
      %1934 = vrot.lane.b32.xlu0 %v1929, 32
      %v1935 = vpop.permute.xlu0 %1934
      %1936 = vrot.lane.b32.xlu0 %v1930, 32
      %v1937 = vpop.permute.xlu0 %1936
      %v1938 = vsel %vm442, %v1935, %v1937
      %1942 = vst.msk [vmem:[#allocation2] sm:$0xff] %vm447, %v1935
      %1943 = vst [vmem:[#allocation2 + $0x8] sm:$0xff] %v1938
      %1944 = vst.msk [vmem:[#allocation2 + $0x10] sm:$0xff] %vm442, %v1937
      %1945 = vrot.lane.b32.xlu0 %v1930, 64
      %v1946 = vpop.permute.xlu0 %1945
      %1948 = vst.msk [vmem:[#allocation2 + $0x10] sm:$0xff] %vm454, %v1946
      %v1949 = vld [vmem:[#allocation2] sm:$0xff]
      %v1950 = vld [vmem:[#allocation2 + $0x8] sm:$0xff]
      %v1951 = vld [vmem:[#allocation2 + $0x10] sm:$0xff]
      %1955 = vrot.lane.b32.xlu0 %v1949, 97
      %v1956 = vpop.permute.xlu0 %1955
      %1957 = vrot.lane.b32.xlu0 %v1950, 97
      %v1958 = vpop.permute.xlu0 %1957
      %1959 = vrot.lane.b32.xlu0 %v1951, 97
      %v1960 = vpop.permute.xlu0 %1959
      %v1961 = vsel %vm472, %v1956, %v1958
      %v1962 = vsel %vm472, %v1958, %v1960
      %1965 = vrot.lane.b32.xlu0 %v1949, 113
      %v1966 = vpop.permute.xlu0 %1965
      %1967 = vrot.lane.b32.xlu0 %v1950, 113
      %v1968 = vpop.permute.xlu0 %1967
      %1969 = vrot.lane.b32.xlu0 %v1951, 113
      %v1970 = vpop.permute.xlu0 %1969
      %v1971 = vsel %vm483, %v1966, %v1968
      %v1972 = vsel %vm483, %v1968, %v1970
      %v1975 = vsel %vm456, %v1961, %v1971
      %v1976 = vsel %vm457, %v1962, %v1972
      %1977 = vrot.lane.b32.xlu0 %v1949, 127
      %v1978 = vpop.permute.xlu0 %1977
      %1979 = vrot.lane.b32.xlu0 %v1950, 127
      %v1980 = vpop.permute.xlu0 %1979
      %1981 = vrot.lane.b32.xlu0 %v1951, 127
      %v1982 = vpop.permute.xlu0 %1981
      %v1983 = vsel %vm496, %v1978, %v1980
      %v1984 = vsel %vm496, %v1980, %v1982
      %1987 = vrot.lane.b32.xlu0 %v1949, 111
      %v1988 = vpop.permute.xlu0 %1987
      %1989 = vrot.lane.b32.xlu0 %v1950, 111
      %v1990 = vpop.permute.xlu0 %1989
      %1991 = vrot.lane.b32.xlu0 %v1951, 111
      %v1992 = vpop.permute.xlu0 %1991
      %v1993 = vsel %vm507, %v1988, %v1990
      %v1994 = vsel %vm507, %v1990, %v1992
      %v1997 = vsel %vm458, %v1983, %v1993
      %v1998 = vsel %vm459, %v1984, %v1994
      %1999 = vst [vmem:[#allocation3] sm:$0xff] %v1975
      %2000 = vst [vmem:[#allocation3 + $0x8] sm:$0xff] %v1976
      %2001 = vrot.lane.b32.xlu0 %v1949, 112
      %v2002 = vpop.permute.xlu0 %2001
      %2003 = vrot.lane.b32.xlu0 %v1950, 112
      %v2004 = vpop.permute.xlu0 %2003
      %2005 = vrot.lane.b32.xlu0 %v1951, 112
      %v2006 = vpop.permute.xlu0 %2005
      %v2007 = vsel %vm522, %v2002, %v2004
      %v2008 = vsel %vm522, %v2004, %v2006
      %2011 = vst [vmem:[#allocation3 + $0x10] sm:$0xff] %v2007
      %2012 = vst [vmem:[#allocation3 + $0x18] sm:$0xff] %v2008
      %2013 = vst [vmem:[#allocation3 + $0x20] sm:$0xff] %v1997
      %2014 = vst [vmem:[#allocation3 + $0x28] sm:$0xff] %v1998
      %v2015 = vld [vmem:[#allocation2] sm:$0xff]
      %v2016 = vld [vmem:[#allocation2 + $0x8] sm:$0xff]
      %v2017 = vld [vmem:[#allocation2 + $0x10] sm:$0xff]
      %2021 = vrot.lane.b32.xlu0 %v2015, 81
      %v2022 = vpop.permute.xlu0 %2021
      %2023 = vrot.lane.b32.xlu0 %v2016, 81
      %v2024 = vpop.permute.xlu0 %2023
      %2025 = vrot.lane.b32.xlu0 %v2017, 81
      %v2026 = vpop.permute.xlu0 %2025
      %v2027 = vsel %vm543, %v2022, %v2024
      %v2028 = vsel %vm543, %v2024, %v2026
      %2031 = vrot.lane.b32.xlu0 %v2015, 97
      %v2032 = vpop.permute.xlu0 %2031
      %2033 = vrot.lane.b32.xlu0 %v2016, 97
      %v2034 = vpop.permute.xlu0 %2033
      %2035 = vrot.lane.b32.xlu0 %v2017, 97
      %v2036 = vpop.permute.xlu0 %2035
      %v2037 = vsel %vm472, %v2032, %v2034
      %v2038 = vsel %vm472, %v2034, %v2036
      %v2041 = vsel %vm456, %v2027, %v2037
      %v2042 = vsel %vm457, %v2028, %v2038
      %2043 = vrot.lane.b32.xlu0 %v2015, 111
      %v2044 = vpop.permute.xlu0 %2043
      %2045 = vrot.lane.b32.xlu0 %v2016, 111
      %v2046 = vpop.permute.xlu0 %2045
      %2047 = vrot.lane.b32.xlu0 %v2017, 111
      %v2048 = vpop.permute.xlu0 %2047
      %v2049 = vsel %vm507, %v2044, %v2046
      %v2050 = vsel %vm507, %v2046, %v2048
      %2053 = vrot.lane.b32.xlu0 %v2015, 95
      %v2054 = vpop.permute.xlu0 %2053
      %2055 = vrot.lane.b32.xlu0 %v2016, 95
      %v2056 = vpop.permute.xlu0 %2055
      %2057 = vrot.lane.b32.xlu0 %v2017, 95
      %v2058 = vpop.permute.xlu0 %2057
      %v2059 = vsel %vm576, %v2054, %v2056
      %v2060 = vsel %vm576, %v2056, %v2058
      %v2063 = vsel %vm458, %v2049, %v2059
      %v2064 = vsel %vm459, %v2050, %v2060
      %2065 = vst [vmem:[#allocation3 + $0x30] sm:$0xff] %v2041
      %2066 = vst [vmem:[#allocation3 + $0x38] sm:$0xff] %v2042
      %2067 = vrot.lane.b32.xlu0 %v2015, 96
      %v2068 = vpop.permute.xlu0 %2067
      %2069 = vrot.lane.b32.xlu0 %v2016, 96
      %v2070 = vpop.permute.xlu0 %2069
      %2071 = vrot.lane.b32.xlu0 %v2017, 96
      %v2072 = vpop.permute.xlu0 %2071
      %v2073 = vsel %vm591, %v2068, %v2070
      %v2074 = vsel %vm591, %v2070, %v2072
      %2077 = vst [vmem:[#allocation3 + $0x40] sm:$0xff] %v2073
      %2078 = vst [vmem:[#allocation3 + $0x48] sm:$0xff] %v2074
      %2079 = vst [vmem:[#allocation3 + $0x50] sm:$0xff] %v2063
      %2080 = vst [vmem:[#allocation3 + $0x58] sm:$0xff] %v2064
      %v2081 = vld [vmem:[#allocation2] sm:$0xff]
      %v2082 = vld [vmem:[#allocation2 + $0x8] sm:$0xff]
      %v2083 = vld [vmem:[#allocation2 + $0x10] sm:$0xff]
      %2087 = vrot.lane.b32.xlu0 %v2081, 65
      %v2088 = vpop.permute.xlu0 %2087
      %2089 = vrot.lane.b32.xlu0 %v2082, 65
      %v2090 = vpop.permute.xlu0 %2089
      %2091 = vrot.lane.b32.xlu0 %v2083, 65
      %v2092 = vpop.permute.xlu0 %2091
      %v2093 = vsel %vm612, %v2088, %v2090
      %v2094 = vsel %vm612, %v2090, %v2092
      %2097 = vrot.lane.b32.xlu0 %v2081, 81
      %v2098 = vpop.permute.xlu0 %2097
      %2099 = vrot.lane.b32.xlu0 %v2082, 81
      %v2100 = vpop.permute.xlu0 %2099
      %2101 = vrot.lane.b32.xlu0 %v2083, 81
      %v2102 = vpop.permute.xlu0 %2101
      %v2103 = vsel %vm543, %v2098, %v2100
      %v2104 = vsel %vm543, %v2100, %v2102
      %v2107 = vsel %vm456, %v2093, %v2103
      %v2108 = vsel %vm457, %v2094, %v2104
      %2109 = vrot.lane.b32.xlu0 %v2081, 95
      %v2110 = vpop.permute.xlu0 %2109
      %2111 = vrot.lane.b32.xlu0 %v2082, 95
      %v2112 = vpop.permute.xlu0 %2111
      %2113 = vrot.lane.b32.xlu0 %v2083, 95
      %v2114 = vpop.permute.xlu0 %2113
      %v2115 = vsel %vm576, %v2110, %v2112
      %v2116 = vsel %vm576, %v2112, %v2114
      %2119 = vrot.lane.b32.xlu0 %v2081, 79
      %v2120 = vpop.permute.xlu0 %2119
      %2121 = vrot.lane.b32.xlu0 %v2082, 79
      %v2122 = vpop.permute.xlu0 %2121
      %2123 = vrot.lane.b32.xlu0 %v2083, 79
      %v2124 = vpop.permute.xlu0 %2123
      %v2125 = vsel %vm645, %v2120, %v2122
      %v2126 = vsel %vm645, %v2122, %v2124
      %v2129 = vsel %vm458, %v2115, %v2125
      %v2130 = vsel %vm459, %v2116, %v2126
      %2131 = vst [vmem:[#allocation3 + $0x60] sm:$0xff] %v2107
      %2132 = vst [vmem:[#allocation3 + $0x68] sm:$0xff] %v2108
      %2133 = vrot.lane.b32.xlu0 %v2081, 80
      %v2134 = vpop.permute.xlu0 %2133
      %2135 = vrot.lane.b32.xlu0 %v2082, 80
      %v2136 = vpop.permute.xlu0 %2135
      %2137 = vrot.lane.b32.xlu0 %v2083, 80
      %v2138 = vpop.permute.xlu0 %2137
      %v2139 = vsel %vm660, %v2134, %v2136
      %v2140 = vsel %vm660, %v2136, %v2138
      %2143 = vst [vmem:[#allocation3 + $0x70] sm:$0xff] %v2139
      %2144 = vst [vmem:[#allocation3 + $0x78] sm:$0xff] %v2140
      %2145 = vst [vmem:[#allocation3 + $0x80] sm:$0xff] %v2129
      %2146 = vst [vmem:[#allocation3 + $0x88] sm:$0xff] %v2130
      %v2147 = vld [vmem:[%s8] sm:$0xff]
      %v2148 = vld [vmem:[%s8 + $0x8] sm:$0xff]
      %v2149 = vld [vmem:[#allocation3] sm:$0xff]
      %v2150 = vld [vmem:[#allocation3 + $0x8] sm:$0xff]
      %v2151 = vld [vmem:[#allocation3 + $0x10] sm:$0xff]
      %v2152 = vld [vmem:[#allocation3 + $0x18] sm:$0xff]
      %v2153 = vld [vmem:[#allocation3 + $0x20] sm:$0xff]
      %v2154 = vld [vmem:[#allocation3 + $0x28] sm:$0xff]
      %v2155 = vld [vmem:[#allocation3 + $0x30] sm:$0xff]
      %v2156 = vld [vmem:[#allocation3 + $0x38] sm:$0xff]
      %v2157 = vld [vmem:[#allocation3 + $0x40] sm:$0xff]
      %v2158 = vld [vmem:[#allocation3 + $0x48] sm:$0xff]
      %v2159 = vld [vmem:[#allocation3 + $0x50] sm:$0xff]
      %v2160 = vld [vmem:[#allocation3 + $0x58] sm:$0xff]
      %v2161 = vld [vmem:[#allocation3 + $0x60] sm:$0xff]
      %v2162 = vld [vmem:[#allocation3 + $0x68] sm:$0xff]
      %v2163 = vld [vmem:[#allocation3 + $0x70] sm:$0xff]
      %v2164 = vld [vmem:[#allocation3 + $0x78] sm:$0xff]
      %v2165 = vld [vmem:[#allocation3 + $0x80] sm:$0xff]
      %v2166 = vld [vmem:[#allocation3 + $0x88] sm:$0xff]
      %2168 = vset.pattern.permute.xlu0 0
      %2169 = vperm.xlu0 %2168, %v1923
      %v2170 = vpop.permute.xlu0 %2169
      %2173 = vset.pattern.permute.xlu0 0
      %2174 = vperm.xlu0 %2173, %v1924
      %v2175 = vpop.permute.xlu0 %2174
      %v2178 = vsel %vm693, %v2147, 0
      %v2181 = vsel %vm693, %v2148, 0
      %2183 = vmatprep.subr.mxu0 %v2150
      %2184 = vmatpush1.msra.mxu0 %v2149
      %2185 = vmatprep.subr.mxu0 %v2152
      %2186 = vmatpush1.msra.mxu0 %v2151
      %2187 = vmatprep.subr.mxu0 %v2154
      %2188 = vmatpush1.msra.mxu0 %v2153
      %2189 = vmatprep.subr.mxu0 %v2156
      %2190 = vmatpush1.msra.mxu0 %v2155
      %2191 = vmatprep.subr.mxu0 %v2158
      %2192 = vmatpush1.msra.mxu0 %v2157
      %2193 = vmatprep.subr.mxu0 %v2160
      %2194 = vmatpush1.msra.mxu0 %v2159
      %2195 = vmatprep.subr.mxu0 %v2162
      %2196 = vmatpush1.msra.mxu0 %v2161
      %2197 = vmatprep.subr.mxu0 %v2164
      %2198 = vmatpush1.msra.mxu0 %v2163
      %2199 = vmatprep.subr.mxu0 %v2166
      %2200 = vmatpush1.msra.mxu0 %v2165
      %2201 = vmatprep.subr.mxu0 0.0
      %2202 = vmatpush1.msra.mxu0 0.0
      %2203 = vmatprep.subr.mxu0 0.0
      %2204 = vmatpush1.msra.mxu0 0.0
      %2205 = vmatprep.subr.mxu0 0.0
      %2206 = vmatpush1.msra.mxu0 0.0
      %2207 = vmatprep.subr.mxu0 0.0
      %2208 = vmatpush1.msra.mxu0 0.0
      %2209 = vmatprep.subr.mxu0 0.0
      %2210 = vmatpush1.msra.mxu0 0.0
      %2211 = vmatprep.subr.mxu0 0.0
      %2212 = vmatpush1.msra.mxu0 0.0
      %2213 = vmatprep.subr.mxu0 0.0
      %2214 = vmatpush1.msra.mxu0 0.0
      %2215 = vmatprep.subr.mxu0 0.0
      %2216 = vmatpush1.msra.mxu0 0.0
      %2217 = vmatprep.subr.mxu0 0.0
      %2218 = vmatpush1.msra.mxu0 0.0
      %2219 = vmatprep.subr.mxu0 0.0
      %2220 = vmatpush1.msra.mxu0 0.0
      %2221 = vmatprep.subr.mxu0 0.0
      %2222 = vmatpush1.msra.mxu0 0.0
      %2223 = vmatprep.subr.mxu0 0.0
      %2224 = vmatpush1.msra.mxu0 0.0
      %2225 = vmatprep.subr.mxu0 0.0
      %2226 = vmatpush1.msra.mxu0 0.0
      %2227 = vmatprep.subr.mxu0 0.0
      %2228 = vmatpush1.msra.mxu0 0.0
      %2229 = vmatprep.subr.mxu0 0.0
      %2230 = vmatpush1.msra.mxu0 0.0
      %2231 = vmatprep.subr.mxu0 0.0
      %2232 = vmatpush1.msra.mxu0 0.0
      %2233 = vmatprep.subr.mxu0 0.0
      %2234 = vmatpush1.msra.mxu0 0.0
      %2235 = vmatprep.subr.mxu0 0.0
      %2236 = vmatpush1.msra.mxu0 0.0
      %2237 = vmatprep.subr.mxu0 0.0
      %2238 = vmatpush1.msra.mxu0 0.0
      %2239 = vmatprep.subr.mxu0 0.0
      %2240 = vmatpush1.msra.mxu0 0.0
      %2241 = vmatprep.subr.mxu0 0.0
      %2242 = vmatpush1.msra.mxu0 0.0
      %2243 = vmatprep.subr.mxu0 0.0
      %2244 = vmatpush1.msra.mxu0 0.0
      %2245 = vmatprep.subr.mxu0 0.0
      %2246 = vmatpush1.msra.mxu0 0.0
      %2247 = vmatprep.mubr.f32.mxu0 0.0
      %2248 = vmatmul.mubr.f32.gmra.mrb[0].mxu0 %v2178
      %v2249 = vpop.f32.mrb[0].mxu0
      %v2250 = vadd.f32 %v2170, %v2249
      %v2251 = vpop.f32.mrb[0].mxu0
      %v2252 = vadd.f32 %v2170, %v2251
      %2253 = vmatprep.mubr.f32.mxu0 0.0
      %2254 = vmatmul.mubr.f32.gmra.mrb[0].mxu0 %v2181
      %v2255 = vpop.f32.mrb[0].mxu0
      %v2256 = vadd.f32 %v2175, %v2255
      %v2257 = vpop.f32.mrb[0].mxu0
      %v2258 = vadd.f32 %v2175, %v2257
      %2259 = vdwg.mxu0
      %v2260 = vadd.f32 %v2250, %v2252
      %2261 = vadd.xlane.f32.xlu0 %v2260
      %v2262 = vpop.xlane.xlu0 %2261
      %v2263 = vadd.f32 %v2256, %v2258
      %2264 = vadd.xlane.f32.xlu0 %v2263
      %v2265 = vpop.xlane.xlu0 %2264
      %v2266 = vmul.f32 %v2262, 0.00390625
      %v2267 = vmul.f32 %v2265, 0.00390625
      %v2268 = vsub.f32 %v2250, %v2266
      %v2269 = vsub.f32 %v2252, %v2266
      %v2270 = vsub.f32 %v2256, %v2267
      %v2271 = vsub.f32 %v2258, %v2267
      %v2272 = vmul.f32 %v2268, %v2268
      %v2273 = vmul.f32 %v2269, %v2269
      %v2274 = vmul.f32 %v2270, %v2270
      %v2275 = vmul.f32 %v2271, %v2271
      %v2276 = vadd.f32 %v2272, %v2273
      %2277 = vadd.xlane.f32.xlu0 %v2276
      %v2278 = vpop.xlane.xlu0 %2277
      %v2279 = vadd.f32 %v2274, %v2275
      %2280 = vadd.xlane.f32.xlu0 %v2279
      %v2281 = vpop.xlane.xlu0 %2280
      %v2282 = vmul.f32 %v2278, 0.00390625
      %v2283 = vmul.f32 %v2281, 0.00390625
      %v2284 = vadd.f32 %v2282, 1e-05
      %v2285 = vadd.f32 %v2283, 1e-05
      %v2286 = vrsqrt.pop %v2284
      %v2287 = vrsqrt.pop %v2285
      %v2288 = vmul.f32 %v2268, %v2286
      %v2289 = vmul.f32 %v2269, %v2286
      %v2290 = vmul.f32 %v2270, %v2287
      %v2291 = vmul.f32 %v2271, %v2287
      %2292 = vset.pattern.permute.xlu0 1
      %2293 = vperm.xlu0 %2292, %v1923
      %v2294 = vpop.permute.xlu0 %2293
      %2296 = vset.pattern.permute.xlu0 1
      %2297 = vperm.xlu0 %2296, %v1924
      %v2298 = vpop.permute.xlu0 %2297
      %v2300 = vmul.f32 %v2288, %v2294
      %v2301 = vmul.f32 %v2289, %v2294
      %v2302 = vmul.f32 %v2290, %v2298
      %v2303 = vmul.f32 %v2291, %v2298
      %2304 = vset.pattern.permute.xlu0 2
      %2305 = vperm.xlu0 %2304, %v1923
      %v2306 = vpop.permute.xlu0 %2305
      %2308 = vset.pattern.permute.xlu0 2
      %2309 = vperm.xlu0 %2308, %v1924
      %v2310 = vpop.permute.xlu0 %2309
      %v2312 = vadd.f32 %v2300, %v2306
      %v2313 = vadd.f32 %v2301, %v2306
      %v2314 = vadd.f32 %v2302, %v2310
      %v2315 = vadd.f32 %v2303, %v2310
      %vm2316 = vcmp.ge.f32.partialorder %v2312, 0.0
      %vm2317 = vcmp.ge.f32.partialorder %v2313, 0.0
      %vm2318 = vcmp.ge.f32.partialorder %v2314, 0.0
      %vm2319 = vcmp.ge.f32.partialorder %v2315, 0.0
      %v2320 = vmul.f32 %v2312, 0.3
      %v2321 = vmul.f32 %v2313, 0.3
      %v2322 = vmul.f32 %v2314, 0.3
      %v2323 = vmul.f32 %v2315, 0.3
      %v2324 = vsel %vm2316, %v2312, %v2320
      %v2325 = vsel %vm2317, %v2313, %v2321
      %v2326 = vsel %vm2318, %v2314, %v2322
      %v2327 = vsel %vm2319, %v2315, %v2323
      %2328 = vst.msk [vmem:[#allocation2] sm:$0xff] %vm434, %v2324
      %2329 = vst.msk [vmem:[#allocation2 + $0x18] sm:$0xff] %vm434, %v2326
      %2334 = vrot.lane.b32.xlu0 %v2324, 32
      %v2335 = vpop.permute.xlu0 %2334
      %2336 = vrot.lane.b32.xlu0 %v2325, 32
      %v2337 = vpop.permute.xlu0 %2336
      %2338 = vrot.lane.b32.xlu0 %v2326, 32
      %v2339 = vpop.permute.xlu0 %2338
      %2340 = vrot.lane.b32.xlu0 %v2327, 32
      %v2341 = vpop.permute.xlu0 %2340
      %v2342 = vsel %vm442, %v2335, %v2337
      %v2343 = vsel %vm442, %v2339, %v2341
      %2350 = vst.msk [vmem:[#allocation2] sm:$0xff] %vm447, %v2335
      %2351 = vst [vmem:[#allocation2 + $0x8] sm:$0xff] %v2342
      %2352 = vst.msk [vmem:[#allocation2 + $0x10] sm:$0xff] %vm442, %v2337
      %2353 = vst.msk [vmem:[#allocation2 + $0x18] sm:$0xff] %vm447, %v2339
      %2354 = vst [vmem:[#allocation2 + $0x20] sm:$0xff] %v2343
      %2355 = vst.msk [vmem:[#allocation2 + $0x28] sm:$0xff] %vm442, %v2341
      %2356 = vrot.lane.b32.xlu0 %v2325, 64
      %v2357 = vpop.permute.xlu0 %2356
      %2358 = vrot.lane.b32.xlu0 %v2327, 64
      %v2359 = vpop.permute.xlu0 %2358
      %2362 = vst.msk [vmem:[#allocation2 + $0x10] sm:$0xff] %vm454, %v2357
      %2363 = vst.msk [vmem:[#allocation2 + $0x28] sm:$0xff] %vm454, %v2359
      %v2364 = vld [vmem:[#allocation2] sm:$0xff]
      %v2365 = vld [vmem:[#allocation2 + $0x8] sm:$0xff]
      %v2366 = vld [vmem:[#allocation2 + $0x10] sm:$0xff]
      %v2367 = vld [vmem:[#allocation2 + $0x18] sm:$0xff]
      %v2368 = vld [vmem:[#allocation2 + $0x20] sm:$0xff]
      %v2369 = vld [vmem:[#allocation2 + $0x28] sm:$0xff]
      %2376 = vrot.lane.b32.xlu0 %v2364, 97
      %v2377 = vpop.permute.xlu0 %2376
      %2378 = vrot.lane.b32.xlu0 %v2365, 97
      %v2379 = vpop.permute.xlu0 %2378
      %2380 = vrot.lane.b32.xlu0 %v2366, 97
      %v2381 = vpop.permute.xlu0 %2380
      %2382 = vrot.lane.b32.xlu0 %v2367, 97
      %v2383 = vpop.permute.xlu0 %2382
      %2384 = vrot.lane.b32.xlu0 %v2368, 97
      %v2385 = vpop.permute.xlu0 %2384
      %2386 = vrot.lane.b32.xlu0 %v2369, 97
      %v2387 = vpop.permute.xlu0 %2386
      %v2388 = vsel %vm472, %v2377, %v2379
      %v2389 = vsel %vm472, %v2379, %v2381
      %v2390 = vsel %vm472, %v2383, %v2385
      %v2391 = vsel %vm472, %v2385, %v2387
      %2396 = vrot.lane.b32.xlu0 %v2364, 113
      %v2397 = vpop.permute.xlu0 %2396
      %2398 = vrot.lane.b32.xlu0 %v2365, 113
      %v2399 = vpop.permute.xlu0 %2398
      %2400 = vrot.lane.b32.xlu0 %v2366, 113
      %v2401 = vpop.permute.xlu0 %2400
      %2402 = vrot.lane.b32.xlu0 %v2367, 113
      %v2403 = vpop.permute.xlu0 %2402
      %2404 = vrot.lane.b32.xlu0 %v2368, 113
      %v2405 = vpop.permute.xlu0 %2404
      %2406 = vrot.lane.b32.xlu0 %v2369, 113
      %v2407 = vpop.permute.xlu0 %2406
      %v2408 = vsel %vm483, %v2397, %v2399
      %v2409 = vsel %vm483, %v2399, %v2401
      %v2410 = vsel %vm483, %v2403, %v2405
      %v2411 = vsel %vm483, %v2405, %v2407
      %v2416 = vsel %vm456, %v2388, %v2408
      %v2417 = vsel %vm457, %v2389, %v2409
      %v2418 = vsel %vm456, %v2390, %v2410
      %v2419 = vsel %vm457, %v2391, %v2411
      %2420 = vrot.lane.b32.xlu0 %v2364, 127
      %v2421 = vpop.permute.xlu0 %2420
      %2422 = vrot.lane.b32.xlu0 %v2365, 127
      %v2423 = vpop.permute.xlu0 %2422
      %2424 = vrot.lane.b32.xlu0 %v2366, 127
      %v2425 = vpop.permute.xlu0 %2424
      %2426 = vrot.lane.b32.xlu0 %v2367, 127
      %v2427 = vpop.permute.xlu0 %2426
      %2428 = vrot.lane.b32.xlu0 %v2368, 127
      %v2429 = vpop.permute.xlu0 %2428
      %2430 = vrot.lane.b32.xlu0 %v2369, 127
      %v2431 = vpop.permute.xlu0 %2430
      %v2432 = vsel %vm496, %v2421, %v2423
      %v2433 = vsel %vm496, %v2423, %v2425
      %v2434 = vsel %vm496, %v2427, %v2429
      %v2435 = vsel %vm496, %v2429, %v2431
      %2440 = vrot.lane.b32.xlu0 %v2364, 111
      %v2441 = vpop.permute.xlu0 %2440
      %2442 = vrot.lane.b32.xlu0 %v2365, 111
      %v2443 = vpop.permute.xlu0 %2442
      %2444 = vrot.lane.b32.xlu0 %v2366, 111
      %v2445 = vpop.permute.xlu0 %2444
      %2446 = vrot.lane.b32.xlu0 %v2367, 111
      %v2447 = vpop.permute.xlu0 %2446
      %2448 = vrot.lane.b32.xlu0 %v2368, 111
      %v2449 = vpop.permute.xlu0 %2448
      %2450 = vrot.lane.b32.xlu0 %v2369, 111
      %v2451 = vpop.permute.xlu0 %2450
      %v2452 = vsel %vm507, %v2441, %v2443
      %v2453 = vsel %vm507, %v2443, %v2445
      %v2454 = vsel %vm507, %v2447, %v2449
      %v2455 = vsel %vm507, %v2449, %v2451
      %v2460 = vsel %vm458, %v2432, %v2452
      %v2461 = vsel %vm459, %v2433, %v2453
      %v2462 = vsel %vm458, %v2434, %v2454
      %v2463 = vsel %vm459, %v2435, %v2455
      %2464 = vst [vmem:[#allocation3] sm:$0xff] %v2416
      %2465 = vst [vmem:[#allocation3 + $0x8] sm:$0xff] %v2417
      %2466 = vst [vmem:[#allocation3 + $0x10] sm:$0xff] %v2418
      %2467 = vst [vmem:[#allocation3 + $0x18] sm:$0xff] %v2419
      %2468 = vrot.lane.b32.xlu0 %v2364, 112
      %v2469 = vpop.permute.xlu0 %2468
      %2470 = vrot.lane.b32.xlu0 %v2365, 112
      %v2471 = vpop.permute.xlu0 %2470
      %2472 = vrot.lane.b32.xlu0 %v2366, 112
      %v2473 = vpop.permute.xlu0 %2472
      %2474 = vrot.lane.b32.xlu0 %v2367, 112
      %v2475 = vpop.permute.xlu0 %2474
      %2476 = vrot.lane.b32.xlu0 %v2368, 112
      %v2477 = vpop.permute.xlu0 %2476
      %2478 = vrot.lane.b32.xlu0 %v2369, 112
      %v2479 = vpop.permute.xlu0 %2478
      %v2480 = vsel %vm522, %v2469, %v2471
      %v2481 = vsel %vm522, %v2471, %v2473
      %v2482 = vsel %vm522, %v2475, %v2477
      %v2483 = vsel %vm522, %v2477, %v2479
      %2488 = vst [vmem:[#allocation3 + $0x20] sm:$0xff] %v2480
      %2489 = vst [vmem:[#allocation3 + $0x28] sm:$0xff] %v2481
      %2490 = vst [vmem:[#allocation3 + $0x30] sm:$0xff] %v2482
      %2491 = vst [vmem:[#allocation3 + $0x38] sm:$0xff] %v2483
      %2492 = vst [vmem:[#allocation3 + $0x40] sm:$0xff] %v2460
      %2493 = vst [vmem:[#allocation3 + $0x48] sm:$0xff] %v2461
      %2494 = vst [vmem:[#allocation3 + $0x50] sm:$0xff] %v2462
      %2495 = vst [vmem:[#allocation3 + $0x58] sm:$0xff] %v2463
      %v2496 = vld [vmem:[#allocation2] sm:$0xff]
      %v2497 = vld [vmem:[#allocation2 + $0x8] sm:$0xff]
      %v2498 = vld [vmem:[#allocation2 + $0x10] sm:$0xff]
      %v2499 = vld [vmem:[#allocation2 + $0x18] sm:$0xff]
      %v2500 = vld [vmem:[#allocation2 + $0x20] sm:$0xff]
      %v2501 = vld [vmem:[#allocation2 + $0x28] sm:$0xff]
      %2508 = vrot.lane.b32.xlu0 %v2496, 81
      %v2509 = vpop.permute.xlu0 %2508
      %2510 = vrot.lane.b32.xlu0 %v2497, 81
      %v2511 = vpop.permute.xlu0 %2510
      %2512 = vrot.lane.b32.xlu0 %v2498, 81
      %v2513 = vpop.permute.xlu0 %2512
      %2514 = vrot.lane.b32.xlu0 %v2499, 81
      %v2515 = vpop.permute.xlu0 %2514
      %2516 = vrot.lane.b32.xlu0 %v2500, 81
      %v2517 = vpop.permute.xlu0 %2516
      %2518 = vrot.lane.b32.xlu0 %v2501, 81
      %v2519 = vpop.permute.xlu0 %2518
      %v2520 = vsel %vm543, %v2509, %v2511
      %v2521 = vsel %vm543, %v2511, %v2513
      %v2522 = vsel %vm543, %v2515, %v2517
      %v2523 = vsel %vm543, %v2517, %v2519
      %2528 = vrot.lane.b32.xlu0 %v2496, 97
      %v2529 = vpop.permute.xlu0 %2528
      %2530 = vrot.lane.b32.xlu0 %v2497, 97
      %v2531 = vpop.permute.xlu0 %2530
      %2532 = vrot.lane.b32.xlu0 %v2498, 97
      %v2533 = vpop.permute.xlu0 %2532
      %2534 = vrot.lane.b32.xlu0 %v2499, 97
      %v2535 = vpop.permute.xlu0 %2534
      %2536 = vrot.lane.b32.xlu0 %v2500, 97
      %v2537 = vpop.permute.xlu0 %2536
      %2538 = vrot.lane.b32.xlu0 %v2501, 97
      %v2539 = vpop.permute.xlu0 %2538
      %v2540 = vsel %vm472, %v2529, %v2531
      %v2541 = vsel %vm472, %v2531, %v2533
      %v2542 = vsel %vm472, %v2535, %v2537
      %v2543 = vsel %vm472, %v2537, %v2539
      %v2548 = vsel %vm456, %v2520, %v2540
      %v2549 = vsel %vm457, %v2521, %v2541
      %v2550 = vsel %vm456, %v2522, %v2542
      %v2551 = vsel %vm457, %v2523, %v2543
      %2552 = vrot.lane.b32.xlu0 %v2496, 111
      %v2553 = vpop.permute.xlu0 %2552
      %2554 = vrot.lane.b32.xlu0 %v2497, 111
      %v2555 = vpop.permute.xlu0 %2554
      %2556 = vrot.lane.b32.xlu0 %v2498, 111
      %v2557 = vpop.permute.xlu0 %2556
      %2558 = vrot.lane.b32.xlu0 %v2499, 111
      %v2559 = vpop.permute.xlu0 %2558
      %2560 = vrot.lane.b32.xlu0 %v2500, 111
      %v2561 = vpop.permute.xlu0 %2560
      %2562 = vrot.lane.b32.xlu0 %v2501, 111
      %v2563 = vpop.permute.xlu0 %2562
      %v2564 = vsel %vm507, %v2553, %v2555
      %v2565 = vsel %vm507, %v2555, %v2557
      %v2566 = vsel %vm507, %v2559, %v2561
      %v2567 = vsel %vm507, %v2561, %v2563
      %2572 = vrot.lane.b32.xlu0 %v2496, 95
      %v2573 = vpop.permute.xlu0 %2572
      %2574 = vrot.lane.b32.xlu0 %v2497, 95
      %v2575 = vpop.permute.xlu0 %2574
      %2576 = vrot.lane.b32.xlu0 %v2498, 95
      %v2577 = vpop.permute.xlu0 %2576
      %2578 = vrot.lane.b32.xlu0 %v2499, 95
      %v2579 = vpop.permute.xlu0 %2578
      %2580 = vrot.lane.b32.xlu0 %v2500, 95
      %v2581 = vpop.permute.xlu0 %2580
      %2582 = vrot.lane.b32.xlu0 %v2501, 95
      %v2583 = vpop.permute.xlu0 %2582
      %v2584 = vsel %vm576, %v2573, %v2575
      %v2585 = vsel %vm576, %v2575, %v2577
      %v2586 = vsel %vm576, %v2579, %v2581
      %v2587 = vsel %vm576, %v2581, %v2583
      %v2592 = vsel %vm458, %v2564, %v2584
      %v2593 = vsel %vm459, %v2565, %v2585
      %v2594 = vsel %vm458, %v2566, %v2586
      %v2595 = vsel %vm459, %v2567, %v2587
      %2596 = vst [vmem:[#allocation3 + $0x60] sm:$0xff] %v2548
      %2597 = vst [vmem:[#allocation3 + $0x68] sm:$0xff] %v2549
      %2598 = vst [vmem:[#allocation3 + $0x70] sm:$0xff] %v2550
      %2599 = vst [vmem:[#allocation3 + $0x78] sm:$0xff] %v2551
      %2600 = vrot.lane.b32.xlu0 %v2496, 96
      %v2601 = vpop.permute.xlu0 %2600
      %2602 = vrot.lane.b32.xlu0 %v2497, 96
      %v2603 = vpop.permute.xlu0 %2602
      %2604 = vrot.lane.b32.xlu0 %v2498, 96
      %v2605 = vpop.permute.xlu0 %2604
      %2606 = vrot.lane.b32.xlu0 %v2499, 96
      %v2607 = vpop.permute.xlu0 %2606
      %2608 = vrot.lane.b32.xlu0 %v2500, 96
      %v2609 = vpop.permute.xlu0 %2608
      %2610 = vrot.lane.b32.xlu0 %v2501, 96
      %v2611 = vpop.permute.xlu0 %2610
      %v2612 = vsel %vm591, %v2601, %v2603
      %v2613 = vsel %vm591, %v2603, %v2605
      %v2614 = vsel %vm591, %v2607, %v2609
      %v2615 = vsel %vm591, %v2609, %v2611
      %2620 = vst [vmem:[#allocation3 + $0x80] sm:$0xff] %v2612
      %2621 = vst [vmem:[#allocation3 + $0x88] sm:$0xff] %v2613
      %2622 = vst [vmem:[#allocation3 + $0x90] sm:$0xff] %v2614
      %2623 = vst [vmem:[#allocation3 + $0x98] sm:$0xff] %v2615
      %2624 = vst [vmem:[#allocation3 + $0xa0] sm:$0xff] %v2592
      %2625 = vst [vmem:[#allocation3 + $0xa8] sm:$0xff] %v2593
      %2626 = vst [vmem:[#allocation3 + $0xb0] sm:$0xff] %v2594
      %2627 = vst [vmem:[#allocation3 + $0xb8] sm:$0xff] %v2595
      %v2628 = vld [vmem:[#allocation2] sm:$0xff]
      %v2629 = vld [vmem:[#allocation2 + $0x8] sm:$0xff]
      %v2630 = vld [vmem:[#allocation2 + $0x10] sm:$0xff]
      %v2631 = vld [vmem:[#allocation2 + $0x18] sm:$0xff]
      %v2632 = vld [vmem:[#allocation2 + $0x20] sm:$0xff]
      %v2633 = vld [vmem:[#allocation2 + $0x28] sm:$0xff]
      %2640 = vrot.lane.b32.xlu0 %v2628, 65
      %v2641 = vpop.permute.xlu0 %2640
      %2642 = vrot.lane.b32.xlu0 %v2629, 65
      %v2643 = vpop.permute.xlu0 %2642
      %2644 = vrot.lane.b32.xlu0 %v2630, 65
      %v2645 = vpop.permute.xlu0 %2644
      %2646 = vrot.lane.b32.xlu0 %v2631, 65
      %v2647 = vpop.permute.xlu0 %2646
      %2648 = vrot.lane.b32.xlu0 %v2632, 65
      %v2649 = vpop.permute.xlu0 %2648
      %2650 = vrot.lane.b32.xlu0 %v2633, 65
      %v2651 = vpop.permute.xlu0 %2650
      %v2652 = vsel %vm612, %v2641, %v2643
      %v2653 = vsel %vm612, %v2643, %v2645
      %v2654 = vsel %vm612, %v2647, %v2649
      %v2655 = vsel %vm612, %v2649, %v2651
      %2660 = vrot.lane.b32.xlu0 %v2628, 81
      %v2661 = vpop.permute.xlu0 %2660
      %2662 = vrot.lane.b32.xlu0 %v2629, 81
      %v2663 = vpop.permute.xlu0 %2662
      %2664 = vrot.lane.b32.xlu0 %v2630, 81
      %v2665 = vpop.permute.xlu0 %2664
      %2666 = vrot.lane.b32.xlu0 %v2631, 81
      %v2667 = vpop.permute.xlu0 %2666
      %2668 = vrot.lane.b32.xlu0 %v2632, 81
      %v2669 = vpop.permute.xlu0 %2668
      %2670 = vrot.lane.b32.xlu0 %v2633, 81
      %v2671 = vpop.permute.xlu0 %2670
      %v2672 = vsel %vm543, %v2661, %v2663
      %v2673 = vsel %vm543, %v2663, %v2665
      %v2674 = vsel %vm543, %v2667, %v2669
      %v2675 = vsel %vm543, %v2669, %v2671
      %v2680 = vsel %vm456, %v2652, %v2672
      %v2681 = vsel %vm457, %v2653, %v2673
      %v2682 = vsel %vm456, %v2654, %v2674
      %v2683 = vsel %vm457, %v2655, %v2675
      %2684 = vrot.lane.b32.xlu0 %v2628, 95
      %v2685 = vpop.permute.xlu0 %2684
      %2686 = vrot.lane.b32.xlu0 %v2629, 95
      %v2687 = vpop.permute.xlu0 %2686
      %2688 = vrot.lane.b32.xlu0 %v2630, 95
      %v2689 = vpop.permute.xlu0 %2688
      %2690 = vrot.lane.b32.xlu0 %v2631, 95
      %v2691 = vpop.permute.xlu0 %2690
      %2692 = vrot.lane.b32.xlu0 %v2632, 95
      %v2693 = vpop.permute.xlu0 %2692
      %2694 = vrot.lane.b32.xlu0 %v2633, 95
      %v2695 = vpop.permute.xlu0 %2694
      %v2696 = vsel %vm576, %v2685, %v2687
      %v2697 = vsel %vm576, %v2687, %v2689
      %v2698 = vsel %vm576, %v2691, %v2693
      %v2699 = vsel %vm576, %v2693, %v2695
      %2704 = vrot.lane.b32.xlu0 %v2628, 79
      %v2705 = vpop.permute.xlu0 %2704
      %2706 = vrot.lane.b32.xlu0 %v2629, 79
      %v2707 = vpop.permute.xlu0 %2706
      %2708 = vrot.lane.b32.xlu0 %v2630, 79
      %v2709 = vpop.permute.xlu0 %2708
      %2710 = vrot.lane.b32.xlu0 %v2631, 79
      %v2711 = vpop.permute.xlu0 %2710
      %2712 = vrot.lane.b32.xlu0 %v2632, 79
      %v2713 = vpop.permute.xlu0 %2712
      %2714 = vrot.lane.b32.xlu0 %v2633, 79
      %v2715 = vpop.permute.xlu0 %2714
      %v2716 = vsel %vm645, %v2705, %v2707
      %v2717 = vsel %vm645, %v2707, %v2709
      %v2718 = vsel %vm645, %v2711, %v2713
      %v2719 = vsel %vm645, %v2713, %v2715
      %v2724 = vsel %vm458, %v2696, %v2716
      %v2725 = vsel %vm459, %v2697, %v2717
      %v2726 = vsel %vm458, %v2698, %v2718
      %v2727 = vsel %vm459, %v2699, %v2719
      %2728 = vst [vmem:[#allocation3 + $0xc0] sm:$0xff] %v2680
      %2729 = vst [vmem:[#allocation3 + $0xc8] sm:$0xff] %v2681
      %2730 = vst [vmem:[#allocation3 + $0xd0] sm:$0xff] %v2682
      %2731 = vst [vmem:[#allocation3 + $0xd8] sm:$0xff] %v2683
      %2732 = vrot.lane.b32.xlu0 %v2628, 80
      %v2733 = vpop.permute.xlu0 %2732
      %2734 = vrot.lane.b32.xlu0 %v2629, 80
      %v2735 = vpop.permute.xlu0 %2734
      %2736 = vrot.lane.b32.xlu0 %v2630, 80
      %v2737 = vpop.permute.xlu0 %2736
      %2738 = vrot.lane.b32.xlu0 %v2631, 80
      %v2739 = vpop.permute.xlu0 %2738
      %2740 = vrot.lane.b32.xlu0 %v2632, 80
      %v2741 = vpop.permute.xlu0 %2740
      %2742 = vrot.lane.b32.xlu0 %v2633, 80
      %v2743 = vpop.permute.xlu0 %2742
      %v2744 = vsel %vm660, %v2733, %v2735
      %v2745 = vsel %vm660, %v2735, %v2737
      %v2746 = vsel %vm660, %v2739, %v2741
      %v2747 = vsel %vm660, %v2741, %v2743
      %2752 = vst [vmem:[#allocation3 + $0xe0] sm:$0xff] %v2744
      %2753 = vst [vmem:[#allocation3 + $0xe8] sm:$0xff] %v2745
      %2754 = vst [vmem:[#allocation3 + $0xf0] sm:$0xff] %v2746
      %2755 = vst [vmem:[#allocation3 + $0xf8] sm:$0xff] %v2747
      %2756 = vst [vmem:[#allocation3 + $0x100] sm:$0xff] %v2724
      %2757 = vst [vmem:[#allocation3 + $0x108] sm:$0xff] %v2725
      %2758 = vst [vmem:[#allocation3 + $0x110] sm:$0xff] %v2726
      %2759 = vst [vmem:[#allocation3 + $0x118] sm:$0xff] %v2727
      %v2760 = vld [vmem:[%s9] sm:$0xff]
      %v2761 = vld [vmem:[%s9 + $0x8] sm:$0xff]
      %v2762 = vld [vmem:[%s9 + $0x10] sm:$0xff]
      %v2763 = vld [vmem:[%s9 + $0x18] sm:$0xff]
      %v2764 = vld [vmem:[#allocation3] sm:$0xff]
      %v2765 = vld [vmem:[#allocation3 + $0x8] sm:$0xff]
      %v2766 = vld [vmem:[#allocation3 + $0x10] sm:$0xff]
      %v2767 = vld [vmem:[#allocation3 + $0x18] sm:$0xff]
      %v2768 = vld [vmem:[#allocation3 + $0x20] sm:$0xff]
      %v2769 = vld [vmem:[#allocation3 + $0x28] sm:$0xff]
      %v2770 = vld [vmem:[#allocation3 + $0x30] sm:$0xff]
      %v2771 = vld [vmem:[#allocation3 + $0x38] sm:$0xff]
      %v2772 = vld [vmem:[#allocation3 + $0x40] sm:$0xff]
      %v2773 = vld [vmem:[#allocation3 + $0x48] sm:$0xff]
      %v2774 = vld [vmem:[#allocation3 + $0x50] sm:$0xff]
      %v2775 = vld [vmem:[#allocation3 + $0x58] sm:$0xff]
      %v2776 = vld [vmem:[#allocation3 + $0x60] sm:$0xff]
      %v2777 = vld [vmem:[#allocation3 + $0x68] sm:$0xff]
      %v2778 = vld [vmem:[#allocation3 + $0x70] sm:$0xff]
      %v2779 = vld [vmem:[#allocation3 + $0x78] sm:$0xff]
      %v2780 = vld [vmem:[#allocation3 + $0x80] sm:$0xff]
      %v2781 = vld [vmem:[#allocation3 + $0x88] sm:$0xff]
      %v2782 = vld [vmem:[#allocation3 + $0x90] sm:$0xff]
      %v2783 = vld [vmem:[#allocation3 + $0x98] sm:$0xff]
      %v2784 = vld [vmem:[#allocation3 + $0xa0] sm:$0xff]
      %v2785 = vld [vmem:[#allocation3 + $0xa8] sm:$0xff]
      %v2786 = vld [vmem:[#allocation3 + $0xb0] sm:$0xff]
      %v2787 = vld [vmem:[#allocation3 + $0xb8] sm:$0xff]
      %v2788 = vld [vmem:[#allocation3 + $0xc0] sm:$0xff]
      %v2789 = vld [vmem:[#allocation3 + $0xc8] sm:$0xff]
      %v2790 = vld [vmem:[#allocation3 + $0xd0] sm:$0xff]
      %v2791 = vld [vmem:[#allocation3 + $0xd8] sm:$0xff]
      %v2792 = vld [vmem:[#allocation3 + $0xe0] sm:$0xff]
      %v2793 = vld [vmem:[#allocation3 + $0xe8] sm:$0xff]
      %v2794 = vld [vmem:[#allocation3 + $0xf0] sm:$0xff]
      %v2795 = vld [vmem:[#allocation3 + $0xf8] sm:$0xff]
      %v2796 = vld [vmem:[#allocation3 + $0x100] sm:$0xff]
      %v2797 = vld [vmem:[#allocation3 + $0x108] sm:$0xff]
      %v2798 = vld [vmem:[#allocation3 + $0x110] sm:$0xff]
      %v2799 = vld [vmem:[#allocation3 + $0x118] sm:$0xff]
      %2800 = vset.pattern.permute.xlu0 3
      %2801 = vperm.xlu0 %2800, %v1923
      %v2802 = vpop.permute.xlu0 %2801
      %2804 = vset.pattern.permute.xlu0 3
      %2805 = vperm.xlu0 %2804, %v1924
      %v2806 = vpop.permute.xlu0 %2805
      %v2809 = vsel %vm414, %v2761, 0
      %v2812 = vsel %vm414, %v2763, 0
      %2814 = vmatprep.subr.mxu0 %v2765
      %2815 = vmatpush1.msra.mxu0 %v2764
      %2816 = vmatprep.subr.mxu0 %v2767
      %2817 = vmatpush1.msra.mxu0 %v2766
      %2818 = vmatprep.subr.mxu0 %v2769
      %2819 = vmatpush1.msra.mxu0 %v2768
      %2820 = vmatprep.subr.mxu0 %v2771
      %2821 = vmatpush1.msra.mxu0 %v2770
      %2822 = vmatprep.subr.mxu0 %v2773
      %2823 = vmatpush1.msra.mxu0 %v2772
      %2824 = vmatprep.subr.mxu0 %v2775
      %2825 = vmatpush1.msra.mxu0 %v2774
      %2826 = vmatprep.subr.mxu0 %v2777
      %2827 = vmatpush1.msra.mxu0 %v2776
      %2828 = vmatprep.subr.mxu0 %v2779
      %2829 = vmatpush1.msra.mxu0 %v2778
      %2830 = vmatprep.subr.mxu0 %v2781
      %2831 = vmatpush1.msra.mxu0 %v2780
      %2832 = vmatprep.subr.mxu0 %v2783
      %2833 = vmatpush1.msra.mxu0 %v2782
      %2834 = vmatprep.subr.mxu0 %v2785
      %2835 = vmatpush1.msra.mxu0 %v2784
      %2836 = vmatprep.subr.mxu0 %v2787
      %2837 = vmatpush1.msra.mxu0 %v2786
      %2838 = vmatprep.subr.mxu0 %v2789
      %2839 = vmatpush1.msra.mxu0 %v2788
      %2840 = vmatprep.subr.mxu0 %v2791
      %2841 = vmatpush1.msra.mxu0 %v2790
      %2842 = vmatprep.subr.mxu0 %v2793
      %2843 = vmatpush1.msra.mxu0 %v2792
      %2844 = vmatprep.subr.mxu0 %v2795
      %2845 = vmatpush1.msra.mxu0 %v2794
      %2846 = vmatprep.subr.mxu0 %v2797
      %2847 = vmatpush1.msra.mxu0 %v2796
      %2848 = vmatprep.subr.mxu0 %v2799
      %2849 = vmatpush1.msra.mxu0 %v2798
      %2850 = vmatprep.subr.mxu0 0.0
      %2851 = vmatpush1.msra.mxu0 0.0
      %2852 = vmatprep.subr.mxu0 0.0
      %2853 = vmatpush1.msra.mxu0 0.0
      %2854 = vmatprep.subr.mxu0 0.0
      %2855 = vmatpush1.msra.mxu0 0.0
      %2856 = vmatprep.subr.mxu0 0.0
      %2857 = vmatpush1.msra.mxu0 0.0
      %2858 = vmatprep.subr.mxu0 0.0
      %2859 = vmatpush1.msra.mxu0 0.0
      %2860 = vmatprep.subr.mxu0 0.0
      %2861 = vmatpush1.msra.mxu0 0.0
      %2862 = vmatprep.subr.mxu0 0.0
      %2863 = vmatpush1.msra.mxu0 0.0
      %2864 = vmatprep.subr.mxu0 0.0
      %2865 = vmatpush1.msra.mxu0 0.0
      %2866 = vmatprep.subr.mxu0 0.0
      %2867 = vmatpush1.msra.mxu0 0.0
      %2868 = vmatprep.subr.mxu0 0.0
      %2869 = vmatpush1.msra.mxu0 0.0
      %2870 = vmatprep.subr.mxu0 0.0
      %2871 = vmatpush1.msra.mxu0 0.0
      %2872 = vmatprep.subr.mxu0 0.0
      %2873 = vmatpush1.msra.mxu0 0.0
      %2874 = vmatprep.subr.mxu0 0.0
      %2875 = vmatpush1.msra.mxu0 0.0
      %2876 = vmatprep.subr.mxu0 0.0
      %2877 = vmatpush1.msra.mxu0 0.0
      %2878 = vmatprep.mubr.f32.mxu0 %v2809
      %2879 = vmatmul.mubr.f32.gmra.mrb[0].mxu0 %v2760
      %v2880 = vpop.f32.mrb[0].mxu0
      %v2881 = vadd.f32 %v2802, %v2880
      %v2882 = vpop.f32.mrb[0].mxu0
      %v2883 = vadd.f32 %v2802, %v2882
      %2884 = vmatprep.mubr.f32.mxu0 %v2812
      %2885 = vmatmul.mubr.f32.gmra.mrb[0].mxu0 %v2762
      %v2886 = vpop.f32.mrb[0].mxu0
      %v2887 = vadd.f32 %v2806, %v2886
      %v2888 = vpop.f32.mrb[0].mxu0
      %v2889 = vadd.f32 %v2806, %v2888
      %2890 = vdwg.mxu0
      %v2891 = vadd.f32 %v2881, %v2883
      %2892 = vadd.xlane.f32.xlu0 %v2891
      %v2893 = vpop.xlane.xlu0 %2892
      %v2894 = vadd.f32 %v2887, %v2889
      %2895 = vadd.xlane.f32.xlu0 %v2894
      %v2896 = vpop.xlane.xlu0 %2895
      %v2897 = vmul.f32 %v2893, 0.00390625
      %v2898 = vmul.f32 %v2896, 0.00390625
      %v2899 = vsub.f32 %v2881, %v2897
      %v2900 = vsub.f32 %v2883, %v2897
      %v2901 = vsub.f32 %v2887, %v2898
      %v2902 = vsub.f32 %v2889, %v2898
      %v2903 = vmul.f32 %v2899, %v2899
      %v2904 = vmul.f32 %v2900, %v2900
      %v2905 = vmul.f32 %v2901, %v2901
      %v2906 = vmul.f32 %v2902, %v2902
      %v2907 = vadd.f32 %v2903, %v2904
      %2908 = vadd.xlane.f32.xlu0 %v2907
      %v2909 = vpop.xlane.xlu0 %2908
      %v2910 = vadd.f32 %v2905, %v2906
      %2911 = vadd.xlane.f32.xlu0 %v2910
      %v2912 = vpop.xlane.xlu0 %2911
      %v2913 = vmul.f32 %v2909, 0.00390625
      %v2914 = vmul.f32 %v2912, 0.00390625
      %v2915 = vadd.f32 %v2913, 1e-05
      %v2916 = vadd.f32 %v2914, 1e-05
      %v2917 = vrsqrt.pop %v2915
      %v2918 = vrsqrt.pop %v2916
      %v2919 = vmul.f32 %v2899, %v2917
      %v2920 = vmul.f32 %v2900, %v2917
      %v2921 = vmul.f32 %v2901, %v2918
      %v2922 = vmul.f32 %v2902, %v2918
      %2923 = vset.pattern.permute.xlu0 4
      %2924 = vperm.xlu0 %2923, %v1923
      %v2925 = vpop.permute.xlu0 %2924
      %2927 = vset.pattern.permute.xlu0 4
      %2928 = vperm.xlu0 %2927, %v1924
      %v2929 = vpop.permute.xlu0 %2928
      %v2931 = vmul.f32 %v2919, %v2925
      %v2932 = vmul.f32 %v2920, %v2925
      %v2933 = vmul.f32 %v2921, %v2929
      %v2934 = vmul.f32 %v2922, %v2929
      %2935 = vset.pattern.permute.xlu0 5
      %2936 = vperm.xlu0 %2935, %v1923
      %v2937 = vpop.permute.xlu0 %2936
      %2939 = vset.pattern.permute.xlu0 5
      %2940 = vperm.xlu0 %2939, %v1924
      %v2941 = vpop.permute.xlu0 %2940
      %v2943 = vadd.f32 %v2931, %v2937
      %v2944 = vadd.f32 %v2932, %v2937
      %v2945 = vadd.f32 %v2933, %v2941
      %v2946 = vadd.f32 %v2934, %v2941
      %v2947 = vld [vmem:[%s11] sm:$0xff]
      %v2948 = vld [vmem:[%s11 + $0x8] sm:$0xff]
      %2949 = vset.pattern.permute.xlu0 6
      %2950 = vperm.xlu0 %2949, %v1923
      %v2951 = vpop.permute.xlu0 %2950
      %2953 = vset.pattern.permute.xlu0 6
      %2954 = vperm.xlu0 %2953, %v1924
      %v2955 = vpop.permute.xlu0 %2954
      %v2958 = vsel %vm1148, %v2947, 0
      %v2961 = vsel %vm1148, %v2948, 0
      %2963 = vmatprep.subr.mxu0 %v1922
      %2964 = vmatpush1.msra.mxu0 %v1921
      %2965 = vmatprep.subr.mxu0 0.0
      %2966 = vmatpush1.msra.mxu0 0.0
      %2967 = vmatprep.subr.mxu0 0.0
      %2968 = vmatpush1.msra.mxu0 0.0
      %2969 = vmatprep.subr.mxu0 0.0
      %2970 = vmatpush1.msra.mxu0 0.0
      %2971 = vmatprep.subr.mxu0 0.0
      %2972 = vmatpush1.msra.mxu0 0.0
      %2973 = vmatprep.subr.mxu0 0.0
      %2974 = vmatpush1.msra.mxu0 0.0
      %2975 = vmatprep.subr.mxu0 0.0
      %2976 = vmatpush1.msra.mxu0 0.0
      %2977 = vmatprep.subr.mxu0 0.0
      %2978 = vmatpush1.msra.mxu0 0.0
      %2979 = vmatprep.subr.mxu0 0.0
      %2980 = vmatpush1.msra.mxu0 0.0
      %2981 = vmatprep.subr.mxu0 0.0
      %2982 = vmatpush1.msra.mxu0 0.0
      %2983 = vmatprep.subr.mxu0 0.0
      %2984 = vmatpush1.msra.mxu0 0.0
      %2985 = vmatprep.subr.mxu0 0.0
      %2986 = vmatpush1.msra.mxu0 0.0
      %2987 = vmatprep.subr.mxu0 0.0
      %2988 = vmatpush1.msra.mxu0 0.0
      %2989 = vmatprep.subr.mxu0 0.0
      %2990 = vmatpush1.msra.mxu0 0.0
      %2991 = vmatprep.subr.mxu0 0.0
      %2992 = vmatpush1.msra.mxu0 0.0
      %2993 = vmatprep.subr.mxu0 0.0
      %2994 = vmatpush1.msra.mxu0 0.0
      %2995 = vmatprep.subr.mxu0 0.0
      %2996 = vmatpush1.msra.mxu0 0.0
      %2997 = vmatprep.subr.mxu0 0.0
      %2998 = vmatpush1.msra.mxu0 0.0
      %2999 = vmatprep.subr.mxu0 0.0
      %3000 = vmatpush1.msra.mxu0 0.0
      %3001 = vmatprep.subr.mxu0 0.0
      %3002 = vmatpush1.msra.mxu0 0.0
      %3003 = vmatprep.subr.mxu0 0.0
      %3004 = vmatpush1.msra.mxu0 0.0
      %3005 = vmatprep.subr.mxu0 0.0
      %3006 = vmatpush1.msra.mxu0 0.0
      %3007 = vmatprep.subr.mxu0 0.0
      %3008 = vmatpush1.msra.mxu0 0.0
      %3009 = vmatprep.subr.mxu0 0.0
      %3010 = vmatpush1.msra.mxu0 0.0
      %3011 = vmatprep.subr.mxu0 0.0
      %3012 = vmatpush1.msra.mxu0 0.0
      %3013 = vmatprep.subr.mxu0 0.0
      %3014 = vmatpush1.msra.mxu0 0.0
      %3015 = vmatprep.subr.mxu0 0.0
      %3016 = vmatpush1.msra.mxu0 0.0
      %3017 = vmatprep.subr.mxu0 0.0
      %3018 = vmatpush1.msra.mxu0 0.0
      %3019 = vmatprep.subr.mxu0 0.0
      %3020 = vmatpush1.msra.mxu0 0.0
      %3021 = vmatprep.subr.mxu0 0.0
      %3022 = vmatpush1.msra.mxu0 0.0
      %3023 = vmatprep.subr.mxu0 0.0
      %3024 = vmatpush1.msra.mxu0 0.0
      %3025 = vmatprep.subr.mxu0 0.0
      %3026 = vmatpush1.msra.mxu0 0.0
      %3027 = vmatprep.mubr.f32.mxu0 0.0
      %3028 = vmatmul.mubr.f32.gmra.mrb[0].mxu0 %v2958
      %v3029 = vpop.f32.mrb[0].mxu0
      %v3030 = vadd.f32 %v2951, %v3029
      %v3031 = vpop.f32.mrb[0].mxu0
      %v3032 = vadd.f32 %v2951, %v3031
      %3033 = vmatprep.mubr.f32.mxu0 0.0
      %3034 = vmatmul.mubr.f32.gmra.mrb[0].mxu0 %v2961
      %v3035 = vpop.f32.mrb[0].mxu0
      %v3036 = vadd.f32 %v2955, %v3035
      %v3037 = vpop.f32.mrb[0].mxu0
      %v3038 = vadd.f32 %v2955, %v3037
      %3039 = vdwg.mxu0
      %v3040 = vadd.f32 %v2943, %v3030
      %v3041 = vadd.f32 %v2944, %v3032
      %v3042 = vadd.f32 %v2945, %v3036
      %v3043 = vadd.f32 %v2946, %v3038
      %3044 = vst [vmem:[%s413] sm:$0xff] %v3040
      %3045 = vst [vmem:[%s413 + $0x8] sm:$0xff] %v3041
      %3046 = vst [vmem:[%s413 + $0x10] sm:$0xff] %v3042
      %3047 = vst [vmem:[%s413 + $0x18] sm:$0xff] %v3043
      %p3048 = scmp.lt.s32.totalorder %s23, 1
      %s3049 = scalar_select %p3048, %s23, 1
      %s3050 = smul.addr %s3049, 4
      %s3051 = smul.addr %s3050, 8
      %s3052 = scalar_lea.vmem %s12, %s3051
      // Predicated region
      $region69: #{climate_resnet2d_pallas.1} parent=67 // pred_check
        %p3053 = pneg %p298
      $region70: #{climate_resnet2d_pallas.1} parent=67 // pred_check_branch
        %3055 = sbr.rel (%p3053) target = $region72
      $region71: #{climate_resnet2d_pallas.1} parent=67 // pred_region
        _
      $region72: #{climate_resnet2d_pallas.1} parent=67 // pred_fallthru
        _
    $region68: #{climate_resnet2d_pallas.1} parent=5 // pred_fallthru
      _
    %p3056 = scmp.le.s32.totalorder 2, %s18
    // Predicated region
    $region73: #{climate_resnet2d_pallas.1} parent=5 // pred_check
      %p3057 = pneg %p3056
    $region74: #{climate_resnet2d_pallas.1} parent=5 // pred_check_branch
      %3059 = sbr.rel (%p3057) target = $region76
    $region75: #{climate_resnet2d_pallas.1} parent=5 // pred_region
      %s3060 = ssub.s32 %s18, 2
      // Predicated region
      $region77: #{climate_resnet2d_pallas.1} parent=75 // pred_check
        %p3061 = pneg %p304
      $region78: #{climate_resnet2d_pallas.1} parent=75 // pred_check_branch
        %3063 = sbr.rel (%p3061) target = $region80
      $region79: #{climate_resnet2d_pallas.1} parent=75 // pred_region
        %p3064 = scmp.lt.s32.totalorder %s24, 1
        %s3065 = scalar_select %p3064, %s24, 1
        %s3066 = smul.addr %s3065, 4
        %s3067 = smul.addr %s3066, 8
        %s3068 = scalar_lea.vmem %s12, %s3067
      $region80: #{climate_resnet2d_pallas.1} parent=75 // pred_fallthru
        _
    $region76: #{climate_resnet2d_pallas.1} parent=5 // pred_fallthru
      _
  $region6: #{climate_resnet2d_pallas.1} parent=0 // loop_footer
    %s22 = sadd.s32 1, %s18
  $region7: #{climate_resnet2d_pallas.1} parent=0 // loop_footer_branch
    %17 = sbr.rel target = $region3
  $region8: #{climate_resnet2d_pallas.1} parent=0 // loop_exit
    _

</llo_original>
